<compile_context>
chip_gen: v7x
topology: tpu7x:2x2x1
jax: 0.10.0
libtpu: 0.0.40
codegen_flags: <defaults>
</compile_context>

<pallas_src>
import jax
import jax.numpy as jnp
from jax import lax
from jax.experimental import pallas as pl
from jax.experimental.pallas import tpu as pltpu

MXU_DTYPE = jnp.bfloat16     # dtype of all MXU matmul inputs (f32 accumulation)
LANE = 128


# --------------------------------------------------------------------------- kernel
def _dien_kernel(len_ref, x_ref, q_ref,
                 w_ih_ref, w_hh_ref, b_gru_ref, bhn_gru_ref,
                 aw_ih_ref, aw_hh_ref, b_aug_ref, bhn_aug_ref,
                 out_ref,
                 gru_out, gi_buf):
    T, tb, Din = x_ref.shape
    Dp = out_ref.shape[1]                     # lane-padded hidden size (multiple of 128)
    unroll = min(T, 8)                        # bounded unroll keeps LLO visibility

    lengths = len_ref[...]                    # (tb, 1) int32, loaded once

    # ---------------- phase 1: masked GRU (PyTorch gate order r, z, n) -------------
    # Hoisted input matmul: ONE (T*tb, Din) @ (Din, 3*Dp) bf16 MXU call, f32 accum.
    x_flat = x_ref[...].reshape(T * tb, Din)                 # already bf16
    gi_all = jnp.dot(x_flat, w_ih_ref[...],
                     preferred_element_type=jnp.float32) + b_gru_ref[...]
    # f32 reshape first (layout-trivial), then pack to bf16 for the store.
    gi_buf[...] = gi_all.reshape(T, tb, 3 * Dp).astype(jnp.bfloat16)

    w_hh = w_hh_ref[...]                      # (Dp, 3*Dp) bf16
    bhn = bhn_gru_ref[...]                    # (1, Dp)    f32 : b_hh of gate n only

    def gru_step(t, h_prev):
        gi = gi_buf[t].astype(jnp.float32)                   # (tb, 3*Dp)
        gh = jnp.dot(h_prev.astype(MXU_DTYPE), w_hh,
                     preferred_element_type=jnp.float32)
        r = jax.nn.sigmoid(gi[:, 0:Dp] + gh[:, 0:Dp])
        z = jax.nn.sigmoid(gi[:, Dp:2 * Dp] + gh[:, Dp:2 * Dp])
        n = jnp.tanh(gi[:, 2 * Dp:3 * Dp] + r * (gh[:, 2 * Dp:3 * Dp] + bhn))
        h_new = (1.0 - z) * n + z * h_prev
        mask = t < lengths                                   # (tb, 1)
        gru_out[t] = jnp.where(mask, h_new, 0.0)             # pad_packed fills zeros
        return jnp.where(mask, h_new, h_prev)                # packed-seq: stop updating

    h0 = jnp.zeros((tb, Dp), jnp.float32)
    lax.fori_loop(0, T, gru_step, h0, unroll=unroll)

    # ---------------- phase 2: attention softmax over time (padded steps score 0) --
    go = gru_out[...]                                        # (T, tb, Dp) f32
    s = jnp.sum(go * q_ref[...][None, :, :], axis=-1, keepdims=True)   # (T, tb, 1)
    m = jnp.max(s, axis=0, keepdims=True)
    e = jnp.exp(s - m)
    inv = pl.reciprocal(jnp.sum(e, axis=0, keepdims=True), approx=True)
    att = e * inv                                            # (T, tb, 1)

    # ---------------- phase 3: masked AUGRU -----------------------------------------
    # Hoisted input matmul: ONE (T*tb, Dp) @ (Dp, 3*Dp) bf16 MXU call (reuses gi_buf).
    gia = jnp.dot(go.reshape(T * tb, Dp).astype(MXU_DTYPE), aw_ih_ref[...],
                  preferred_element_type=jnp.float32) + b_aug_ref[...]
    gi_buf[...] = gia.reshape(T, tb, 3 * Dp).astype(jnp.bfloat16)
    # gru_out is now dead — reuse lane 0 of it to hold the attention weights
    # (no extra scratch buffer, no broadcast exp/sum work).
    gru_out[:, :, 0:1] = att

    aw_hh = aw_hh_ref[...]                    # (Dp, 3*Dp) bf16
    bhn_a = bhn_aug_ref[...]                  # (1, Dp) f32

    def augru_step(t, h_prev):
        gi = gi_buf[t].astype(jnp.float32)
        gh = jnp.dot(h_prev.astype(MXU_DTYPE), aw_hh,
                     preferred_element_type=jnp.float32)
        r = jax.nn.sigmoid(gi[:, 0:Dp] + gh[:, 0:Dp])
        u = jax.nn.sigmoid(gi[:, Dp:2 * Dp] + gh[:, Dp:2 * Dp])
        n = jnp.tanh(gi[:, 2 * Dp:3 * Dp] + r * (gh[:, 2 * Dp:3 * Dp] + bhn_a))
        a_t = gru_out[t, :, 0:1]                             # (tb, 1) attention weight
        u_hat = a_t * u                                      # att-scaled update gate
        h_new = (1.0 - u_hat) * h_prev + u_hat * n
        mask = t < lengths
        return jnp.where(mask, h_new, h_prev)                # final == h_{len-1}

    h2 = lax.fori_loop(0, T, augru_step, jnp.zeros((tb, Dp), jnp.float32),
                       unroll=unroll)
    out_ref[...] = h2


# --------------------------------------------------------------------------- wrapper
def _round_up(v, m):
    return ((v + m - 1) // m) * m


def _pad_to(a, shape):
    return jnp.pad(a, [(0, s - d) for d, s in zip(a.shape, shape)])


def _prep_gate_weight(w, in_pad, Dp, dtype):
    """PyTorch (3*Hd, In) gate-stacked weight -> (in_pad, 3*Dp), lane-padded gates."""
    Hd = w.shape[0] // 3
    blocks = [_pad_to(w[g * Hd:(g + 1) * Hd].T, (in_pad, Dp)) for g in range(3)]
    return jnp.concatenate(blocks, axis=1).astype(dtype)


def _fuse_biases(b_ih, b_hh, Dp):
    """Fold b_ih (+ b_hh for gates r,z) into the hoisted-matmul bias; keep b_hh_n."""
    Hd = b_ih.shape[0] // 3
    r = (b_ih[0:Hd] + b_hh[0:Hd]).reshape(1, Hd)
    z = (b_ih[Hd:2 * Hd] + b_hh[Hd:2 * Hd]).reshape(1, Hd)
    n = b_ih[2 * Hd:3 * Hd].reshape(1, Hd)
    fused = jnp.concatenate([_pad_to(r, (1, Dp)), _pad_to(z, (1, Dp)),
                             _pad_to(n, (1, Dp))], axis=1).astype(jnp.float32)
    bhn = _pad_to(b_hh[2 * Hd:3 * Hd].reshape(1, Hd), (1, Dp)).astype(jnp.float32)
    return fused, bhn


def init_params(key, input_size, hidden_size):
    """Deterministic init matching PyTorch GRU param shapes (gate order r,z,n)."""
    D, Hd = input_size, hidden_size
    bound = 1.0 / float(Hd) ** 0.5
    ks = jax.random.split(key, 8)
    u = lambda k, s: jax.random.uniform(k, s, jnp.float32, -bound, bound)
    return dict(
        w_ih=u(ks[0], (3 * Hd, D)),   w_hh=u(ks[1], (3 * Hd, Hd)),
        b_ih=u(ks[2], (3 * Hd,)),     b_hh=u(ks[3], (3 * Hd,)),
        aw_ih=u(ks[4], (3 * Hd, Hd)), aw_hh=u(ks[5], (3 * Hd, Hd)),
        ab_ih=u(ks[6], (3 * Hd,)),    ab_hh=u(ks[7], (3 * Hd,)),
    )


def short_term_interest_extractor(x, pos_query, lengths, params):
    # TODO(synk): num_layers>1 / bidirectional / dropout variants of nn.GRU are not
    # implemented (module defaults: 1 layer, unidirectional, dropout=0).
    B, T, Din = x.shape
    Hd = params["w_hh"].shape[1]
    Dp = _round_up(Hd, LANE)                           # lane-padded hidden size

    # Batch tile: multiple of 16 sublanes (bf16-pack friendly), capped at 128.
    tb = min(_round_up(max(B, 1), 16), 128)
    Bp = _round_up(B, tb)

    # Time-major x (bf16 — it only feeds the bf16 hoisted matmul, halves DMA bytes).
    x_tm = _pad_to(jnp.transpose(x, (1, 0, 2)), (T, Bp, Din)).astype(MXU_DTYPE)
    q_p = _pad_to(pos_query.astype(jnp.float32), (Bp, Dp))
    len2 = _pad_to(lengths.reshape(B, 1).astype(jnp.int32), (Bp, 1))

    w_ih = _prep_gate_weight(params["w_ih"], Din, Dp, MXU_DTYPE)     # (Din, 3*Dp)
    w_hh = _prep_gate_weight(params["w_hh"], Dp, Dp, MXU_DTYPE)      # (Dp, 3*Dp)
    b_gru, bhn_gru = _fuse_biases(params["b_ih"], params["b_hh"], Dp)
    aw_ih = _prep_gate_weight(params["aw_ih"], Dp, Dp, MXU_DTYPE)
    aw_hh = _prep_gate_weight(params["aw_hh"], Dp, Dp, MXU_DTYPE)
    b_aug, bhn_aug = _fuse_biases(params["ab_ih"], params["ab_hh"], Dp)

    grid = (Bp // tb,)
    full = lambda a: pl.BlockSpec(a.shape, lambda i: (0, 0))         # broadcast weights
    in_specs = [
        pl.BlockSpec((tb, 1), lambda i: (i, 0)),                     # lengths
        pl.BlockSpec((T, tb, Din), lambda i: (0, i, 0)),             # x (time-major, bf16)
        pl.BlockSpec((tb, Dp), lambda i: (i, 0)),                    # pos_query (padded)
        full(w_ih), full(w_hh), full(b_gru), full(bhn_gru),
        full(aw_ih), full(aw_hh), full(b_aug), full(bhn_aug),
    ]
    out_spec = pl.BlockSpec((tb, Dp), lambda i: (i, 0))

    # VMEM budget derived from actual footprint (scratch + double-buffered tiles +
    # weights) with headroom, clamped to [32 MiB, 100 MiB].
    scratch_bytes = T * tb * Dp * 4 + T * tb * 3 * Dp * 2
    tile_bytes = 2 * (T * tb * Din * 2 + tb * Dp * 4 + tb * 128 * 4 + tb * Dp * 4)
    weight_bytes = 2 * (Din * 3 * Dp * 2 + 3 * Dp * 3 * Dp * 2 + 2 * (3 * Dp + Dp) * 4)
    vmem_limit = int(min(max((scratch_bytes + tile_bytes + weight_bytes) * 3 // 2
                             + (4 << 20), 32 << 20), 100 << 20))

    out = pl.pallas_call(
        _dien_kernel,
        out_shape=jax.ShapeDtypeStruct((Bp, Dp), jnp.float32),
        grid_spec=pltpu.PrefetchScalarGridSpec(
            num_scalar_prefetch=0,
            grid=grid,
            in_specs=in_specs,
            out_specs=out_spec,
            scratch_shapes=[
                pltpu.VMEM((T, tb, Dp), jnp.float32),        # gru_out, then att store
                pltpu.VMEM((T, tb, 3 * Dp), jnp.bfloat16),   # hoisted gi (GRU, then AUGRU)
            ]),
        compiler_params=pltpu.CompilerParams(
            dimension_semantics=("parallel",),
            vmem_limit_bytes=vmem_limit),
    )(len2, x_tm, q_p, w_ih, w_hh, b_gru, bhn_gru, aw_ih, aw_hh, b_aug, bhn_aug)
    return out[:B, :Hd]


# --------------------------------------------------------------------------- reference
def reference(x, q, lengths, params):
    """Pure-JAX f32 mirror of the PyTorch forward (for correctness check)."""
    B, H, D = x.shape
    Hd = params["w_hh"].shape[1]

    def gru_cell(h, x_t, w_ih, w_hh, b_ih, b_hh):
        gi = x_t @ w_ih.T + b_ih
        gh = h @ w_hh.T + b_hh
        r = jax.nn.sigmoid(gi[:, :Hd] + gh[:, :Hd])
        z = jax.nn.sigmoid(gi[:, Hd:2 * Hd] + gh[:, Hd:2 * Hd])
        n = jnp.tanh(gi[:, 2 * Hd:] + r * gh[:, 2 * Hd:])
        return (1.0 - z) * n + z * h

    h = jnp.zeros((B, Hd), jnp.float32)
    outs = []
    for t in range(H):
        h_new = gru_cell(h, x[:, t], params["w_ih"], params["w_hh"],
                         params["b_ih"], params["b_hh"])
        mask = (t < lengths)[:, None]
        h = jnp.where(mask, h_new, h)
        outs.append(jnp.where(mask, h_new, 0.0))
    out = jnp.stack(outs, axis=1)                       # (B, H, Hd)
    scores = jnp.einsum("bd,bhd->bh", q, out)
    att = jax.nn.softmax(scores, axis=1)
    h2 = jnp.zeros((B, Hd), jnp.float32)
    for t in range(H):
        x_t = out[:, t]
        gi = x_t @ params["aw_ih"].T + params["ab_ih"]
        gh = h2 @ params["aw_hh"].T + params["ab_hh"]
        r = jax.nn.sigmoid(gi[:, :Hd] + gh[:, :Hd])
        u = jax.nn.sigmoid(gi[:, Hd:2 * Hd] + gh[:, Hd:2 * Hd])
        n = jnp.tanh(gi[:, 2 * Hd:] + r * gh[:, 2 * Hd:])
        u_hat = att[:, t:t + 1] * u
        h_new = (1.0 - u_hat) * h2 + u_hat * n
        mask = (t < lengths)[:, None]
        h2 = jnp.where(mask, h_new, h2)
    return h2


if __name__ == "__main__":
    B, T, Din = 8, 8, 16          # batch, seq length, input_size == hidden_size
    Hd = 16
    key = jax.random.PRNGKey(0)
    kx, kq, kp = jax.random.split(key, 3)
    x = jax.random.normal(kx, (B, T, Din), jnp.float32)
    pos_query = jax.random.normal(kq, (B, Din), jnp.float32)
    lengths = jnp.array([8, 5, 3, 8, 1, 6, 7, 2], dtype=jnp.int32)
    params = init_params(kp, Din, Hd)

    out = short_term_interest_extractor(x, pos_query, lengths, params)
    out = jax.block_until_ready(out)

    ref = reference(x, pos_query, lengths, params)
    assert out.shape == (B, Hd)
    assert bool(jnp.all(jnp.isfinite(out)))
    err = float(jnp.max(jnp.abs(out - ref)))
    # bf16 MXU inputs (incl. recurrent weights) + approx reciprocal -> relaxed tol.
    assert err < 1e-1, f"mismatch vs reference: {err}"
    print("KERNEL_OK")
</pallas_src>

<mosaic_0001>
module attributes {stable_mosaic.version = 11 : i64} {
  func.func @_dien_kernel(%arg0: i32, %arg1: memref<16x1xi32, #tpu.memory_space<vmem>>, %arg2: memref<8x16x16xbf16, #tpu.memory_space<vmem>>, %arg3: memref<16x128xf32, #tpu.memory_space<vmem>>, %arg4: memref<16x384xbf16, #tpu.memory_space<vmem>>, %arg5: memref<128x384xbf16, #tpu.memory_space<vmem>>, %arg6: memref<1x384xf32, #tpu.memory_space<vmem>>, %arg7: memref<1x128xf32, #tpu.memory_space<vmem>>, %arg8: memref<128x384xbf16, #tpu.memory_space<vmem>>, %arg9: memref<128x384xbf16, #tpu.memory_space<vmem>>, %arg10: memref<1x384xf32, #tpu.memory_space<vmem>>, %arg11: memref<1x128xf32, #tpu.memory_space<vmem>>, %arg12: memref<16x128xf32, #tpu.memory_space<vmem>>, %arg13: memref<8x16x128xf32, #tpu.memory_space<vmem>>, %arg14: memref<8x16x384xbf16, #tpu.memory_space<vmem>>) attributes {dimension_semantics = [#tpu.dimension_semantics<parallel>], iteration_bounds = array<i64: 1>, scalar_prefetch = 0 : i64, scratch_operands = 2 : i64, tpu.core_type = #tpu.core_type<tc>, window_params = [{transform_indices = @transform_0, window_bounds = array<i64: 16, 1>}, {transform_indices = @transform_1, window_bounds = array<i64: 8, 16, 16>}, {transform_indices = @transform_2, window_bounds = array<i64: 16, 128>}, {pipeline_mode = #tpu.pipeline_mode<synchronous>, transform_indices = @transform_3, window_bounds = array<i64: 16, 384>}, {pipeline_mode = #tpu.pipeline_mode<synchronous>, transform_indices = @transform_4, window_bounds = array<i64: 128, 384>}, {pipeline_mode = #tpu.pipeline_mode<synchronous>, transform_indices = @transform_5, window_bounds = array<i64: 1, 384>}, {pipeline_mode = #tpu.pipeline_mode<synchronous>, transform_indices = @transform_6, window_bounds = array<i64: 1, 128>}, {pipeline_mode = #tpu.pipeline_mode<synchronous>, transform_indices = @transform_7, window_bounds = array<i64: 128, 384>}, {pipeline_mode = #tpu.pipeline_mode<synchronous>, transform_indices = @transform_8, window_bounds = array<i64: 128, 384>}, {pipeline_mode = #tpu.pipeline_mode<synchronous>, transform_indices = @transform_9, window_bounds = array<i64: 1, 384>}, {pipeline_mode = #tpu.pipeline_mode<synchronous>, transform_indices = @transform_10, window_bounds = array<i64: 1, 128>}, {transform_indices = @transform_11, window_bounds = array<i64: 16, 128>}]} {
    %c0 = arith.constant 0 : index
    %c0_0 = arith.constant 0 : index
    %0 = vector.load %arg1[%c0, %c0_0] : memref<16x1xi32, #tpu.memory_space<vmem>>, vector<16x1xi32>
    %c0_1 = arith.constant 0 : index
    %c0_2 = arith.constant 0 : index
    %c0_3 = arith.constant 0 : index
    %1 = vector.load %arg2[%c0_1, %c0_2, %c0_3] : memref<8x16x16xbf16, #tpu.memory_space<vmem>>, vector<8x16x16xbf16>
    %2 = vector.shape_cast %1 : vector<8x16x16xbf16> to vector<128x16xbf16>
    %c0_4 = arith.constant 0 : index
    %c0_5 = arith.constant 0 : index
    %3 = vector.load %arg4[%c0_4, %c0_5] : memref<16x384xbf16, #tpu.memory_space<vmem>>, vector<16x384xbf16>
    %cst = arith.constant dense<0.000000e+00> : vector<128x384xf32>
    %4 = tpu.matmul %2, %3, %cst {dimension_numbers = #tpu.dot_dimension_numbers<[1], [0], [0], [1], [0, 0, 1, 1], [], []>} : vector<128x16xbf16>, vector<16x384xbf16>, vector<128x384xf32> -> vector<128x384xf32>
    %c0_6 = arith.constant 0 : index
    %c0_7 = arith.constant 0 : index
    %5 = vector.load %arg6[%c0_6, %c0_7] : memref<1x384xf32, #tpu.memory_space<vmem>>, vector<1x384xf32>
    %6 = vector.broadcast %5 : vector<1x384xf32> to vector<128x384xf32>
    %7 = arith.addf %4, %6 : vector<128x384xf32>
    %8 = vector.shape_cast %7 : vector<128x384xf32> to vector<8x16x384xf32>
    %9 = arith.truncf %8 : vector<8x16x384xf32> to vector<8x16x384xbf16>
    %c0_8 = arith.constant 0 : index
    %c0_9 = arith.constant 0 : index
    %c0_10 = arith.constant 0 : index
    %10 = vector.load %arg14[%c0_8, %c0_9, %c0_10] : memref<8x16x384xbf16, #tpu.memory_space<vmem>>, vector<8x16x384xbf16>
    tpu.vector_store %arg14[%c0_8, %c0_9, %c0_10], %9 {strides = array<i32>} : memref<8x16x384xbf16, #tpu.memory_space<vmem>>, vector<8x16x384xbf16>,
    %c0_11 = arith.constant 0 : index
    %c0_12 = arith.constant 0 : index
    %11 = vector.load %arg5[%c0_11, %c0_12] : memref<128x384xbf16, #tpu.memory_space<vmem>>, vector<128x384xbf16>
    %c0_13 = arith.constant 0 : index
    %c0_14 = arith.constant 0 : index
    %12 = vector.load %arg7[%c0_13, %c0_14] : memref<1x128xf32, #tpu.memory_space<vmem>>, vector<1x128xf32>
    %cst_15 = arith.constant 0.000000e+00 : f32
    %13 = vector.broadcast %cst_15 : f32 to vector<16x128xf32>
    %c0_i32 = arith.constant 0 : i32
    %14 = arith.index_cast %c0_i32 : i32 to index
    %c0_16 = arith.constant 0 : index
    %c0_17 = arith.constant 0 : index
    %15 = vector.load %arg14[%14, %c0_16, %c0_17] : memref<8x16x384xbf16, #tpu.memory_space<vmem>>, vector<1x16x384xbf16>
    %16 = vector.shape_cast %15 : vector<1x16x384xbf16> to vector<16x384xbf16>
    %17 = arith.extf %16 : vector<16x384xbf16> to vector<16x384xf32>
    %18 = arith.truncf %13 : vector<16x128xf32> to vector<16x128xbf16>
    %cst_18 = arith.constant dense<0.000000e+00> : vector<16x384xf32>
    %19 = tpu.matmul %18, %11, %cst_18 {dimension_numbers = #tpu.dot_dimension_numbers<[1], [0], [0], [1], [0, 0, 1, 1], [], []>} : vector<16x128xbf16>, vector<128x384xbf16>, vector<16x384xf32> -> vector<16x384xf32>
    %20 = vector.extract_strided_slice %17 {offsets = [0, 0], sizes = [16, 128], strides = [1, 1]} : vector<16x384xf32> to vector<16x128xf32>
    %21 = vector.extract_strided_slice %19 {offsets = [0, 0], sizes = [16, 128], strides = [1, 1]} : vector<16x384xf32> to vector<16x128xf32>
    %22 = arith.addf %20, %21 : vector<16x128xf32>
    %23 = arith.negf %22 : vector<16x128xf32>
    %24 = math.exp %23 : vector<16x128xf32>
    %cst_19 = arith.constant 1.000000e+00 : f32
    %25 = vector.broadcast %cst_19 : f32 to vector<16x128xf32>
    %26 = arith.addf %25, %24 : vector<16x128xf32>
    %27 = arith.divf %25, %26 : vector<16x128xf32>
    %28 = vector.extract_strided_slice %17 {offsets = [0, 128], sizes = [16, 128], strides = [1, 1]} : vector<16x384xf32> to vector<16x128xf32>
    %29 = vector.extract_strided_slice %19 {offsets = [0, 128], sizes = [16, 128], strides = [1, 1]} : vector<16x384xf32> to vector<16x128xf32>
    %30 = arith.addf %28, %29 : vector<16x128xf32>
    %31 = arith.negf %30 : vector<16x128xf32>
    %32 = math.exp %31 : vector<16x128xf32>
    %cst_20 = arith.constant 1.000000e+00 : f32
    %33 = vector.broadcast %cst_20 : f32 to vector<16x128xf32>
    %34 = arith.addf %33, %32 : vector<16x128xf32>
    %35 = arith.divf %33, %34 : vector<16x128xf32>
    %36 = vector.extract_strided_slice %17 {offsets = [0, 256], sizes = [16, 128], strides = [1, 1]} : vector<16x384xf32> to vector<16x128xf32>
    %37 = vector.extract_strided_slice %19 {offsets = [0, 256], sizes = [16, 128], strides = [1, 1]} : vector<16x384xf32> to vector<16x128xf32>
    %38 = vector.broadcast %12 : vector<1x128xf32> to vector<16x128xf32>
    %39 = arith.addf %37, %38 : vector<16x128xf32>
    %40 = arith.mulf %27, %39 : vector<16x128xf32>
    %41 = arith.addf %36, %40 : vector<16x128xf32>
    %42 = math.tanh %41 : vector<16x128xf32>
    %cst_21 = arith.constant 1.000000e+00 : f32
    %43 = vector.broadcast %cst_21 : f32 to vector<16x128xf32>
    %44 = arith.subf %43, %35 : vector<16x128xf32>
    %45 = arith.mulf %44, %42 : vector<16x128xf32>
    %46 = arith.mulf %35, %13 : vector<16x128xf32>
    %47 = arith.addf %45, %46 : vector<16x128xf32>
    %48 = vector.broadcast %c0_i32 : i32 to vector<16x1xi32>
    %49 = arith.cmpi slt, %48, %0 : vector<16x1xi32>
    %cst_22 = arith.constant 0.000000e+00 : f32
    %50 = vector.shape_cast %49 : vector<16x1xi1> to vector<16x1xi1>
    %51 = vector.broadcast %50 : vector<16x1xi1> to vector<16x128xi1>
    %52 = vector.broadcast %cst_22 : f32 to vector<16x128xf32>
    %53 = arith.select %51, %47, %52 : vector<16x128xi1>, vector<16x128xf32>
    %54 = arith.index_cast %c0_i32 : i32 to index
    %c0_23 = arith.constant 0 : index
    %c0_24 = arith.constant 0 : index
    %55 = vector.load %arg13[%54, %c0_23, %c0_24] : memref<8x16x128xf32, #tpu.memory_space<vmem>>, vector<1x16x128xf32>
    %56 = vector.shape_cast %55 : vector<1x16x128xf32> to vector<16x128xf32>
    %57 = vector.shape_cast %53 : vector<16x128xf32> to vector<1x16x128xf32>
    tpu.vector_store %arg13[%54, %c0_23, %c0_24], %57 {strides = array<i32>} : memref<8x16x128xf32, #tpu.memory_space<vmem>>, vector<1x16x128xf32>,
    %58 = vector.shape_cast %49 : vector<16x1xi1> to vector<16x1xi1>
    %59 = vector.broadcast %58 : vector<16x1xi1> to vector<16x128xi1>
    %60 = arith.select %59, %47, %13 : vector<16x128xi1>, vector<16x128xf32>
    %c1_i32 = arith.constant 1 : i32
    %61 = arith.index_cast %c1_i32 : i32 to index
    %c0_25 = arith.constant 0 : index
    %c0_26 = arith.constant 0 : index
    %62 = vector.load %arg14[%61, %c0_25, %c0_26] : memref<8x16x384xbf16, #tpu.memory_space<vmem>>, vector<1x16x384xbf16>
    %63 = vector.shape_cast %62 : vector<1x16x384xbf16> to vector<16x384xbf16>
    %64 = arith.extf %63 : vector<16x384xbf16> to vector<16x384xf32>
    %65 = arith.truncf %60 : vector<16x128xf32> to vector<16x128xbf16>
    %cst_27 = arith.constant dense<0.000000e+00> : vector<16x384xf32>
    %66 = tpu.matmul %65, %11, %cst_27 {dimension_numbers = #tpu.dot_dimension_numbers<[1], [0], [0], [1], [0, 0, 1, 1], [], []>} : vector<16x128xbf16>, vector<128x384xbf16>, vector<16x384xf32> -> vector<16x384xf32>
    %67 = vector.extract_strided_slice %64 {offsets = [0, 0], sizes = [16, 128], strides = [1, 1]} : vector<16x384xf32> to vector<16x128xf32>
    %68 = vector.extract_strided_slice %66 {offsets = [0, 0], sizes = [16, 128], strides = [1, 1]} : vector<16x384xf32> to vector<16x128xf32>
    %69 = arith.addf %67, %68 : vector<16x128xf32>
    %70 = arith.negf %69 : vector<16x128xf32>
    %71 = math.exp %70 : vector<16x128xf32>
    %cst_28 = arith.constant 1.000000e+00 : f32
    %72 = vector.broadcast %cst_28 : f32 to vector<16x128xf32>
    %73 = arith.addf %72, %71 : vector<16x128xf32>
    %74 = arith.divf %72, %73 : vector<16x128xf32>
    %75 = vector.extract_strided_slice %64 {offsets = [0, 128], sizes = [16, 128], strides = [1, 1]} : vector<16x384xf32> to vector<16x128xf32>
    %76 = vector.extract_strided_slice %66 {offsets = [0, 128], sizes = [16, 128], strides = [1, 1]} : vector<16x384xf32> to vector<16x128xf32>
    %77 = arith.addf %75, %76 : vector<16x128xf32>
    %78 = arith.negf %77 : vector<16x128xf32>
    %79 = math.exp %78 : vector<16x128xf32>
    %cst_29 = arith.constant 1.000000e+00 : f32
    %80 = vector.broadcast %cst_29 : f32 to vector<16x128xf32>
    %81 = arith.addf %80, %79 : vector<16x128xf32>
    %82 = arith.divf %80, %81 : vector<16x128xf32>
    %83 = vector.extract_strided_slice %64 {offsets = [0, 256], sizes = [16, 128], strides = [1, 1]} : vector<16x384xf32> to vector<16x128xf32>
    %84 = vector.extract_strided_slice %66 {offsets = [0, 256], sizes = [16, 128], strides = [1, 1]} : vector<16x384xf32> to vector<16x128xf32>
    %85 = vector.broadcast %12 : vector<1x128xf32> to vector<16x128xf32>
    %86 = arith.addf %84, %85 : vector<16x128xf32>
    %87 = arith.mulf %74, %86 : vector<16x128xf32>
    %88 = arith.addf %83, %87 : vector<16x128xf32>
    %89 = math.tanh %88 : vector<16x128xf32>
    %cst_30 = arith.constant 1.000000e+00 : f32
    %90 = vector.broadcast %cst_30 : f32 to vector<16x128xf32>
    %91 = arith.subf %90, %82 : vector<16x128xf32>
    %92 = arith.mulf %91, %89 : vector<16x128xf32>
    %93 = arith.mulf %82, %60 : vector<16x128xf32>
    %94 = arith.addf %92, %93 : vector<16x128xf32>
    %95 = vector.broadcast %c1_i32 : i32 to vector<16x1xi32>
    %96 = arith.cmpi slt, %95, %0 : vector<16x1xi32>
    %cst_31 = arith.constant 0.000000e+00 : f32
    %97 = vector.shape_cast %96 : vector<16x1xi1> to vector<16x1xi1>
    %98 = vector.broadcast %97 : vector<16x1xi1> to vector<16x128xi1>
    %99 = vector.broadcast %cst_31 : f32 to vector<16x128xf32>
    %100 = arith.select %98, %94, %99 : vector<16x128xi1>, vector<16x128xf32>
    %101 = arith.index_cast %c1_i32 : i32 to index
    %c0_32 = arith.constant 0 : index
    %c0_33 = arith.constant 0 : index
    %102 = vector.load %arg13[%101, %c0_32, %c0_33] : memref<8x16x128xf32, #tpu.memory_space<vmem>>, vector<1x16x128xf32>
    %103 = vector.shape_cast %102 : vector<1x16x128xf32> to vector<16x128xf32>
    %104 = vector.shape_cast %100 : vector<16x128xf32> to vector<1x16x128xf32>
    tpu.vector_store %arg13[%101, %c0_32, %c0_33], %104 {strides = array<i32>} : memref<8x16x128xf32, #tpu.memory_space<vmem>>, vector<1x16x128xf32>,
    %105 = vector.shape_cast %96 : vector<16x1xi1> to vector<16x1xi1>
    %106 = vector.broadcast %105 : vector<16x1xi1> to vector<16x128xi1>
    %107 = arith.select %106, %94, %60 : vector<16x128xi1>, vector<16x128xf32>
    %c2_i32 = arith.constant 2 : i32
    %108 = arith.index_cast %c2_i32 : i32 to index
    %c0_34 = arith.constant 0 : index
    %c0_35 = arith.constant 0 : index
    %109 = vector.load %arg14[%108, %c0_34, %c0_35] : memref<8x16x384xbf16, #tpu.memory_space<vmem>>, vector<1x16x384xbf16>
    %110 = vector.shape_cast %109 : vector<1x16x384xbf16> to vector<16x384xbf16>
    %111 = arith.extf %110 : vector<16x384xbf16> to vector<16x384xf32>
    %112 = arith.truncf %107 : vector<16x128xf32> to vector<16x128xbf16>
    %cst_36 = arith.constant dense<0.000000e+00> : vector<16x384xf32>
    %113 = tpu.matmul %112, %11, %cst_36 {dimension_numbers = #tpu.dot_dimension_numbers<[1], [0], [0], [1], [0, 0, 1, 1], [], []>} : vector<16x128xbf16>, vector<128x384xbf16>, vector<16x384xf32> -> vector<16x384xf32>
    %114 = vector.extract_strided_slice %111 {offsets = [0, 0], sizes = [16, 128], strides = [1, 1]} : vector<16x384xf32> to vector<16x128xf32>
    %115 = vector.extract_strided_slice %113 {offsets = [0, 0], sizes = [16, 128], strides = [1, 1]} : vector<16x384xf32> to vector<16x128xf32>
    %116 = arith.addf %114, %115 : vector<16x128xf32>
    %117 = arith.negf %116 : vector<16x128xf32>
    %118 = math.exp %117 : vector<16x128xf32>
    %cst_37 = arith.constant 1.000000e+00 : f32
    %119 = vector.broadcast %cst_37 : f32 to vector<16x128xf32>
    %120 = arith.addf %119, %118 : vector<16x128xf32>
    %121 = arith.divf %119, %120 : vector<16x128xf32>
    %122 = vector.extract_strided_slice %111 {offsets = [0, 128], sizes = [16, 128], strides = [1, 1]} : vector<16x384xf32> to vector<16x128xf32>
    %123 = vector.extract_strided_slice %113 {offsets = [0, 128], sizes = [16, 128], strides = [1, 1]} : vector<16x384xf32> to vector<16x128xf32>
    %124 = arith.addf %122, %123 : vector<16x128xf32>
    %125 = arith.negf %124 : vector<16x128xf32>
    %126 = math.exp %125 : vector<16x128xf32>
    %cst_38 = arith.constant 1.000000e+00 : f32
    %127 = vector.broadcast %cst_38 : f32 to vector<16x128xf32>
    %128 = arith.addf %127, %126 : vector<16x128xf32>
    %129 = arith.divf %127, %128 : vector<16x128xf32>
    %130 = vector.extract_strided_slice %111 {offsets = [0, 256], sizes = [16, 128], strides = [1, 1]} : vector<16x384xf32> to vector<16x128xf32>
    %131 = vector.extract_strided_slice %113 {offsets = [0, 256], sizes = [16, 128], strides = [1, 1]} : vector<16x384xf32> to vector<16x128xf32>
    %132 = vector.broadcast %12 : vector<1x128xf32> to vector<16x128xf32>
    %133 = arith.addf %131, %132 : vector<16x128xf32>
    %134 = arith.mulf %121, %133 : vector<16x128xf32>
    %135 = arith.addf %130, %134 : vector<16x128xf32>
    %136 = math.tanh %135 : vector<16x128xf32>
    %cst_39 = arith.constant 1.000000e+00 : f32
    %137 = vector.broadcast %cst_39 : f32 to vector<16x128xf32>
    %138 = arith.subf %137, %129 : vector<16x128xf32>
    %139 = arith.mulf %138, %136 : vector<16x128xf32>
    %140 = arith.mulf %129, %107 : vector<16x128xf32>
    %141 = arith.addf %139, %140 : vector<16x128xf32>
    %142 = vector.broadcast %c2_i32 : i32 to vector<16x1xi32>
    %143 = arith.cmpi slt, %142, %0 : vector<16x1xi32>
    %cst_40 = arith.constant 0.000000e+00 : f32
    %144 = vector.shape_cast %143 : vector<16x1xi1> to vector<16x1xi1>
    %145 = vector.broadcast %144 : vector<16x1xi1> to vector<16x128xi1>
    %146 = vector.broadcast %cst_40 : f32 to vector<16x128xf32>
    %147 = arith.select %145, %141, %146 : vector<16x128xi1>, vector<16x128xf32>
    %148 = arith.index_cast %c2_i32 : i32 to index
    %c0_41 = arith.constant 0 : index
    %c0_42 = arith.constant 0 : index
    %149 = vector.load %arg13[%148, %c0_41, %c0_42] : memref<8x16x128xf32, #tpu.memory_space<vmem>>, vector<1x16x128xf32>
    %150 = vector.shape_cast %149 : vector<1x16x128xf32> to vector<16x128xf32>
    %151 = vector.shape_cast %147 : vector<16x128xf32> to vector<1x16x128xf32>
    tpu.vector_store %arg13[%148, %c0_41, %c0_42], %151 {strides = array<i32>} : memref<8x16x128xf32, #tpu.memory_space<vmem>>, vector<1x16x128xf32>,
    %152 = vector.shape_cast %143 : vector<16x1xi1> to vector<16x1xi1>
    %153 = vector.broadcast %152 : vector<16x1xi1> to vector<16x128xi1>
    %154 = arith.select %153, %141, %107 : vector<16x128xi1>, vector<16x128xf32>
    %c3_i32 = arith.constant 3 : i32
    %155 = arith.index_cast %c3_i32 : i32 to index
    %c0_43 = arith.constant 0 : index
    %c0_44 = arith.constant 0 : index
    %156 = vector.load %arg14[%155, %c0_43, %c0_44] : memref<8x16x384xbf16, #tpu.memory_space<vmem>>, vector<1x16x384xbf16>
    %157 = vector.shape_cast %156 : vector<1x16x384xbf16> to vector<16x384xbf16>
    %158 = arith.extf %157 : vector<16x384xbf16> to vector<16x384xf32>
    %159 = arith.truncf %154 : vector<16x128xf32> to vector<16x128xbf16>
    %cst_45 = arith.constant dense<0.000000e+00> : vector<16x384xf32>
    %160 = tpu.matmul %159, %11, %cst_45 {dimension_numbers = #tpu.dot_dimension_numbers<[1], [0], [0], [1], [0, 0, 1, 1], [], []>} : vector<16x128xbf16>, vector<128x384xbf16>, vector<16x384xf32> -> vector<16x384xf32>
    %161 = vector.extract_strided_slice %158 {offsets = [0, 0], sizes = [16, 128], strides = [1, 1]} : vector<16x384xf32> to vector<16x128xf32>
    %162 = vector.extract_strided_slice %160 {offsets = [0, 0], sizes = [16, 128], strides = [1, 1]} : vector<16x384xf32> to vector<16x128xf32>
    %163 = arith.addf %161, %162 : vector<16x128xf32>
    %164 = arith.negf %163 : vector<16x128xf32>
    %165 = math.exp %164 : vector<16x128xf32>
    %cst_46 = arith.constant 1.000000e+00 : f32
    %166 = vector.broadcast %cst_46 : f32 to vector<16x128xf32>
    %167 = arith.addf %166, %165 : vector<16x128xf32>
    %168 = arith.divf %166, %167 : vector<16x128xf32>
    %169 = vector.extract_strided_slice %158 {offsets = [0, 128], sizes = [16, 128], strides = [1, 1]} : vector<16x384xf32> to vector<16x128xf32>
    %170 = vector.extract_strided_slice %160 {offsets = [0, 128], sizes = [16, 128], strides = [1, 1]} : vector<16x384xf32> to vector<16x128xf32>
    %171 = arith.addf %169, %170 : vector<16x128xf32>
    %172 = arith.negf %171 : vector<16x128xf32>
    %173 = math.exp %172 : vector<16x128xf32>
    %cst_47 = arith.constant 1.000000e+00 : f32
    %174 = vector.broadcast %cst_47 : f32 to vector<16x128xf32>
    %175 = arith.addf %174, %173 : vector<16x128xf32>
    %176 = arith.divf %174, %175 : vector<16x128xf32>
    %177 = vector.extract_strided_slice %158 {offsets = [0, 256], sizes = [16, 128], strides = [1, 1]} : vector<16x384xf32> to vector<16x128xf32>
    %178 = vector.extract_strided_slice %160 {offsets = [0, 256], sizes = [16, 128], strides = [1, 1]} : vector<16x384xf32> to vector<16x128xf32>
    %179 = vector.broadcast %12 : vector<1x128xf32> to vector<16x128xf32>
    %180 = arith.addf %178, %179 : vector<16x128xf32>
    %181 = arith.mulf %168, %180 : vector<16x128xf32>
    %182 = arith.addf %177, %181 : vector<16x128xf32>
    %183 = math.tanh %182 : vector<16x128xf32>
    %cst_48 = arith.constant 1.000000e+00 : f32
    %184 = vector.broadcast %cst_48 : f32 to vector<16x128xf32>
    %185 = arith.subf %184, %176 : vector<16x128xf32>
    %186 = arith.mulf %185, %183 : vector<16x128xf32>
    %187 = arith.mulf %176, %154 : vector<16x128xf32>
    %188 = arith.addf %186, %187 : vector<16x128xf32>
    %189 = vector.broadcast %c3_i32 : i32 to vector<16x1xi32>
    %190 = arith.cmpi slt, %189, %0 : vector<16x1xi32>
    %cst_49 = arith.constant 0.000000e+00 : f32
    %191 = vector.shape_cast %190 : vector<16x1xi1> to vector<16x1xi1>
    %192 = vector.broadcast %191 : vector<16x1xi1> to vector<16x128xi1>
    %193 = vector.broadcast %cst_49 : f32 to vector<16x128xf32>
    %194 = arith.select %192, %188, %193 : vector<16x128xi1>, vector<16x128xf32>
    %195 = arith.index_cast %c3_i32 : i32 to index
    %c0_50 = arith.constant 0 : index
    %c0_51 = arith.constant 0 : index
    %196 = vector.load %arg13[%195, %c0_50, %c0_51] : memref<8x16x128xf32, #tpu.memory_space<vmem>>, vector<1x16x128xf32>
    %197 = vector.shape_cast %196 : vector<1x16x128xf32> to vector<16x128xf32>
    %198 = vector.shape_cast %194 : vector<16x128xf32> to vector<1x16x128xf32>
    tpu.vector_store %arg13[%195, %c0_50, %c0_51], %198 {strides = array<i32>} : memref<8x16x128xf32, #tpu.memory_space<vmem>>, vector<1x16x128xf32>,
    %199 = vector.shape_cast %190 : vector<16x1xi1> to vector<16x1xi1>
    %200 = vector.broadcast %199 : vector<16x1xi1> to vector<16x128xi1>
    %201 = arith.select %200, %188, %154 : vector<16x128xi1>, vector<16x128xf32>
    %c4_i32 = arith.constant 4 : i32
    %202 = arith.index_cast %c4_i32 : i32 to index
    %c0_52 = arith.constant 0 : index
    %c0_53 = arith.constant 0 : index
    %203 = vector.load %arg14[%202, %c0_52, %c0_53] : memref<8x16x384xbf16, #tpu.memory_space<vmem>>, vector<1x16x384xbf16>
    %204 = vector.shape_cast %203 : vector<1x16x384xbf16> to vector<16x384xbf16>
    %205 = arith.extf %204 : vector<16x384xbf16> to vector<16x384xf32>
    %206 = arith.truncf %201 : vector<16x128xf32> to vector<16x128xbf16>
    %cst_54 = arith.constant dense<0.000000e+00> : vector<16x384xf32>
    %207 = tpu.matmul %206, %11, %cst_54 {dimension_numbers = #tpu.dot_dimension_numbers<[1], [0], [0], [1], [0, 0, 1, 1], [], []>} : vector<16x128xbf16>, vector<128x384xbf16>, vector<16x384xf32> -> vector<16x384xf32>
    %208 = vector.extract_strided_slice %205 {offsets = [0, 0], sizes = [16, 128], strides = [1, 1]} : vector<16x384xf32> to vector<16x128xf32>
    %209 = vector.extract_strided_slice %207 {offsets = [0, 0], sizes = [16, 128], strides = [1, 1]} : vector<16x384xf32> to vector<16x128xf32>
    %210 = arith.addf %208, %209 : vector<16x128xf32>
    %211 = arith.negf %210 : vector<16x128xf32>
    %212 = math.exp %211 : vector<16x128xf32>
    %cst_55 = arith.constant 1.000000e+00 : f32
    %213 = vector.broadcast %cst_55 : f32 to vector<16x128xf32>
    %214 = arith.addf %213, %212 : vector<16x128xf32>
    %215 = arith.divf %213, %214 : vector<16x128xf32>
    %216 = vector.extract_strided_slice %205 {offsets = [0, 128], sizes = [16, 128], strides = [1, 1]} : vector<16x384xf32> to vector<16x128xf32>
    %217 = vector.extract_strided_slice %207 {offsets = [0, 128], sizes = [16, 128], strides = [1, 1]} : vector<16x384xf32> to vector<16x128xf32>
    %218 = arith.addf %216, %217 : vector<16x128xf32>
    %219 = arith.negf %218 : vector<16x128xf32>
    %220 = math.exp %219 : vector<16x128xf32>
    %cst_56 = arith.constant 1.000000e+00 : f32
    %221 = vector.broadcast %cst_56 : f32 to vector<16x128xf32>
    %222 = arith.addf %221, %220 : vector<16x128xf32>
    %223 = arith.divf %221, %222 : vector<16x128xf32>
    %224 = vector.extract_strided_slice %205 {offsets = [0, 256], sizes = [16, 128], strides = [1, 1]} : vector<16x384xf32> to vector<16x128xf32>
    %225 = vector.extract_strided_slice %207 {offsets = [0, 256], sizes = [16, 128], strides = [1, 1]} : vector<16x384xf32> to vector<16x128xf32>
    %226 = vector.broadcast %12 : vector<1x128xf32> to vector<16x128xf32>
    %227 = arith.addf %225, %226 : vector<16x128xf32>
    %228 = arith.mulf %215, %227 : vector<16x128xf32>
    %229 = arith.addf %224, %228 : vector<16x128xf32>
    %230 = math.tanh %229 : vector<16x128xf32>
    %cst_57 = arith.constant 1.000000e+00 : f32
    %231 = vector.broadcast %cst_57 : f32 to vector<16x128xf32>
    %232 = arith.subf %231, %223 : vector<16x128xf32>
    %233 = arith.mulf %232, %230 : vector<16x128xf32>
    %234 = arith.mulf %223, %201 : vector<16x128xf32>
    %235 = arith.addf %233, %234 : vector<16x128xf32>
    %236 = vector.broadcast %c4_i32 : i32 to vector<16x1xi32>
    %237 = arith.cmpi slt, %236, %0 : vector<16x1xi32>
    %cst_58 = arith.constant 0.000000e+00 : f32
    %238 = vector.shape_cast %237 : vector<16x1xi1> to vector<16x1xi1>
    %239 = vector.broadcast %238 : vector<16x1xi1> to vector<16x128xi1>
    %240 = vector.broadcast %cst_58 : f32 to vector<16x128xf32>
    %241 = arith.select %239, %235, %240 : vector<16x128xi1>, vector<16x128xf32>
    %242 = arith.index_cast %c4_i32 : i32 to index
    %c0_59 = arith.constant 0 : index
    %c0_60 = arith.constant 0 : index
    %243 = vector.load %arg13[%242, %c0_59, %c0_60] : memref<8x16x128xf32, #tpu.memory_space<vmem>>, vector<1x16x128xf32>
    %244 = vector.shape_cast %243 : vector<1x16x128xf32> to vector<16x128xf32>
    %245 = vector.shape_cast %241 : vector<16x128xf32> to vector<1x16x128xf32>
    tpu.vector_store %arg13[%242, %c0_59, %c0_60], %245 {strides = array<i32>} : memref<8x16x128xf32, #tpu.memory_space<vmem>>, vector<1x16x128xf32>,
    %246 = vector.shape_cast %237 : vector<16x1xi1> to vector<16x1xi1>
    %247 = vector.broadcast %246 : vector<16x1xi1> to vector<16x128xi1>
    %248 = arith.select %247, %235, %201 : vector<16x128xi1>, vector<16x128xf32>
    %c5_i32 = arith.constant 5 : i32
    %249 = arith.index_cast %c5_i32 : i32 to index
    %c0_61 = arith.constant 0 : index
    %c0_62 = arith.constant 0 : index
    %250 = vector.load %arg14[%249, %c0_61, %c0_62] : memref<8x16x384xbf16, #tpu.memory_space<vmem>>, vector<1x16x384xbf16>
    %251 = vector.shape_cast %250 : vector<1x16x384xbf16> to vector<16x384xbf16>
    %252 = arith.extf %251 : vector<16x384xbf16> to vector<16x384xf32>
    %253 = arith.truncf %248 : vector<16x128xf32> to vector<16x128xbf16>
    %cst_63 = arith.constant dense<0.000000e+00> : vector<16x384xf32>
    %254 = tpu.matmul %253, %11, %cst_63 {dimension_numbers = #tpu.dot_dimension_numbers<[1], [0], [0], [1], [0, 0, 1, 1], [], []>} : vector<16x128xbf16>, vector<128x384xbf16>, vector<16x384xf32> -> vector<16x384xf32>
    %255 = vector.extract_strided_slice %252 {offsets = [0, 0], sizes = [16, 128], strides = [1, 1]} : vector<16x384xf32> to vector<16x128xf32>
    %256 = vector.extract_strided_slice %254 {offsets = [0, 0], sizes = [16, 128], strides = [1, 1]} : vector<16x384xf32> to vector<16x128xf32>
    %257 = arith.addf %255, %256 : vector<16x128xf32>
    %258 = arith.negf %257 : vector<16x128xf32>
    %259 = math.exp %258 : vector<16x128xf32>
    %cst_64 = arith.constant 1.000000e+00 : f32
    %260 = vector.broadcast %cst_64 : f32 to vector<16x128xf32>
    %261 = arith.addf %260, %259 : vector<16x128xf32>
    %262 = arith.divf %260, %261 : vector<16x128xf32>
    %263 = vector.extract_strided_slice %252 {offsets = [0, 128], sizes = [16, 128], strides = [1, 1]} : vector<16x384xf32> to vector<16x128xf32>
    %264 = vector.extract_strided_slice %254 {offsets = [0, 128], sizes = [16, 128], strides = [1, 1]} : vector<16x384xf32> to vector<16x128xf32>
    %265 = arith.addf %263, %264 : vector<16x128xf32>
    %266 = arith.negf %265 : vector<16x128xf32>
    %267 = math.exp %266 : vector<16x128xf32>
    %cst_65 = arith.constant 1.000000e+00 : f32
    %268 = vector.broadcast %cst_65 : f32 to vector<16x128xf32>
    %269 = arith.addf %268, %267 : vector<16x128xf32>
    %270 = arith.divf %268, %269 : vector<16x128xf32>
    %271 = vector.extract_strided_slice %252 {offsets = [0, 256], sizes = [16, 128], strides = [1, 1]} : vector<16x384xf32> to vector<16x128xf32>
    %272 = vector.extract_strided_slice %254 {offsets = [0, 256], sizes = [16, 128], strides = [1, 1]} : vector<16x384xf32> to vector<16x128xf32>
    %273 = vector.broadcast %12 : vector<1x128xf32> to vector<16x128xf32>
    %274 = arith.addf %272, %273 : vector<16x128xf32>
    %275 = arith.mulf %262, %274 : vector<16x128xf32>
    %276 = arith.addf %271, %275 : vector<16x128xf32>
    %277 = math.tanh %276 : vector<16x128xf32>
    %cst_66 = arith.constant 1.000000e+00 : f32
    %278 = vector.broadcast %cst_66 : f32 to vector<16x128xf32>
    %279 = arith.subf %278, %270 : vector<16x128xf32>
    %280 = arith.mulf %279, %277 : vector<16x128xf32>
    %281 = arith.mulf %270, %248 : vector<16x128xf32>
    %282 = arith.addf %280, %281 : vector<16x128xf32>
    %283 = vector.broadcast %c5_i32 : i32 to vector<16x1xi32>
    %284 = arith.cmpi slt, %283, %0 : vector<16x1xi32>
    %cst_67 = arith.constant 0.000000e+00 : f32
    %285 = vector.shape_cast %284 : vector<16x1xi1> to vector<16x1xi1>
    %286 = vector.broadcast %285 : vector<16x1xi1> to vector<16x128xi1>
    %287 = vector.broadcast %cst_67 : f32 to vector<16x128xf32>
    %288 = arith.select %286, %282, %287 : vector<16x128xi1>, vector<16x128xf32>
    %289 = arith.index_cast %c5_i32 : i32 to index
    %c0_68 = arith.constant 0 : index
    %c0_69 = arith.constant 0 : index
    %290 = vector.load %arg13[%289, %c0_68, %c0_69] : memref<8x16x128xf32, #tpu.memory_space<vmem>>, vector<1x16x128xf32>
    %291 = vector.shape_cast %290 : vector<1x16x128xf32> to vector<16x128xf32>
    %292 = vector.shape_cast %288 : vector<16x128xf32> to vector<1x16x128xf32>
    tpu.vector_store %arg13[%289, %c0_68, %c0_69], %292 {strides = array<i32>} : memref<8x16x128xf32, #tpu.memory_space<vmem>>, vector<1x16x128xf32>,
    %293 = vector.shape_cast %284 : vector<16x1xi1> to vector<16x1xi1>
    %294 = vector.broadcast %293 : vector<16x1xi1> to vector<16x128xi1>
    %295 = arith.select %294, %282, %248 : vector<16x128xi1>, vector<16x128xf32>
    %c6_i32 = arith.constant 6 : i32
    %296 = arith.index_cast %c6_i32 : i32 to index
    %c0_70 = arith.constant 0 : index
    %c0_71 = arith.constant 0 : index
    %297 = vector.load %arg14[%296, %c0_70, %c0_71] : memref<8x16x384xbf16, #tpu.memory_space<vmem>>, vector<1x16x384xbf16>
    %298 = vector.shape_cast %297 : vector<1x16x384xbf16> to vector<16x384xbf16>
    %299 = arith.extf %298 : vector<16x384xbf16> to vector<16x384xf32>
    %300 = arith.truncf %295 : vector<16x128xf32> to vector<16x128xbf16>
    %cst_72 = arith.constant dense<0.000000e+00> : vector<16x384xf32>
    %301 = tpu.matmul %300, %11, %cst_72 {dimension_numbers = #tpu.dot_dimension_numbers<[1], [0], [0], [1], [0, 0, 1, 1], [], []>} : vector<16x128xbf16>, vector<128x384xbf16>, vector<16x384xf32> -> vector<16x384xf32>
    %302 = vector.extract_strided_slice %299 {offsets = [0, 0], sizes = [16, 128], strides = [1, 1]} : vector<16x384xf32> to vector<16x128xf32>
    %303 = vector.extract_strided_slice %301 {offsets = [0, 0], sizes = [16, 128], strides = [1, 1]} : vector<16x384xf32> to vector<16x128xf32>
    %304 = arith.addf %302, %303 : vector<16x128xf32>
    %305 = arith.negf %304 : vector<16x128xf32>
    %306 = math.exp %305 : vector<16x128xf32>
    %cst_73 = arith.constant 1.000000e+00 : f32
    %307 = vector.broadcast %cst_73 : f32 to vector<16x128xf32>
    %308 = arith.addf %307, %306 : vector<16x128xf32>
    %309 = arith.divf %307, %308 : vector<16x128xf32>
    %310 = vector.extract_strided_slice %299 {offsets = [0, 128], sizes = [16, 128], strides = [1, 1]} : vector<16x384xf32> to vector<16x128xf32>
    %311 = vector.extract_strided_slice %301 {offsets = [0, 128], sizes = [16, 128], strides = [1, 1]} : vector<16x384xf32> to vector<16x128xf32>
    %312 = arith.addf %310, %311 : vector<16x128xf32>
    %313 = arith.negf %312 : vector<16x128xf32>
    %314 = math.exp %313 : vector<16x128xf32>
    %cst_74 = arith.constant 1.000000e+00 : f32
    %315 = vector.broadcast %cst_74 : f32 to vector<16x128xf32>
    %316 = arith.addf %315, %314 : vector<16x128xf32>
    %317 = arith.divf %315, %316 : vector<16x128xf32>
    %318 = vector.extract_strided_slice %299 {offsets = [0, 256], sizes = [16, 128], strides = [1, 1]} : vector<16x384xf32> to vector<16x128xf32>
    %319 = vector.extract_strided_slice %301 {offsets = [0, 256], sizes = [16, 128], strides = [1, 1]} : vector<16x384xf32> to vector<16x128xf32>
    %320 = vector.broadcast %12 : vector<1x128xf32> to vector<16x128xf32>
    %321 = arith.addf %319, %320 : vector<16x128xf32>
    %322 = arith.mulf %309, %321 : vector<16x128xf32>
    %323 = arith.addf %318, %322 : vector<16x128xf32>
    %324 = math.tanh %323 : vector<16x128xf32>
    %cst_75 = arith.constant 1.000000e+00 : f32
    %325 = vector.broadcast %cst_75 : f32 to vector<16x128xf32>
    %326 = arith.subf %325, %317 : vector<16x128xf32>
    %327 = arith.mulf %326, %324 : vector<16x128xf32>
    %328 = arith.mulf %317, %295 : vector<16x128xf32>
    %329 = arith.addf %327, %328 : vector<16x128xf32>
    %330 = vector.broadcast %c6_i32 : i32 to vector<16x1xi32>
    %331 = arith.cmpi slt, %330, %0 : vector<16x1xi32>
    %cst_76 = arith.constant 0.000000e+00 : f32
    %332 = vector.shape_cast %331 : vector<16x1xi1> to vector<16x1xi1>
    %333 = vector.broadcast %332 : vector<16x1xi1> to vector<16x128xi1>
    %334 = vector.broadcast %cst_76 : f32 to vector<16x128xf32>
    %335 = arith.select %333, %329, %334 : vector<16x128xi1>, vector<16x128xf32>
    %336 = arith.index_cast %c6_i32 : i32 to index
    %c0_77 = arith.constant 0 : index
    %c0_78 = arith.constant 0 : index
    %337 = vector.load %arg13[%336, %c0_77, %c0_78] : memref<8x16x128xf32, #tpu.memory_space<vmem>>, vector<1x16x128xf32>
    %338 = vector.shape_cast %337 : vector<1x16x128xf32> to vector<16x128xf32>
    %339 = vector.shape_cast %335 : vector<16x128xf32> to vector<1x16x128xf32>
    tpu.vector_store %arg13[%336, %c0_77, %c0_78], %339 {strides = array<i32>} : memref<8x16x128xf32, #tpu.memory_space<vmem>>, vector<1x16x128xf32>,
    %340 = vector.shape_cast %331 : vector<16x1xi1> to vector<16x1xi1>
    %341 = vector.broadcast %340 : vector<16x1xi1> to vector<16x128xi1>
    %342 = arith.select %341, %329, %295 : vector<16x128xi1>, vector<16x128xf32>
    %c7_i32 = arith.constant 7 : i32
    %343 = arith.index_cast %c7_i32 : i32 to index
    %c0_79 = arith.constant 0 : index
    %c0_80 = arith.constant 0 : index
    %344 = vector.load %arg14[%343, %c0_79, %c0_80] : memref<8x16x384xbf16, #tpu.memory_space<vmem>>, vector<1x16x384xbf16>
    %345 = vector.shape_cast %344 : vector<1x16x384xbf16> to vector<16x384xbf16>
    %346 = arith.extf %345 : vector<16x384xbf16> to vector<16x384xf32>
    %347 = arith.truncf %342 : vector<16x128xf32> to vector<16x128xbf16>
    %cst_81 = arith.constant dense<0.000000e+00> : vector<16x384xf32>
    %348 = tpu.matmul %347, %11, %cst_81 {dimension_numbers = #tpu.dot_dimension_numbers<[1], [0], [0], [1], [0, 0, 1, 1], [], []>} : vector<16x128xbf16>, vector<128x384xbf16>, vector<16x384xf32> -> vector<16x384xf32>
    %349 = vector.extract_strided_slice %346 {offsets = [0, 0], sizes = [16, 128], strides = [1, 1]} : vector<16x384xf32> to vector<16x128xf32>
    %350 = vector.extract_strided_slice %348 {offsets = [0, 0], sizes = [16, 128], strides = [1, 1]} : vector<16x384xf32> to vector<16x128xf32>
    %351 = arith.addf %349, %350 : vector<16x128xf32>
    %352 = arith.negf %351 : vector<16x128xf32>
    %353 = math.exp %352 : vector<16x128xf32>
    %cst_82 = arith.constant 1.000000e+00 : f32
    %354 = vector.broadcast %cst_82 : f32 to vector<16x128xf32>
    %355 = arith.addf %354, %353 : vector<16x128xf32>
    %356 = arith.divf %354, %355 : vector<16x128xf32>
    %357 = vector.extract_strided_slice %346 {offsets = [0, 128], sizes = [16, 128], strides = [1, 1]} : vector<16x384xf32> to vector<16x128xf32>
    %358 = vector.extract_strided_slice %348 {offsets = [0, 128], sizes = [16, 128], strides = [1, 1]} : vector<16x384xf32> to vector<16x128xf32>
    %359 = arith.addf %357, %358 : vector<16x128xf32>
    %360 = arith.negf %359 : vector<16x128xf32>
    %361 = math.exp %360 : vector<16x128xf32>
    %cst_83 = arith.constant 1.000000e+00 : f32
    %362 = vector.broadcast %cst_83 : f32 to vector<16x128xf32>
    %363 = arith.addf %362, %361 : vector<16x128xf32>
    %364 = arith.divf %362, %363 : vector<16x128xf32>
    %365 = vector.extract_strided_slice %346 {offsets = [0, 256], sizes = [16, 128], strides = [1, 1]} : vector<16x384xf32> to vector<16x128xf32>
    %366 = vector.extract_strided_slice %348 {offsets = [0, 256], sizes = [16, 128], strides = [1, 1]} : vector<16x384xf32> to vector<16x128xf32>
    %367 = vector.broadcast %12 : vector<1x128xf32> to vector<16x128xf32>
    %368 = arith.addf %366, %367 : vector<16x128xf32>
    %369 = arith.mulf %356, %368 : vector<16x128xf32>
    %370 = arith.addf %365, %369 : vector<16x128xf32>
    %371 = math.tanh %370 : vector<16x128xf32>
    %cst_84 = arith.constant 1.000000e+00 : f32
    %372 = vector.broadcast %cst_84 : f32 to vector<16x128xf32>
    %373 = arith.subf %372, %364 : vector<16x128xf32>
    %374 = arith.mulf %373, %371 : vector<16x128xf32>
    %375 = arith.mulf %364, %342 : vector<16x128xf32>
    %376 = arith.addf %374, %375 : vector<16x128xf32>
    %377 = vector.broadcast %c7_i32 : i32 to vector<16x1xi32>
    %378 = arith.cmpi slt, %377, %0 : vector<16x1xi32>
    %cst_85 = arith.constant 0.000000e+00 : f32
    %379 = vector.shape_cast %378 : vector<16x1xi1> to vector<16x1xi1>
    %380 = vector.broadcast %379 : vector<16x1xi1> to vector<16x128xi1>
    %381 = vector.broadcast %cst_85 : f32 to vector<16x128xf32>
    %382 = arith.select %380, %376, %381 : vector<16x128xi1>, vector<16x128xf32>
    %383 = arith.index_cast %c7_i32 : i32 to index
    %c0_86 = arith.constant 0 : index
    %c0_87 = arith.constant 0 : index
    %384 = vector.load %arg13[%383, %c0_86, %c0_87] : memref<8x16x128xf32, #tpu.memory_space<vmem>>, vector<1x16x128xf32>
    %385 = vector.shape_cast %384 : vector<1x16x128xf32> to vector<16x128xf32>
    %386 = vector.shape_cast %382 : vector<16x128xf32> to vector<1x16x128xf32>
    tpu.vector_store %arg13[%383, %c0_86, %c0_87], %386 {strides = array<i32>} : memref<8x16x128xf32, #tpu.memory_space<vmem>>, vector<1x16x128xf32>,
    %387 = vector.shape_cast %378 : vector<16x1xi1> to vector<16x1xi1>
    %388 = vector.broadcast %387 : vector<16x1xi1> to vector<16x128xi1>
    %389 = arith.select %388, %376, %342 : vector<16x128xi1>, vector<16x128xf32>
    %c8_i32 = arith.constant 8 : i32
    %c0_88 = arith.constant 0 : index
    %c0_89 = arith.constant 0 : index
    %c0_90 = arith.constant 0 : index
    %390 = vector.load %arg13[%c0_88, %c0_89, %c0_90] : memref<8x16x128xf32, #tpu.memory_space<vmem>>, vector<8x16x128xf32>
    %c0_91 = arith.constant 0 : index
    %c0_92 = arith.constant 0 : index
    %391 = vector.load %arg3[%c0_91, %c0_92] : memref<16x128xf32, #tpu.memory_space<vmem>>, vector<16x128xf32>
    %392 = vector.shape_cast %391 : vector<16x128xf32> to vector<1x16x128xf32>
    %393 = vector.broadcast %392 : vector<1x16x128xf32> to vector<8x16x128xf32>
    %394 = arith.mulf %390, %393 : vector<8x16x128xf32>
    %cst_93 = arith.constant dense<0.000000e+00> : vector<8x16xf32>
    %395 = vector.multi_reduction <add>, %394, %cst_93 [2] : vector<8x16x128xf32> to vector<8x16xf32>
    %396 = vector.shape_cast %395 : vector<8x16xf32> to vector<8x16x1xf32>
    %cst_94 = arith.constant dense<0xFF800000> : vector<16x1xf32>
    %397 = vector.multi_reduction <maximumf>, %396, %cst_94 [0] : vector<8x16x1xf32> to vector<16x1xf32>
    %398 = vector.shape_cast %397 : vector<16x1xf32> to vector<1x16x1xf32>
    %399 = vector.broadcast %398 : vector<1x16x1xf32> to vector<8x16x1xf32>
    %400 = arith.subf %396, %399 : vector<8x16x1xf32>
    %401 = math.exp %400 : vector<8x16x1xf32>
    %cst_95 = arith.constant dense<0.000000e+00> : vector<16x1xf32>
    %402 = vector.multi_reduction <add>, %401, %cst_95 [0] : vector<8x16x1xf32> to vector<16x1xf32>
    %403 = vector.shape_cast %402 : vector<16x1xf32> to vector<1x16x1xf32>
    %404 = tpu.reciprocal %403 {approx = true} : vector<1x16x1xf32> -> vector<1x16x1xf32>
    %405 = vector.broadcast %404 : vector<1x16x1xf32> to vector<8x16x1xf32>
    %406 = arith.mulf %401, %405 : vector<8x16x1xf32>
    %407 = vector.shape_cast %390 : vector<8x16x128xf32> to vector<128x128xf32>
    %408 = arith.truncf %407 : vector<128x128xf32> to vector<128x128xbf16>
    %c0_96 = arith.constant 0 : index
    %c0_97 = arith.constant 0 : index
    %409 = vector.load %arg8[%c0_96, %c0_97] : memref<128x384xbf16, #tpu.memory_space<vmem>>, vector<128x384xbf16>
    %cst_98 = arith.constant dense<0.000000e+00> : vector<128x384xf32>
    %410 = tpu.matmul %408, %409, %cst_98 {dimension_numbers = #tpu.dot_dimension_numbers<[1], [0], [0], [1], [0, 0, 1, 1], [], []>} : vector<128x128xbf16>, vector<128x384xbf16>, vector<128x384xf32> -> vector<128x384xf32>
    %c0_99 = arith.constant 0 : index
    %c0_100 = arith.constant 0 : index
    %411 = vector.load %arg10[%c0_99, %c0_100] : memref<1x384xf32, #tpu.memory_space<vmem>>, vector<1x384xf32>
    %412 = vector.broadcast %411 : vector<1x384xf32> to vector<128x384xf32>
    %413 = arith.addf %410, %412 : vector<128x384xf32>
    %414 = vector.shape_cast %413 : vector<128x384xf32> to vector<8x16x384xf32>
    %415 = arith.truncf %414 : vector<8x16x384xf32> to vector<8x16x384xbf16>
    %c0_101 = arith.constant 0 : index
    %c0_102 = arith.constant 0 : index
    %c0_103 = arith.constant 0 : index
    %416 = vector.load %arg14[%c0_101, %c0_102, %c0_103] : memref<8x16x384xbf16, #tpu.memory_space<vmem>>, vector<8x16x384xbf16>
    tpu.vector_store %arg14[%c0_101, %c0_102, %c0_103], %415 {strides = array<i32>} : memref<8x16x384xbf16, #tpu.memory_space<vmem>>, vector<8x16x384xbf16>,
    %c0_104 = arith.constant 0 : index
    %c0_105 = arith.constant 0 : index
    %c0_106 = arith.constant 0 : index
    %417 = vector.load %arg13[%c0_104, %c0_105, %c0_106] : memref<8x16x128xf32, #tpu.memory_space<vmem>>, vector<8x16x1xf32>
    tpu.vector_store %arg13[%c0_104, %c0_105, %c0_106], %406 {strides = array<i32>} : memref<8x16x128xf32, #tpu.memory_space<vmem>>, vector<8x16x1xf32>,
    %c0_107 = arith.constant 0 : index
    %c0_108 = arith.constant 0 : index
    %418 = vector.load %arg9[%c0_107, %c0_108] : memref<128x384xbf16, #tpu.memory_space<vmem>>, vector<128x384xbf16>
    %c0_109 = arith.constant 0 : index
    %c0_110 = arith.constant 0 : index
    %419 = vector.load %arg11[%c0_109, %c0_110] : memref<1x128xf32, #tpu.memory_space<vmem>>, vector<1x128xf32>
    %cst_111 = arith.constant 0.000000e+00 : f32
    %420 = vector.broadcast %cst_111 : f32 to vector<16x128xf32>
    %c0_i32_112 = arith.constant 0 : i32
    %421 = arith.index_cast %c0_i32_112 : i32 to index
    %c0_113 = arith.constant 0 : index
    %c0_114 = arith.constant 0 : index
    %422 = vector.load %arg14[%421, %c0_113, %c0_114] : memref<8x16x384xbf16, #tpu.memory_space<vmem>>, vector<1x16x384xbf16>
    %423 = vector.shape_cast %422 : vector<1x16x384xbf16> to vector<16x384xbf16>
    %424 = arith.extf %423 : vector<16x384xbf16> to vector<16x384xf32>
    %425 = arith.truncf %420 : vector<16x128xf32> to vector<16x128xbf16>
    %cst_115 = arith.constant dense<0.000000e+00> : vector<16x384xf32>
    %426 = tpu.matmul %425, %418, %cst_115 {dimension_numbers = #tpu.dot_dimension_numbers<[1], [0], [0], [1], [0, 0, 1, 1], [], []>} : vector<16x128xbf16>, vector<128x384xbf16>, vector<16x384xf32> -> vector<16x384xf32>
    %427 = vector.extract_strided_slice %424 {offsets = [0, 0], sizes = [16, 128], strides = [1, 1]} : vector<16x384xf32> to vector<16x128xf32>
    %428 = vector.extract_strided_slice %426 {offsets = [0, 0], sizes = [16, 128], strides = [1, 1]} : vector<16x384xf32> to vector<16x128xf32>
    %429 = arith.addf %427, %428 : vector<16x128xf32>
    %430 = arith.negf %429 : vector<16x128xf32>
    %431 = math.exp %430 : vector<16x128xf32>
    %cst_116 = arith.constant 1.000000e+00 : f32
    %432 = vector.broadcast %cst_116 : f32 to vector<16x128xf32>
    %433 = arith.addf %432, %431 : vector<16x128xf32>
    %434 = arith.divf %432, %433 : vector<16x128xf32>
    %435 = vector.extract_strided_slice %424 {offsets = [0, 128], sizes = [16, 128], strides = [1, 1]} : vector<16x384xf32> to vector<16x128xf32>
    %436 = vector.extract_strided_slice %426 {offsets = [0, 128], sizes = [16, 128], strides = [1, 1]} : vector<16x384xf32> to vector<16x128xf32>
    %437 = arith.addf %435, %436 : vector<16x128xf32>
    %438 = arith.negf %437 : vector<16x128xf32>
    %439 = math.exp %438 : vector<16x128xf32>
    %cst_117 = arith.constant 1.000000e+00 : f32
    %440 = vector.broadcast %cst_117 : f32 to vector<16x128xf32>
    %441 = arith.addf %440, %439 : vector<16x128xf32>
    %442 = arith.divf %440, %441 : vector<16x128xf32>
    %443 = vector.extract_strided_slice %424 {offsets = [0, 256], sizes = [16, 128], strides = [1, 1]} : vector<16x384xf32> to vector<16x128xf32>
    %444 = vector.extract_strided_slice %426 {offsets = [0, 256], sizes = [16, 128], strides = [1, 1]} : vector<16x384xf32> to vector<16x128xf32>
    %445 = vector.broadcast %419 : vector<1x128xf32> to vector<16x128xf32>
    %446 = arith.addf %444, %445 : vector<16x128xf32>
    %447 = arith.mulf %434, %446 : vector<16x128xf32>
    %448 = arith.addf %443, %447 : vector<16x128xf32>
    %449 = math.tanh %448 : vector<16x128xf32>
    %450 = arith.index_cast %c0_i32_112 : i32 to index
    %c0_118 = arith.constant 0 : index
    %c0_119 = arith.constant 0 : index
    %451 = vector.load %arg13[%450, %c0_118, %c0_119] : memref<8x16x128xf32, #tpu.memory_space<vmem>>, vector<1x16x1xf32>
    %452 = vector.shape_cast %451 : vector<1x16x1xf32> to vector<16x1xf32>
    %453 = vector.broadcast %452 : vector<16x1xf32> to vector<16x128xf32>
    %454 = arith.mulf %453, %442 : vector<16x128xf32>
    %cst_120 = arith.constant 1.000000e+00 : f32
    %455 = vector.broadcast %cst_120 : f32 to vector<16x128xf32>
    %456 = arith.subf %455, %454 : vector<16x128xf32>
    %457 = arith.mulf %456, %420 : vector<16x128xf32>
    %458 = arith.mulf %454, %449 : vector<16x128xf32>
    %459 = arith.addf %457, %458 : vector<16x128xf32>
    %460 = vector.broadcast %c0_i32_112 : i32 to vector<16x1xi32>
    %461 = arith.cmpi slt, %460, %0 : vector<16x1xi32>
    %462 = vector.shape_cast %461 : vector<16x1xi1> to vector<16x1xi1>
    %463 = vector.broadcast %462 : vector<16x1xi1> to vector<16x128xi1>
    %464 = arith.select %463, %459, %420 : vector<16x128xi1>, vector<16x128xf32>
    %c1_i32_121 = arith.constant 1 : i32
    %465 = arith.index_cast %c1_i32_121 : i32 to index
    %c0_122 = arith.constant 0 : index
    %c0_123 = arith.constant 0 : index
    %466 = vector.load %arg14[%465, %c0_122, %c0_123] : memref<8x16x384xbf16, #tpu.memory_space<vmem>>, vector<1x16x384xbf16>
    %467 = vector.shape_cast %466 : vector<1x16x384xbf16> to vector<16x384xbf16>
    %468 = arith.extf %467 : vector<16x384xbf16> to vector<16x384xf32>
    %469 = arith.truncf %464 : vector<16x128xf32> to vector<16x128xbf16>
    %cst_124 = arith.constant dense<0.000000e+00> : vector<16x384xf32>
    %470 = tpu.matmul %469, %418, %cst_124 {dimension_numbers = #tpu.dot_dimension_numbers<[1], [0], [0], [1], [0, 0, 1, 1], [], []>} : vector<16x128xbf16>, vector<128x384xbf16>, vector<16x384xf32> -> vector<16x384xf32>
    %471 = vector.extract_strided_slice %468 {offsets = [0, 0], sizes = [16, 128], strides = [1, 1]} : vector<16x384xf32> to vector<16x128xf32>
    %472 = vector.extract_strided_slice %470 {offsets = [0, 0], sizes = [16, 128], strides = [1, 1]} : vector<16x384xf32> to vector<16x128xf32>
    %473 = arith.addf %471, %472 : vector<16x128xf32>
    %474 = arith.negf %473 : vector<16x128xf32>
    %475 = math.exp %474 : vector<16x128xf32>
    %cst_125 = arith.constant 1.000000e+00 : f32
    %476 = vector.broadcast %cst_125 : f32 to vector<16x128xf32>
    %477 = arith.addf %476, %475 : vector<16x128xf32>
    %478 = arith.divf %476, %477 : vector<16x128xf32>
    %479 = vector.extract_strided_slice %468 {offsets = [0, 128], sizes = [16, 128], strides = [1, 1]} : vector<16x384xf32> to vector<16x128xf32>
    %480 = vector.extract_strided_slice %470 {offsets = [0, 128], sizes = [16, 128], strides = [1, 1]} : vector<16x384xf32> to vector<16x128xf32>
    %481 = arith.addf %479, %480 : vector<16x128xf32>
    %482 = arith.negf %481 : vector<16x128xf32>
    %483 = math.exp %482 : vector<16x128xf32>
    %cst_126 = arith.constant 1.000000e+00 : f32
    %484 = vector.broadcast %cst_126 : f32 to vector<16x128xf32>
    %485 = arith.addf %484, %483 : vector<16x128xf32>
    %486 = arith.divf %484, %485 : vector<16x128xf32>
    %487 = vector.extract_strided_slice %468 {offsets = [0, 256], sizes = [16, 128], strides = [1, 1]} : vector<16x384xf32> to vector<16x128xf32>
    %488 = vector.extract_strided_slice %470 {offsets = [0, 256], sizes = [16, 128], strides = [1, 1]} : vector<16x384xf32> to vector<16x128xf32>
    %489 = vector.broadcast %419 : vector<1x128xf32> to vector<16x128xf32>
    %490 = arith.addf %488, %489 : vector<16x128xf32>
    %491 = arith.mulf %478, %490 : vector<16x128xf32>
    %492 = arith.addf %487, %491 : vector<16x128xf32>
    %493 = math.tanh %492 : vector<16x128xf32>
    %494 = arith.index_cast %c1_i32_121 : i32 to index
    %c0_127 = arith.constant 0 : index
    %c0_128 = arith.constant 0 : index
    %495 = vector.load %arg13[%494, %c0_127, %c0_128] : memref<8x16x128xf32, #tpu.memory_space<vmem>>, vector<1x16x1xf32>
    %496 = vector.shape_cast %495 : vector<1x16x1xf32> to vector<16x1xf32>
    %497 = vector.broadcast %496 : vector<16x1xf32> to vector<16x128xf32>
    %498 = arith.mulf %497, %486 : vector<16x128xf32>
    %cst_129 = arith.constant 1.000000e+00 : f32
    %499 = vector.broadcast %cst_129 : f32 to vector<16x128xf32>
    %500 = arith.subf %499, %498 : vector<16x128xf32>
    %501 = arith.mulf %500, %464 : vector<16x128xf32>
    %502 = arith.mulf %498, %493 : vector<16x128xf32>
    %503 = arith.addf %501, %502 : vector<16x128xf32>
    %504 = vector.broadcast %c1_i32_121 : i32 to vector<16x1xi32>
    %505 = arith.cmpi slt, %504, %0 : vector<16x1xi32>
    %506 = vector.shape_cast %505 : vector<16x1xi1> to vector<16x1xi1>
    %507 = vector.broadcast %506 : vector<16x1xi1> to vector<16x128xi1>
    %508 = arith.select %507, %503, %464 : vector<16x128xi1>, vector<16x128xf32>
    %c2_i32_130 = arith.constant 2 : i32
    %509 = arith.index_cast %c2_i32_130 : i32 to index
    %c0_131 = arith.constant 0 : index
    %c0_132 = arith.constant 0 : index
    %510 = vector.load %arg14[%509, %c0_131, %c0_132] : memref<8x16x384xbf16, #tpu.memory_space<vmem>>, vector<1x16x384xbf16>
    %511 = vector.shape_cast %510 : vector<1x16x384xbf16> to vector<16x384xbf16>
    %512 = arith.extf %511 : vector<16x384xbf16> to vector<16x384xf32>
    %513 = arith.truncf %508 : vector<16x128xf32> to vector<16x128xbf16>
    %cst_133 = arith.constant dense<0.000000e+00> : vector<16x384xf32>
    %514 = tpu.matmul %513, %418, %cst_133 {dimension_numbers = #tpu.dot_dimension_numbers<[1], [0], [0], [1], [0, 0, 1, 1], [], []>} : vector<16x128xbf16>, vector<128x384xbf16>, vector<16x384xf32> -> vector<16x384xf32>
    %515 = vector.extract_strided_slice %512 {offsets = [0, 0], sizes = [16, 128], strides = [1, 1]} : vector<16x384xf32> to vector<16x128xf32>
    %516 = vector.extract_strided_slice %514 {offsets = [0, 0], sizes = [16, 128], strides = [1, 1]} : vector<16x384xf32> to vector<16x128xf32>
    %517 = arith.addf %515, %516 : vector<16x128xf32>
    %518 = arith.negf %517 : vector<16x128xf32>
    %519 = math.exp %518 : vector<16x128xf32>
    %cst_134 = arith.constant 1.000000e+00 : f32
    %520 = vector.broadcast %cst_134 : f32 to vector<16x128xf32>
    %521 = arith.addf %520, %519 : vector<16x128xf32>
    %522 = arith.divf %520, %521 : vector<16x128xf32>
    %523 = vector.extract_strided_slice %512 {offsets = [0, 128], sizes = [16, 128], strides = [1, 1]} : vector<16x384xf32> to vector<16x128xf32>
    %524 = vector.extract_strided_slice %514 {offsets = [0, 128], sizes = [16, 128], strides = [1, 1]} : vector<16x384xf32> to vector<16x128xf32>
    %525 = arith.addf %523, %524 : vector<16x128xf32>
    %526 = arith.negf %525 : vector<16x128xf32>
    %527 = math.exp %526 : vector<16x128xf32>
    %cst_135 = arith.constant 1.000000e+00 : f32
    %528 = vector.broadcast %cst_135 : f32 to vector<16x128xf32>
    %529 = arith.addf %528, %527 : vector<16x128xf32>
    %530 = arith.divf %528, %529 : vector<16x128xf32>
    %531 = vector.extract_strided_slice %512 {offsets = [0, 256], sizes = [16, 128], strides = [1, 1]} : vector<16x384xf32> to vector<16x128xf32>
    %532 = vector.extract_strided_slice %514 {offsets = [0, 256], sizes = [16, 128], strides = [1, 1]} : vector<16x384xf32> to vector<16x128xf32>
    %533 = vector.broadcast %419 : vector<1x128xf32> to vector<16x128xf32>
    %534 = arith.addf %532, %533 : vector<16x128xf32>
    %535 = arith.mulf %522, %534 : vector<16x128xf32>
    %536 = arith.addf %531, %535 : vector<16x128xf32>
    %537 = math.tanh %536 : vector<16x128xf32>
    %538 = arith.index_cast %c2_i32_130 : i32 to index
    %c0_136 = arith.constant 0 : index
    %c0_137 = arith.constant 0 : index
    %539 = vector.load %arg13[%538, %c0_136, %c0_137] : memref<8x16x128xf32, #tpu.memory_space<vmem>>, vector<1x16x1xf32>
    %540 = vector.shape_cast %539 : vector<1x16x1xf32> to vector<16x1xf32>
    %541 = vector.broadcast %540 : vector<16x1xf32> to vector<16x128xf32>
    %542 = arith.mulf %541, %530 : vector<16x128xf32>
    %cst_138 = arith.constant 1.000000e+00 : f32
    %543 = vector.broadcast %cst_138 : f32 to vector<16x128xf32>
    %544 = arith.subf %543, %542 : vector<16x128xf32>
    %545 = arith.mulf %544, %508 : vector<16x128xf32>
    %546 = arith.mulf %542, %537 : vector<16x128xf32>
    %547 = arith.addf %545, %546 : vector<16x128xf32>
    %548 = vector.broadcast %c2_i32_130 : i32 to vector<16x1xi32>
    %549 = arith.cmpi slt, %548, %0 : vector<16x1xi32>
    %550 = vector.shape_cast %549 : vector<16x1xi1> to vector<16x1xi1>
    %551 = vector.broadcast %550 : vector<16x1xi1> to vector<16x128xi1>
    %552 = arith.select %551, %547, %508 : vector<16x128xi1>, vector<16x128xf32>
    %c3_i32_139 = arith.constant 3 : i32
    %553 = arith.index_cast %c3_i32_139 : i32 to index
    %c0_140 = arith.constant 0 : index
    %c0_141 = arith.constant 0 : index
    %554 = vector.load %arg14[%553, %c0_140, %c0_141] : memref<8x16x384xbf16, #tpu.memory_space<vmem>>, vector<1x16x384xbf16>
    %555 = vector.shape_cast %554 : vector<1x16x384xbf16> to vector<16x384xbf16>
    %556 = arith.extf %555 : vector<16x384xbf16> to vector<16x384xf32>
    %557 = arith.truncf %552 : vector<16x128xf32> to vector<16x128xbf16>
    %cst_142 = arith.constant dense<0.000000e+00> : vector<16x384xf32>
    %558 = tpu.matmul %557, %418, %cst_142 {dimension_numbers = #tpu.dot_dimension_numbers<[1], [0], [0], [1], [0, 0, 1, 1], [], []>} : vector<16x128xbf16>, vector<128x384xbf16>, vector<16x384xf32> -> vector<16x384xf32>
    %559 = vector.extract_strided_slice %556 {offsets = [0, 0], sizes = [16, 128], strides = [1, 1]} : vector<16x384xf32> to vector<16x128xf32>
    %560 = vector.extract_strided_slice %558 {offsets = [0, 0], sizes = [16, 128], strides = [1, 1]} : vector<16x384xf32> to vector<16x128xf32>
    %561 = arith.addf %559, %560 : vector<16x128xf32>
    %562 = arith.negf %561 : vector<16x128xf32>
    %563 = math.exp %562 : vector<16x128xf32>
    %cst_143 = arith.constant 1.000000e+00 : f32
    %564 = vector.broadcast %cst_143 : f32 to vector<16x128xf32>
    %565 = arith.addf %564, %563 : vector<16x128xf32>
    %566 = arith.divf %564, %565 : vector<16x128xf32>
    %567 = vector.extract_strided_slice %556 {offsets = [0, 128], sizes = [16, 128], strides = [1, 1]} : vector<16x384xf32> to vector<16x128xf32>
    %568 = vector.extract_strided_slice %558 {offsets = [0, 128], sizes = [16, 128], strides = [1, 1]} : vector<16x384xf32> to vector<16x128xf32>
    %569 = arith.addf %567, %568 : vector<16x128xf32>
    %570 = arith.negf %569 : vector<16x128xf32>
    %571 = math.exp %570 : vector<16x128xf32>
    %cst_144 = arith.constant 1.000000e+00 : f32
    %572 = vector.broadcast %cst_144 : f32 to vector<16x128xf32>
    %573 = arith.addf %572, %571 : vector<16x128xf32>
    %574 = arith.divf %572, %573 : vector<16x128xf32>
    %575 = vector.extract_strided_slice %556 {offsets = [0, 256], sizes = [16, 128], strides = [1, 1]} : vector<16x384xf32> to vector<16x128xf32>
    %576 = vector.extract_strided_slice %558 {offsets = [0, 256], sizes = [16, 128], strides = [1, 1]} : vector<16x384xf32> to vector<16x128xf32>
    %577 = vector.broadcast %419 : vector<1x128xf32> to vector<16x128xf32>
    %578 = arith.addf %576, %577 : vector<16x128xf32>
    %579 = arith.mulf %566, %578 : vector<16x128xf32>
    %580 = arith.addf %575, %579 : vector<16x128xf32>
    %581 = math.tanh %580 : vector<16x128xf32>
    %582 = arith.index_cast %c3_i32_139 : i32 to index
    %c0_145 = arith.constant 0 : index
    %c0_146 = arith.constant 0 : index
    %583 = vector.load %arg13[%582, %c0_145, %c0_146] : memref<8x16x128xf32, #tpu.memory_space<vmem>>, vector<1x16x1xf32>
    %584 = vector.shape_cast %583 : vector<1x16x1xf32> to vector<16x1xf32>
    %585 = vector.broadcast %584 : vector<16x1xf32> to vector<16x128xf32>
    %586 = arith.mulf %585, %574 : vector<16x128xf32>
    %cst_147 = arith.constant 1.000000e+00 : f32
    %587 = vector.broadcast %cst_147 : f32 to vector<16x128xf32>
    %588 = arith.subf %587, %586 : vector<16x128xf32>
    %589 = arith.mulf %588, %552 : vector<16x128xf32>
    %590 = arith.mulf %586, %581 : vector<16x128xf32>
    %591 = arith.addf %589, %590 : vector<16x128xf32>
    %592 = vector.broadcast %c3_i32_139 : i32 to vector<16x1xi32>
    %593 = arith.cmpi slt, %592, %0 : vector<16x1xi32>
    %594 = vector.shape_cast %593 : vector<16x1xi1> to vector<16x1xi1>
    %595 = vector.broadcast %594 : vector<16x1xi1> to vector<16x128xi1>
    %596 = arith.select %595, %591, %552 : vector<16x128xi1>, vector<16x128xf32>
    %c4_i32_148 = arith.constant 4 : i32
    %597 = arith.index_cast %c4_i32_148 : i32 to index
    %c0_149 = arith.constant 0 : index
    %c0_150 = arith.constant 0 : index
    %598 = vector.load %arg14[%597, %c0_149, %c0_150] : memref<8x16x384xbf16, #tpu.memory_space<vmem>>, vector<1x16x384xbf16>
    %599 = vector.shape_cast %598 : vector<1x16x384xbf16> to vector<16x384xbf16>
    %600 = arith.extf %599 : vector<16x384xbf16> to vector<16x384xf32>
    %601 = arith.truncf %596 : vector<16x128xf32> to vector<16x128xbf16>
    %cst_151 = arith.constant dense<0.000000e+00> : vector<16x384xf32>
    %602 = tpu.matmul %601, %418, %cst_151 {dimension_numbers = #tpu.dot_dimension_numbers<[1], [0], [0], [1], [0, 0, 1, 1], [], []>} : vector<16x128xbf16>, vector<128x384xbf16>, vector<16x384xf32> -> vector<16x384xf32>
    %603 = vector.extract_strided_slice %600 {offsets = [0, 0], sizes = [16, 128], strides = [1, 1]} : vector<16x384xf32> to vector<16x128xf32>
    %604 = vector.extract_strided_slice %602 {offsets = [0, 0], sizes = [16, 128], strides = [1, 1]} : vector<16x384xf32> to vector<16x128xf32>
    %605 = arith.addf %603, %604 : vector<16x128xf32>
    %606 = arith.negf %605 : vector<16x128xf32>
    %607 = math.exp %606 : vector<16x128xf32>
    %cst_152 = arith.constant 1.000000e+00 : f32
    %608 = vector.broadcast %cst_152 : f32 to vector<16x128xf32>
    %609 = arith.addf %608, %607 : vector<16x128xf32>
    %610 = arith.divf %608, %609 : vector<16x128xf32>
    %611 = vector.extract_strided_slice %600 {offsets = [0, 128], sizes = [16, 128], strides = [1, 1]} : vector<16x384xf32> to vector<16x128xf32>
    %612 = vector.extract_strided_slice %602 {offsets = [0, 128], sizes = [16, 128], strides = [1, 1]} : vector<16x384xf32> to vector<16x128xf32>
    %613 = arith.addf %611, %612 : vector<16x128xf32>
    %614 = arith.negf %613 : vector<16x128xf32>
    %615 = math.exp %614 : vector<16x128xf32>
    %cst_153 = arith.constant 1.000000e+00 : f32
    %616 = vector.broadcast %cst_153 : f32 to vector<16x128xf32>
    %617 = arith.addf %616, %615 : vector<16x128xf32>
    %618 = arith.divf %616, %617 : vector<16x128xf32>
    %619 = vector.extract_strided_slice %600 {offsets = [0, 256], sizes = [16, 128], strides = [1, 1]} : vector<16x384xf32> to vector<16x128xf32>
    %620 = vector.extract_strided_slice %602 {offsets = [0, 256], sizes = [16, 128], strides = [1, 1]} : vector<16x384xf32> to vector<16x128xf32>
    %621 = vector.broadcast %419 : vector<1x128xf32> to vector<16x128xf32>
    %622 = arith.addf %620, %621 : vector<16x128xf32>
    %623 = arith.mulf %610, %622 : vector<16x128xf32>
    %624 = arith.addf %619, %623 : vector<16x128xf32>
    %625 = math.tanh %624 : vector<16x128xf32>
    %626 = arith.index_cast %c4_i32_148 : i32 to index
    %c0_154 = arith.constant 0 : index
    %c0_155 = arith.constant 0 : index
    %627 = vector.load %arg13[%626, %c0_154, %c0_155] : memref<8x16x128xf32, #tpu.memory_space<vmem>>, vector<1x16x1xf32>
    %628 = vector.shape_cast %627 : vector<1x16x1xf32> to vector<16x1xf32>
    %629 = vector.broadcast %628 : vector<16x1xf32> to vector<16x128xf32>
    %630 = arith.mulf %629, %618 : vector<16x128xf32>
    %cst_156 = arith.constant 1.000000e+00 : f32
    %631 = vector.broadcast %cst_156 : f32 to vector<16x128xf32>
    %632 = arith.subf %631, %630 : vector<16x128xf32>
    %633 = arith.mulf %632, %596 : vector<16x128xf32>
    %634 = arith.mulf %630, %625 : vector<16x128xf32>
    %635 = arith.addf %633, %634 : vector<16x128xf32>
    %636 = vector.broadcast %c4_i32_148 : i32 to vector<16x1xi32>
    %637 = arith.cmpi slt, %636, %0 : vector<16x1xi32>
    %638 = vector.shape_cast %637 : vector<16x1xi1> to vector<16x1xi1>
    %639 = vector.broadcast %638 : vector<16x1xi1> to vector<16x128xi1>
    %640 = arith.select %639, %635, %596 : vector<16x128xi1>, vector<16x128xf32>
    %c5_i32_157 = arith.constant 5 : i32
    %641 = arith.index_cast %c5_i32_157 : i32 to index
    %c0_158 = arith.constant 0 : index
    %c0_159 = arith.constant 0 : index
    %642 = vector.load %arg14[%641, %c0_158, %c0_159] : memref<8x16x384xbf16, #tpu.memory_space<vmem>>, vector<1x16x384xbf16>
    %643 = vector.shape_cast %642 : vector<1x16x384xbf16> to vector<16x384xbf16>
    %644 = arith.extf %643 : vector<16x384xbf16> to vector<16x384xf32>
    %645 = arith.truncf %640 : vector<16x128xf32> to vector<16x128xbf16>
    %cst_160 = arith.constant dense<0.000000e+00> : vector<16x384xf32>
    %646 = tpu.matmul %645, %418, %cst_160 {dimension_numbers = #tpu.dot_dimension_numbers<[1], [0], [0], [1], [0, 0, 1, 1], [], []>} : vector<16x128xbf16>, vector<128x384xbf16>, vector<16x384xf32> -> vector<16x384xf32>
    %647 = vector.extract_strided_slice %644 {offsets = [0, 0], sizes = [16, 128], strides = [1, 1]} : vector<16x384xf32> to vector<16x128xf32>
    %648 = vector.extract_strided_slice %646 {offsets = [0, 0], sizes = [16, 128], strides = [1, 1]} : vector<16x384xf32> to vector<16x128xf32>
    %649 = arith.addf %647, %648 : vector<16x128xf32>
    %650 = arith.negf %649 : vector<16x128xf32>
    %651 = math.exp %650 : vector<16x128xf32>
    %cst_161 = arith.constant 1.000000e+00 : f32
    %652 = vector.broadcast %cst_161 : f32 to vector<16x128xf32>
    %653 = arith.addf %652, %651 : vector<16x128xf32>
    %654 = arith.divf %652, %653 : vector<16x128xf32>
    %655 = vector.extract_strided_slice %644 {offsets = [0, 128], sizes = [16, 128], strides = [1, 1]} : vector<16x384xf32> to vector<16x128xf32>
    %656 = vector.extract_strided_slice %646 {offsets = [0, 128], sizes = [16, 128], strides = [1, 1]} : vector<16x384xf32> to vector<16x128xf32>
    %657 = arith.addf %655, %656 : vector<16x128xf32>
    %658 = arith.negf %657 : vector<16x128xf32>
    %659 = math.exp %658 : vector<16x128xf32>
    %cst_162 = arith.constant 1.000000e+00 : f32
    %660 = vector.broadcast %cst_162 : f32 to vector<16x128xf32>
    %661 = arith.addf %660, %659 : vector<16x128xf32>
    %662 = arith.divf %660, %661 : vector<16x128xf32>
    %663 = vector.extract_strided_slice %644 {offsets = [0, 256], sizes = [16, 128], strides = [1, 1]} : vector<16x384xf32> to vector<16x128xf32>
    %664 = vector.extract_strided_slice %646 {offsets = [0, 256], sizes = [16, 128], strides = [1, 1]} : vector<16x384xf32> to vector<16x128xf32>
    %665 = vector.broadcast %419 : vector<1x128xf32> to vector<16x128xf32>
    %666 = arith.addf %664, %665 : vector<16x128xf32>
    %667 = arith.mulf %654, %666 : vector<16x128xf32>
    %668 = arith.addf %663, %667 : vector<16x128xf32>
    %669 = math.tanh %668 : vector<16x128xf32>
    %670 = arith.index_cast %c5_i32_157 : i32 to index
    %c0_163 = arith.constant 0 : index
    %c0_164 = arith.constant 0 : index
    %671 = vector.load %arg13[%670, %c0_163, %c0_164] : memref<8x16x128xf32, #tpu.memory_space<vmem>>, vector<1x16x1xf32>
    %672 = vector.shape_cast %671 : vector<1x16x1xf32> to vector<16x1xf32>
    %673 = vector.broadcast %672 : vector<16x1xf32> to vector<16x128xf32>
    %674 = arith.mulf %673, %662 : vector<16x128xf32>
    %cst_165 = arith.constant 1.000000e+00 : f32
    %675 = vector.broadcast %cst_165 : f32 to vector<16x128xf32>
    %676 = arith.subf %675, %674 : vector<16x128xf32>
    %677 = arith.mulf %676, %640 : vector<16x128xf32>
    %678 = arith.mulf %674, %669 : vector<16x128xf32>
    %679 = arith.addf %677, %678 : vector<16x128xf32>
    %680 = vector.broadcast %c5_i32_157 : i32 to vector<16x1xi32>
    %681 = arith.cmpi slt, %680, %0 : vector<16x1xi32>
    %682 = vector.shape_cast %681 : vector<16x1xi1> to vector<16x1xi1>
    %683 = vector.broadcast %682 : vector<16x1xi1> to vector<16x128xi1>
    %684 = arith.select %683, %679, %640 : vector<16x128xi1>, vector<16x128xf32>
    %c6_i32_166 = arith.constant 6 : i32
    %685 = arith.index_cast %c6_i32_166 : i32 to index
    %c0_167 = arith.constant 0 : index
    %c0_168 = arith.constant 0 : index
    %686 = vector.load %arg14[%685, %c0_167, %c0_168] : memref<8x16x384xbf16, #tpu.memory_space<vmem>>, vector<1x16x384xbf16>
    %687 = vector.shape_cast %686 : vector<1x16x384xbf16> to vector<16x384xbf16>
    %688 = arith.extf %687 : vector<16x384xbf16> to vector<16x384xf32>
    %689 = arith.truncf %684 : vector<16x128xf32> to vector<16x128xbf16>
    %cst_169 = arith.constant dense<0.000000e+00> : vector<16x384xf32>
    %690 = tpu.matmul %689, %418, %cst_169 {dimension_numbers = #tpu.dot_dimension_numbers<[1], [0], [0], [1], [0, 0, 1, 1], [], []>} : vector<16x128xbf16>, vector<128x384xbf16>, vector<16x384xf32> -> vector<16x384xf32>
    %691 = vector.extract_strided_slice %688 {offsets = [0, 0], sizes = [16, 128], strides = [1, 1]} : vector<16x384xf32> to vector<16x128xf32>
    %692 = vector.extract_strided_slice %690 {offsets = [0, 0], sizes = [16, 128], strides = [1, 1]} : vector<16x384xf32> to vector<16x128xf32>
    %693 = arith.addf %691, %692 : vector<16x128xf32>
    %694 = arith.negf %693 : vector<16x128xf32>
    %695 = math.exp %694 : vector<16x128xf32>
    %cst_170 = arith.constant 1.000000e+00 : f32
    %696 = vector.broadcast %cst_170 : f32 to vector<16x128xf32>
    %697 = arith.addf %696, %695 : vector<16x128xf32>
    %698 = arith.divf %696, %697 : vector<16x128xf32>
    %699 = vector.extract_strided_slice %688 {offsets = [0, 128], sizes = [16, 128], strides = [1, 1]} : vector<16x384xf32> to vector<16x128xf32>
    %700 = vector.extract_strided_slice %690 {offsets = [0, 128], sizes = [16, 128], strides = [1, 1]} : vector<16x384xf32> to vector<16x128xf32>
    %701 = arith.addf %699, %700 : vector<16x128xf32>
    %702 = arith.negf %701 : vector<16x128xf32>
    %703 = math.exp %702 : vector<16x128xf32>
    %cst_171 = arith.constant 1.000000e+00 : f32
    %704 = vector.broadcast %cst_171 : f32 to vector<16x128xf32>
    %705 = arith.addf %704, %703 : vector<16x128xf32>
    %706 = arith.divf %704, %705 : vector<16x128xf32>
    %707 = vector.extract_strided_slice %688 {offsets = [0, 256], sizes = [16, 128], strides = [1, 1]} : vector<16x384xf32> to vector<16x128xf32>
    %708 = vector.extract_strided_slice %690 {offsets = [0, 256], sizes = [16, 128], strides = [1, 1]} : vector<16x384xf32> to vector<16x128xf32>
    %709 = vector.broadcast %419 : vector<1x128xf32> to vector<16x128xf32>
    %710 = arith.addf %708, %709 : vector<16x128xf32>
    %711 = arith.mulf %698, %710 : vector<16x128xf32>
    %712 = arith.addf %707, %711 : vector<16x128xf32>
    %713 = math.tanh %712 : vector<16x128xf32>
    %714 = arith.index_cast %c6_i32_166 : i32 to index
    %c0_172 = arith.constant 0 : index
    %c0_173 = arith.constant 0 : index
    %715 = vector.load %arg13[%714, %c0_172, %c0_173] : memref<8x16x128xf32, #tpu.memory_space<vmem>>, vector<1x16x1xf32>
    %716 = vector.shape_cast %715 : vector<1x16x1xf32> to vector<16x1xf32>
    %717 = vector.broadcast %716 : vector<16x1xf32> to vector<16x128xf32>
    %718 = arith.mulf %717, %706 : vector<16x128xf32>
    %cst_174 = arith.constant 1.000000e+00 : f32
    %719 = vector.broadcast %cst_174 : f32 to vector<16x128xf32>
    %720 = arith.subf %719, %718 : vector<16x128xf32>
    %721 = arith.mulf %720, %684 : vector<16x128xf32>
    %722 = arith.mulf %718, %713 : vector<16x128xf32>
    %723 = arith.addf %721, %722 : vector<16x128xf32>
    %724 = vector.broadcast %c6_i32_166 : i32 to vector<16x1xi32>
    %725 = arith.cmpi slt, %724, %0 : vector<16x1xi32>
    %726 = vector.shape_cast %725 : vector<16x1xi1> to vector<16x1xi1>
    %727 = vector.broadcast %726 : vector<16x1xi1> to vector<16x128xi1>
    %728 = arith.select %727, %723, %684 : vector<16x128xi1>, vector<16x128xf32>
    %c7_i32_175 = arith.constant 7 : i32
    %729 = arith.index_cast %c7_i32_175 : i32 to index
    %c0_176 = arith.constant 0 : index
    %c0_177 = arith.constant 0 : index
    %730 = vector.load %arg14[%729, %c0_176, %c0_177] : memref<8x16x384xbf16, #tpu.memory_space<vmem>>, vector<1x16x384xbf16>
    %731 = vector.shape_cast %730 : vector<1x16x384xbf16> to vector<16x384xbf16>
    %732 = arith.extf %731 : vector<16x384xbf16> to vector<16x384xf32>
    %733 = arith.truncf %728 : vector<16x128xf32> to vector<16x128xbf16>
    %cst_178 = arith.constant dense<0.000000e+00> : vector<16x384xf32>
    %734 = tpu.matmul %733, %418, %cst_178 {dimension_numbers = #tpu.dot_dimension_numbers<[1], [0], [0], [1], [0, 0, 1, 1], [], []>} : vector<16x128xbf16>, vector<128x384xbf16>, vector<16x384xf32> -> vector<16x384xf32>
    %735 = vector.extract_strided_slice %732 {offsets = [0, 0], sizes = [16, 128], strides = [1, 1]} : vector<16x384xf32> to vector<16x128xf32>
    %736 = vector.extract_strided_slice %734 {offsets = [0, 0], sizes = [16, 128], strides = [1, 1]} : vector<16x384xf32> to vector<16x128xf32>
    %737 = arith.addf %735, %736 : vector<16x128xf32>
    %738 = arith.negf %737 : vector<16x128xf32>
    %739 = math.exp %738 : vector<16x128xf32>
    %cst_179 = arith.constant 1.000000e+00 : f32
    %740 = vector.broadcast %cst_179 : f32 to vector<16x128xf32>
    %741 = arith.addf %740, %739 : vector<16x128xf32>
    %742 = arith.divf %740, %741 : vector<16x128xf32>
    %743 = vector.extract_strided_slice %732 {offsets = [0, 128], sizes = [16, 128], strides = [1, 1]} : vector<16x384xf32> to vector<16x128xf32>
    %744 = vector.extract_strided_slice %734 {offsets = [0, 128], sizes = [16, 128], strides = [1, 1]} : vector<16x384xf32> to vector<16x128xf32>
    %745 = arith.addf %743, %744 : vector<16x128xf32>
    %746 = arith.negf %745 : vector<16x128xf32>
    %747 = math.exp %746 : vector<16x128xf32>
    %cst_180 = arith.constant 1.000000e+00 : f32
    %748 = vector.broadcast %cst_180 : f32 to vector<16x128xf32>
    %749 = arith.addf %748, %747 : vector<16x128xf32>
    %750 = arith.divf %748, %749 : vector<16x128xf32>
    %751 = vector.extract_strided_slice %732 {offsets = [0, 256], sizes = [16, 128], strides = [1, 1]} : vector<16x384xf32> to vector<16x128xf32>
    %752 = vector.extract_strided_slice %734 {offsets = [0, 256], sizes = [16, 128], strides = [1, 1]} : vector<16x384xf32> to vector<16x128xf32>
    %753 = vector.broadcast %419 : vector<1x128xf32> to vector<16x128xf32>
    %754 = arith.addf %752, %753 : vector<16x128xf32>
    %755 = arith.mulf %742, %754 : vector<16x128xf32>
    %756 = arith.addf %751, %755 : vector<16x128xf32>
    %757 = math.tanh %756 : vector<16x128xf32>
    %758 = arith.index_cast %c7_i32_175 : i32 to index
    %c0_181 = arith.constant 0 : index
    %c0_182 = arith.constant 0 : index
    %759 = vector.load %arg13[%758, %c0_181, %c0_182] : memref<8x16x128xf32, #tpu.memory_space<vmem>>, vector<1x16x1xf32>
    %760 = vector.shape_cast %759 : vector<1x16x1xf32> to vector<16x1xf32>
    %761 = vector.broadcast %760 : vector<16x1xf32> to vector<16x128xf32>
    %762 = arith.mulf %761, %750 : vector<16x128xf32>
    %cst_183 = arith.constant 1.000000e+00 : f32
    %763 = vector.broadcast %cst_183 : f32 to vector<16x128xf32>
    %764 = arith.subf %763, %762 : vector<16x128xf32>
    %765 = arith.mulf %764, %728 : vector<16x128xf32>
    %766 = arith.mulf %762, %757 : vector<16x128xf32>
    %767 = arith.addf %765, %766 : vector<16x128xf32>
    %768 = vector.broadcast %c7_i32_175 : i32 to vector<16x1xi32>
    %769 = arith.cmpi slt, %768, %0 : vector<16x1xi32>
    %770 = vector.shape_cast %769 : vector<16x1xi1> to vector<16x1xi1>
    %771 = vector.broadcast %770 : vector<16x1xi1> to vector<16x128xi1>
    %772 = arith.select %771, %767, %728 : vector<16x128xi1>, vector<16x128xf32>
    %c8_i32_184 = arith.constant 8 : i32
    %c0_185 = arith.constant 0 : index
    %c0_186 = arith.constant 0 : index
    %773 = vector.load %arg12[%c0_185, %c0_186] : memref<16x128xf32, #tpu.memory_space<vmem>>, vector<16x128xf32>
    tpu.vector_store %arg12[%c0_185, %c0_186], %772 {strides = array<i32>} : memref<16x128xf32, #tpu.memory_space<vmem>>, vector<16x128xf32>,
    return
  }
  func.func @transform_0(%arg0: i32) -> (i32, i32) {
    %c0_i32 = arith.constant 0 : i32
    %c0_i32_0 = arith.constant 0 : i32
    return %arg0, %c0_i32 : i32, i32
  }
  func.func @transform_1(%arg0: i32) -> (i32, i32, i32) {
    %c0_i32 = arith.constant 0 : i32
    %c0_i32_0 = arith.constant 0 : i32
    %c0_i32_1 = arith.constant 0 : i32
    return %c0_i32, %arg0, %c0_i32_0 : i32, i32, i32
  }
  func.func @transform_2(%arg0: i32) -> (i32, i32) {
    %c0_i32 = arith.constant 0 : i32
    %c0_i32_0 = arith.constant 0 : i32
    return %arg0, %c0_i32 : i32, i32
  }
  func.func @transform_3(%arg0: i32) -> (i32, i32) {
    %c0_i32 = arith.constant 0 : i32
    %c0_i32_0 = arith.constant 0 : i32
    %c0_i32_1 = arith.constant 0 : i32
    return %c0_i32, %c0_i32_0 : i32, i32
  }
  func.func @transform_4(%arg0: i32) -> (i32, i32) {
    %c0_i32 = arith.constant 0 : i32
    %c0_i32_0 = arith.constant 0 : i32
    %c0_i32_1 = arith.constant 0 : i32
    return %c0_i32, %c0_i32_0 : i32, i32
  }
  func.func @transform_5(%arg0: i32) -> (i32, i32) {
    %c0_i32 = arith.constant 0 : i32
    %c0_i32_0 = arith.constant 0 : i32
    %c0_i32_1 = arith.constant 0 : i32
    return %c0_i32, %c0_i32_0 : i32, i32
  }
  func.func @transform_6(%arg0: i32) -> (i32, i32) {
    %c0_i32 = arith.constant 0 : i32
    %c0_i32_0 = arith.constant 0 : i32
    %c0_i32_1 = arith.constant 0 : i32
    return %c0_i32, %c0_i32_0 : i32, i32
  }
  func.func @transform_7(%arg0: i32) -> (i32, i32) {
    %c0_i32 = arith.constant 0 : i32
    %c0_i32_0 = arith.constant 0 : i32
    %c0_i32_1 = arith.constant 0 : i32
    return %c0_i32, %c0_i32_0 : i32, i32
  }
  func.func @transform_8(%arg0: i32) -> (i32, i32) {
    %c0_i32 = arith.constant 0 : i32
    %c0_i32_0 = arith.constant 0 : i32
    %c0_i32_1 = arith.constant 0 : i32
    return %c0_i32, %c0_i32_0 : i32, i32
  }
  func.func @transform_9(%arg0: i32) -> (i32, i32) {
    %c0_i32 = arith.constant 0 : i32
    %c0_i32_0 = arith.constant 0 : i32
    %c0_i32_1 = arith.constant 0 : i32
    return %c0_i32, %c0_i32_0 : i32, i32
  }
  func.func @transform_10(%arg0: i32) -> (i32, i32) {
    %c0_i32 = arith.constant 0 : i32
    %c0_i32_0 = arith.constant 0 : i32
    %c0_i32_1 = arith.constant 0 : i32
    return %c0_i32, %c0_i32_0 : i32, i32
  }
  func.func @transform_11(%arg0: i32) -> (i32, i32) {
    %c0_i32 = arith.constant 0 : i32
    %c0_i32_0 = arith.constant 0 : i32
    return %arg0, %c0_i32 : i32, i32
  }
}

</mosaic_0001>

<llo_original>
// kernel: tpu_custom_call.1
$region0: #{tpu_custom_call.1}
  #allocation0 [shape = 'u32[]', space=smem, size = 0x4, offset = 0x4, fixed_abs, tag = 'smem constant byte address 0x4 - core index']
  #allocation1 [shape = 'u32[144,128]{1,0:T(1,128)}', space=vmem, size = 0x12000, scoped, tag = 'internal scratch']
  #allocation2 [shape = 'f32[8,16,128]{2,1,0:T(8,128)}', space=vmem, size = 0x10000, scoped, tag = 'scratch operand']
  #allocation3 [shape = 'bf16[8,16,384]{2,1,0:T(16,128)(2,1)}', space=vmem, size = 0x18000, scoped, tag = 'scratch operand']
  %s0 = inlined_call_operand.vmem [shape: s32[16,1], index: 0, kind: input, shape index: {}]
  %s1 = inlined_call_operand.hbm [shape: bf16[8,16,16], index: 1, kind: input, shape index: {}]
  %s2 = inlined_call_operand.hbm [shape: f32[16,128], index: 2, kind: input, shape index: {}]
  %s3 = inlined_call_operand.vmem [shape: bf16[16,384], index: 3, kind: input, shape index: {}]
  %s4 = inlined_call_operand.hbm [shape: bf16[128,384], index: 4, kind: input, shape index: {}]
  %s5 = inlined_call_operand.vmem [shape: f32[1,384], index: 5, kind: input, shape index: {}]
  %s6 = inlined_call_operand.vmem [shape: f32[1,128], index: 6, kind: input, shape index: {}]
  %s7 = inlined_call_operand.hbm [shape: bf16[128,384], index: 7, kind: input, shape index: {}]
  %s8 = inlined_call_operand.hbm [shape: bf16[128,384], index: 8, kind: input, shape index: {}]
  %s9 = inlined_call_operand.vmem [shape: f32[1,384], index: 9, kind: input, shape index: {}]
  %s10 = inlined_call_operand.vmem [shape: f32[1,128], index: 10, kind: input, shape index: {}]
  %s11 = inlined_call_operand.hbm [shape: f32[16,128], index: 11, kind: output, shape index: {}]
  %s12 = sld [smem:[#allocation0]]
  $region74: #{tpu_custom_call.1} parent=0
    _
  %s14 = ssub.s32 1, %s12
  %s15 = scalar_select 0, %s14, %s12
  $region1: #{tpu_custom_call.1} parent=0
    #allocation4 [shape = 'u8[32768]{0}', space=vmem, size = 0x8000, scoped, tag = 'input window, operand 1, single buffered']
    #allocation5 [shape = 's32[1]{0}', space=sflag, size = 0x4, scoped, tag = 'scoped memory for tpu_custom_call.1']
    #allocation6 [shape = 's32[1]{0}', space=sflag, size = 0x4, scoped, tag = 'scoped memory for tpu_custom_call.1']
    #allocation7 [shape = 'u8[8192]{0}', space=vmem, size = 0x2000, scoped, tag = 'input window, operand 2, single buffered']
    #allocation8 [shape = 's32[1]{0}', space=sflag, size = 0x4, scoped, tag = 'scoped memory for tpu_custom_call.1']
    #allocation9 [shape = 'u8[98304]{0}', space=vmem, size = 0x18000, scoped, tag = 'input window, operand 4, single buffered']
    #allocation10 [shape = 'u8[98304]{0}', space=vmem, size = 0x18000, scoped, tag = 'input window, operand 7, single buffered']
    #allocation11 [shape = 's32[1]{0}', space=sflag, size = 0x4, scoped, tag = 'scoped memory for tpu_custom_call.1']
    #allocation12 [shape = 'u8[98304]{0}', space=vmem, size = 0x18000, scoped, tag = 'input window, operand 8, single buffered']
    #allocation13 [shape = 'u8[8192]{0}', space=vmem, size = 0x2000, scoped, tag = 'output window, operand 0, single buffered']
    %16 = vsyncpa [#allocation5], 0
    %17 = vsyncpa [#allocation8], 0
    %18 = vsyncpa [#allocation11], 0
    %19 = vsyncpa [#allocation6], 0
    // Predicated region
    $region2: #{tpu_custom_call.1} parent=1 // pred_check
      _
    $region3: #{tpu_custom_call.1} parent=1 // pred_check_branch
      %21 = sbr.rel (0) target = $region5
    $region4: #{tpu_custom_call.1} parent=1 // pred_region
      _
    $region5: #{tpu_custom_call.1} parent=1 // pred_fallthru
      _
    // Predicated region
    $region6: #{tpu_custom_call.1} parent=1 // pred_check
      _
    $region7: #{tpu_custom_call.1} parent=1 // pred_check_branch
      %23 = sbr.rel (0) target = $region9
    $region8: #{tpu_custom_call.1} parent=1 // pred_region
      %s25 = ssub.s32 1024, 1024
      %26 = vsyncadd [#allocation5], %s25
      %s27 = sshll.u32 [#allocation4], 4
      %s28 = int_to_ptr.vmem [resolvable:$true] %s27
      %33 = dma.hbm_to_vmem [thread:$0]  %s1, 1024, %s28, [#allocation5], 64, 64, 4
    $region9: #{tpu_custom_call.1} parent=1 // pred_fallthru
      _
    // Predicated region
    $region10: #{tpu_custom_call.1} parent=1 // pred_check
      _
    $region11: #{tpu_custom_call.1} parent=1 // pred_check_branch
      %35 = sbr.rel (0) target = $region13
    $region12: #{tpu_custom_call.1} parent=1 // pred_region
      %s37 = ssub.s32 256, 256
      %38 = vsyncadd [#allocation8], %s37
      %s39 = sshll.u32 [#allocation7], 4
      %s40 = int_to_ptr.vmem [resolvable:$true] %s39
      %45 = dma.hbm_to_vmem [thread:$0]  %s2, 256, %s40, [#allocation8], 128, 128, 8
    $region13: #{tpu_custom_call.1} parent=1 // pred_fallthru
      _
    // Predicated region
    $region14: #{tpu_custom_call.1} parent=1 // pred_check
      _
    $region15: #{tpu_custom_call.1} parent=1 // pred_check_branch
      %47 = sbr.rel (0) target = $region17
    $region16: #{tpu_custom_call.1} parent=1 // pred_region
      _
    $region17: #{tpu_custom_call.1} parent=1 // pred_fallthru
      _
    // Predicated region
    $region18: #{tpu_custom_call.1} parent=1 // pred_check
      _
    $region19: #{tpu_custom_call.1} parent=1 // pred_check_branch
      %49 = sbr.rel (0) target = $region21
    $region20: #{tpu_custom_call.1} parent=1 // pred_region
      %s51 = ssub.s32 3072, 3072
      %52 = vsyncadd [#allocation8], %s51
      %s53 = sshll.u32 [#allocation9], 4
      %s54 = int_to_ptr.vmem [resolvable:$true] %s53
      %59 = dma.hbm_to_vmem [thread:$0]  %s4, 3072, %s54, [#allocation8], 192, 192, 12
    $region21: #{tpu_custom_call.1} parent=1 // pred_fallthru
      _
    // Predicated region
    $region22: #{tpu_custom_call.1} parent=1 // pred_check
      _
    $region23: #{tpu_custom_call.1} parent=1 // pred_check_branch
      %61 = sbr.rel (0) target = $region25
    $region24: #{tpu_custom_call.1} parent=1 // pred_region
      _
    $region25: #{tpu_custom_call.1} parent=1 // pred_fallthru
      _
    // Predicated region
    $region26: #{tpu_custom_call.1} parent=1 // pred_check
      _
    $region27: #{tpu_custom_call.1} parent=1 // pred_check_branch
      %63 = sbr.rel (0) target = $region29
    $region28: #{tpu_custom_call.1} parent=1 // pred_region
      _
    $region29: #{tpu_custom_call.1} parent=1 // pred_fallthru
      _
    // Predicated region
    $region30: #{tpu_custom_call.1} parent=1 // pred_check
      _
    $region31: #{tpu_custom_call.1} parent=1 // pred_check_branch
      %65 = sbr.rel (0) target = $region33
    $region32: #{tpu_custom_call.1} parent=1 // pred_region
      %s67 = ssub.s32 3072, 3072
      %68 = vsyncadd [#allocation11], %s67
      %s69 = sshll.u32 [#allocation10], 4
      %s70 = int_to_ptr.vmem [resolvable:$true] %s69
      %75 = dma.hbm_to_vmem [thread:$0]  %s7, 3072, %s70, [#allocation11], 192, 192, 12
    $region33: #{tpu_custom_call.1} parent=1 // pred_fallthru
      _
    // Predicated region
    $region34: #{tpu_custom_call.1} parent=1 // pred_check
      _
    $region35: #{tpu_custom_call.1} parent=1 // pred_check_branch
      %77 = sbr.rel (0) target = $region37
    $region36: #{tpu_custom_call.1} parent=1 // pred_region
      %s79 = ssub.s32 3072, 3072
      %80 = vsyncadd [#allocation11], %s79
      %s81 = sshll.u32 [#allocation12], 4
      %s82 = int_to_ptr.vmem [resolvable:$true] %s81
      %87 = dma.hbm_to_vmem [thread:$0]  %s8, 3072, %s82, [#allocation11], 192, 192, 12
    $region37: #{tpu_custom_call.1} parent=1 // pred_fallthru
      _
    // Predicated region
    $region38: #{tpu_custom_call.1} parent=1 // pred_check
      _
    $region39: #{tpu_custom_call.1} parent=1 // pred_check_branch
      %89 = sbr.rel (0) target = $region41
    $region40: #{tpu_custom_call.1} parent=1 // pred_region
      _
    $region41: #{tpu_custom_call.1} parent=1 // pred_fallthru
      _
    // Predicated region
    $region42: #{tpu_custom_call.1} parent=1 // pred_check
      _
    $region43: #{tpu_custom_call.1} parent=1 // pred_check_branch
      %91 = sbr.rel (0) target = $region45
    $region44: #{tpu_custom_call.1} parent=1 // pred_region
      _
    $region45: #{tpu_custom_call.1} parent=1 // pred_fallthru
      _
    // Predicated region
    $region46: #{tpu_custom_call.1} parent=1 // pred_check
      _
    $region47: #{tpu_custom_call.1} parent=1 // pred_check_branch
      %93 = sbr.rel (0) target = $region49
    $region48: #{tpu_custom_call.1} parent=1 // pred_region
      %94 = dma.done [#allocation5], 1024
    $region49: #{tpu_custom_call.1} parent=1 // pred_fallthru
      _
    // Predicated region
    $region50: #{tpu_custom_call.1} parent=1 // pred_check
      _
    $region51: #{tpu_custom_call.1} parent=1 // pred_check_branch
      %96 = sbr.rel (0) target = $region53
    $region52: #{tpu_custom_call.1} parent=1 // pred_region
      %97 = dma.done [#allocation8], 256
    $region53: #{tpu_custom_call.1} parent=1 // pred_fallthru
      _
    // Predicated region
    $region54: #{tpu_custom_call.1} parent=1 // pred_check
      _
    $region55: #{tpu_custom_call.1} parent=1 // pred_check_branch
      %99 = sbr.rel (0) target = $region57
    $region56: #{tpu_custom_call.1} parent=1 // pred_region
      %100 = dma.done [#allocation8], 3072
    $region57: #{tpu_custom_call.1} parent=1 // pred_fallthru
      _
    // Predicated region
    $region58: #{tpu_custom_call.1} parent=1 // pred_check
      _
    $region59: #{tpu_custom_call.1} parent=1 // pred_check_branch
      %102 = sbr.rel (0) target = $region61
    $region60: #{tpu_custom_call.1} parent=1 // pred_region
      %103 = dma.done [#allocation11], 3072
    $region61: #{tpu_custom_call.1} parent=1 // pred_fallthru
      _
    // Predicated region
    $region62: #{tpu_custom_call.1} parent=1 // pred_check
      _
    $region63: #{tpu_custom_call.1} parent=1 // pred_check_branch
      %105 = sbr.rel (0) target = $region65
    $region64: #{tpu_custom_call.1} parent=1 // pred_region
      %106 = dma.done [#allocation11], 3072
    $region65: #{tpu_custom_call.1} parent=1 // pred_fallthru
      _
    %v108 = vld [vmem:[%s0] sm:$0xff]
    %v109 = vld [vmem:[%s0 + $0x8] sm:$0xff]
    %v110 = vld [vmem:[#allocation4] sm:$0xf]
    %v111 = vld [vmem:[#allocation4 + $0x4] sm:$0xf]
    %v112 = vld [vmem:[#allocation4 + $0x8] sm:$0xf]
    %v113 = vld [vmem:[#allocation4 + $0xc] sm:$0xf]
    %v114 = vld [vmem:[#allocation4 + $0x10] sm:$0xf]
    %v115 = vld [vmem:[#allocation4 + $0x14] sm:$0xf]
    %v116 = vld [vmem:[#allocation4 + $0x18] sm:$0xf]
    %v117 = vld [vmem:[#allocation4 + $0x1c] sm:$0xf]
    %v118 = vld [vmem:[#allocation4 + $0x20] sm:$0xf]
    %v119 = vld [vmem:[#allocation4 + $0x24] sm:$0xf]
    %v120 = vld [vmem:[#allocation4 + $0x28] sm:$0xf]
    %v121 = vld [vmem:[#allocation4 + $0x2c] sm:$0xf]
    %v122 = vld [vmem:[#allocation4 + $0x30] sm:$0xf]
    %v123 = vld [vmem:[#allocation4 + $0x34] sm:$0xf]
    %v124 = vld [vmem:[#allocation4 + $0x38] sm:$0xf]
    %v125 = vld [vmem:[#allocation4 + $0x3c] sm:$0xf]
    %v126 = vld [vmem:[%s3] sm:$0xff]
    %v127 = vld [vmem:[%s3 + $0x8] sm:$0xf]
    %v128 = vld [vmem:[%s3 + $0xc] sm:$0xff]
    %v129 = vld [vmem:[%s3 + $0x14] sm:$0xf]
    %v130 = vld [vmem:[%s5] sm:$0x7]
    %v132 = vlaneseq
    %v133 = vshrl.u32 %v132, 7
    %v134 = vsub.s32 0, %v133
    %v135 = vrot.slane %v130, %v134
    %v136 = vlaneseq
    %v137 = vshrl.u32 %v136, 7
    %v138 = vsub.s32 1, %v137
    %v139 = vrot.slane %v130, %v138
    %v140 = vlaneseq
    %v141 = vshrl.u32 %v140, 7
    %v142 = vsub.s32 2, %v141
    %v143 = vrot.slane %v130, %v142
    %v163 = vunpack.c.l.b16 %v110
    %v164 = vunpack.c.l.b16 %v111
    %v165 = vunpack.c.l.b16 %v112
    %v166 = vunpack.c.l.b16 %v113
    %v167 = vunpack.c.l.b16 %v114
    %v168 = vunpack.c.l.b16 %v115
    %v169 = vunpack.c.l.b16 %v116
    %v170 = vunpack.c.l.b16 %v117
    %v171 = vunpack.c.l.b16 %v118
    %v172 = vunpack.c.l.b16 %v119
    %v173 = vunpack.c.l.b16 %v120
    %v174 = vunpack.c.l.b16 %v121
    %v175 = vunpack.c.l.b16 %v122
    %v176 = vunpack.c.l.b16 %v123
    %v177 = vunpack.c.l.b16 %v124
    %v178 = vunpack.c.l.b16 %v125
    %v179 = vpack.c.b16 %v164, %v163
    %v180 = vpack.c.b16 %v166, %v165
    %v181 = vpack.c.b16 %v168, %v167
    %v182 = vpack.c.b16 %v170, %v169
    %v183 = vpack.c.b16 %v172, %v171
    %v184 = vpack.c.b16 %v174, %v173
    %v185 = vpack.c.b16 %v176, %v175
    %v186 = vpack.c.b16 %v178, %v177
    %v191 = vunpack.c.l.b16 %v126
    %v192 = vunpack.c.h.b16 %v126
    %v193 = vunpack.c.l.b16 %v127
    %v194 = vunpack.c.l.b16 %v128
    %v195 = vunpack.c.h.b16 %v128
    %v196 = vunpack.c.l.b16 %v129
    %v197 = vpack.c.b16 %v194, %v191
    %v198 = vpack.c.b16 %v195, %v192
    %v199 = vpack.c.b16 %v196, %v193
    %vm203 = vcmask 130048
    %v205 = vsel %vm203, %v179, 0
    %v208 = vsel %vm203, %v180, 0
    %v211 = vsel %vm203, %v181, 0
    %v214 = vsel %vm203, %v182, 0
    %v217 = vsel %vm203, %v183, 0
    %v220 = vsel %vm203, %v184, 0
    %v223 = vsel %vm203, %v185, 0
    %v226 = vsel %vm203, %v186, 0
    %228 = vmatprep.subr.bf16.mxu0 %v198
    %229 = vmatpush1.bf16.msra.mxu0 %v197
    %230 = vmatprep.subr.bf16.mxu0 0
    %231 = vmatpush1.bf16.msra.mxu0 0
    %232 = vmatprep.subr.bf16.mxu0 0
    %233 = vmatpush1.bf16.msra.mxu0 0
    %234 = vmatprep.subr.bf16.mxu0 0
    %235 = vmatpush1.bf16.msra.mxu0 0
    %236 = vmatprep.subr.bf16.mxu0 0
    %237 = vmatpush1.bf16.msra.mxu0 0
    %238 = vmatprep.subr.bf16.mxu0 0
    %239 = vmatpush1.bf16.msra.mxu0 0
    %240 = vmatprep.subr.bf16.mxu0 0
    %241 = vmatpush1.bf16.msra.mxu0 0
    %242 = vmatprep.subr.bf16.mxu0 0
    %243 = vmatpush1.bf16.msra.mxu0 0
    %244 = vmatprep.subr.bf16.mxu0 0
    %245 = vmatpush1.bf16.msra.mxu0 0
    %246 = vmatprep.subr.bf16.mxu0 0
    %247 = vmatpush1.bf16.msra.mxu0 0
    %248 = vmatprep.subr.bf16.mxu0 0
    %249 = vmatpush1.bf16.msra.mxu0 0
    %250 = vmatprep.subr.bf16.mxu0 0
    %251 = vmatpush1.bf16.msra.mxu0 0
    %252 = vmatprep.subr.bf16.mxu0 0
    %253 = vmatpush1.bf16.msra.mxu0 0
    %254 = vmatprep.subr.bf16.mxu0 0
    %255 = vmatpush1.bf16.msra.mxu0 0
    %256 = vmatprep.subr.bf16.mxu0 0
    %257 = vmatpush1.bf16.msra.mxu0 0
    %258 = vmatprep.subr.bf16.mxu0 0
    %259 = vmatpush1.bf16.msra.mxu0 0
    %260 = vmatprep.mubr.bf16.mxu0 0
    %261 = vmatmul.mubr.bf16.gmra.mrb[0].mxu0 %v205
    %v262 = vpop.f32.mrb[0].mxu0
    %v263 = vadd.f32 %v135, %v262
    %v264 = vpop.f32.mrb[0].mxu0
    %v265 = vadd.f32 %v139, %v264
    %v266 = vpop.f32.mrb[0].mxu0
    %v267 = vadd.f32 %v135, %v266
    %v268 = vpop.f32.mrb[0].mxu0
    %v269 = vadd.f32 %v139, %v268
    %270 = vmatprep.mubr.bf16.mxu0 0
    %271 = vmatmul.mubr.bf16.gmra.mrb[0].mxu0 %v208
    %v272 = vpop.f32.mrb[0].mxu0
    %v273 = vadd.f32 %v135, %v272
    %v274 = vpop.f32.mrb[0].mxu0
    %v275 = vadd.f32 %v139, %v274
    %v276 = vpop.f32.mrb[0].mxu0
    %v277 = vadd.f32 %v135, %v276
    %v278 = vpop.f32.mrb[0].mxu0
    %v279 = vadd.f32 %v139, %v278
    %280 = vmatprep.mubr.bf16.mxu0 0
    %281 = vmatmul.mubr.bf16.gmra.mrb[0].mxu0 %v211
    %v282 = vpop.f32.mrb[0].mxu0
    %v283 = vadd.f32 %v135, %v282
    %v284 = vpop.f32.mrb[0].mxu0
    %v285 = vadd.f32 %v139, %v284
    %v286 = vpop.f32.mrb[0].mxu0
    %v287 = vadd.f32 %v135, %v286
    %v288 = vpop.f32.mrb[0].mxu0
    %v289 = vadd.f32 %v139, %v288
    %290 = vmatprep.mubr.bf16.mxu0 0
    %291 = vmatmul.mubr.bf16.gmra.mrb[0].mxu0 %v214
    %v292 = vpop.f32.mrb[0].mxu0
    %v293 = vadd.f32 %v135, %v292
    %v294 = vpop.f32.mrb[0].mxu0
    %v295 = vadd.f32 %v139, %v294
    %v296 = vpop.f32.mrb[0].mxu0
    %v297 = vadd.f32 %v135, %v296
    %v298 = vpop.f32.mrb[0].mxu0
    %v299 = vadd.f32 %v139, %v298
    %300 = vmatprep.mubr.bf16.mxu0 0
    %301 = vmatmul.mubr.bf16.gmra.mrb[0].mxu0 %v217
    %v302 = vpop.f32.mrb[0].mxu0
    %v303 = vadd.f32 %v135, %v302
    %v304 = vpop.f32.mrb[0].mxu0
    %v305 = vadd.f32 %v139, %v304
    %v306 = vpop.f32.mrb[0].mxu0
    %v307 = vadd.f32 %v135, %v306
    %v308 = vpop.f32.mrb[0].mxu0
    %v309 = vadd.f32 %v139, %v308
    %310 = vmatprep.mubr.bf16.mxu0 0
    %311 = vmatmul.mubr.bf16.gmra.mrb[0].mxu0 %v220
    %v312 = vpop.f32.mrb[0].mxu0
    %v313 = vadd.f32 %v135, %v312
    %v314 = vpop.f32.mrb[0].mxu0
    %v315 = vadd.f32 %v139, %v314
    %v316 = vpop.f32.mrb[0].mxu0
    %v317 = vadd.f32 %v135, %v316
    %v318 = vpop.f32.mrb[0].mxu0
    %v319 = vadd.f32 %v139, %v318
    %320 = vmatprep.mubr.bf16.mxu0 0
    %321 = vmatmul.mubr.bf16.gmra.mrb[0].mxu0 %v223
    %v322 = vpop.f32.mrb[0].mxu0
    %v323 = vadd.f32 %v135, %v322
    %v324 = vpop.f32.mrb[0].mxu0
    %v325 = vadd.f32 %v139, %v324
    %v326 = vpop.f32.mrb[0].mxu0
    %v327 = vadd.f32 %v135, %v326
    %v328 = vpop.f32.mrb[0].mxu0
    %v329 = vadd.f32 %v139, %v328
    %330 = vmatprep.mubr.bf16.mxu0 0
    %331 = vmatmul.mubr.bf16.gmra.mrb[0].mxu0 %v226
    %v332 = vpop.f32.mrb[0].mxu0
    %v333 = vadd.f32 %v135, %v332
    %v334 = vpop.f32.mrb[0].mxu0
    %v335 = vadd.f32 %v139, %v334
    %v336 = vpop.f32.mrb[0].mxu0
    %v337 = vadd.f32 %v135, %v336
    %v338 = vpop.f32.mrb[0].mxu0
    %v339 = vadd.f32 %v139, %v338
    %340 = vdwg.mxu0
    %341 = vmatprep.subr.bf16.mxu0 0
    %342 = vmatpush1.bf16.msra.mxu0 %v199
    %343 = vmatprep.subr.bf16.mxu0 0
    %344 = vmatpush1.bf16.msra.mxu0 0
    %345 = vmatprep.subr.bf16.mxu0 0
    %346 = vmatpush1.bf16.msra.mxu0 0
    %347 = vmatprep.subr.bf16.mxu0 0
    %348 = vmatpush1.bf16.msra.mxu0 0
    %349 = vmatprep.subr.bf16.mxu0 0
    %350 = vmatpush1.bf16.msra.mxu0 0
    %351 = vmatprep.subr.bf16.mxu0 0
    %352 = vmatpush1.bf16.msra.mxu0 0
    %353 = vmatprep.subr.bf16.mxu0 0
    %354 = vmatpush1.bf16.msra.mxu0 0
    %355 = vmatprep.subr.bf16.mxu0 0
    %356 = vmatpush1.bf16.msra.mxu0 0
    %357 = vmatprep.subr.bf16.mxu0 0
    %358 = vmatpush1.bf16.msra.mxu0 0
    %359 = vmatprep.subr.bf16.mxu0 0
    %360 = vmatpush1.bf16.msra.mxu0 0
    %361 = vmatprep.subr.bf16.mxu0 0
    %362 = vmatpush1.bf16.msra.mxu0 0
    %363 = vmatprep.subr.bf16.mxu0 0
    %364 = vmatpush1.bf16.msra.mxu0 0
    %365 = vmatprep.subr.bf16.mxu0 0
    %366 = vmatpush1.bf16.msra.mxu0 0
    %367 = vmatprep.subr.bf16.mxu0 0
    %368 = vmatpush1.bf16.msra.mxu0 0
    %369 = vmatprep.subr.bf16.mxu0 0
    %370 = vmatpush1.bf16.msra.mxu0 0
    %371 = vmatprep.subr.bf16.mxu0 0
    %372 = vmatpush1.bf16.msra.mxu0 0
    %373 = vmatprep.mubr.bf16.mxu0 0
    %374 = vmatmul.mubr.bf16.gmra.mrb[0].mxu0 %v205
    %v375 = vpop.f32.mrb[0].mxu0
    %v376 = vadd.f32 %v143, %v375
    %v377 = vpop.f32.mrb[0].mxu0
    %v378 = vpop.f32.mrb[0].mxu0
    %v379 = vadd.f32 %v143, %v378
    %v380 = vpop.f32.mrb[0].mxu0
    %381 = vmatprep.mubr.bf16.mxu0 0
    %382 = vmatmul.mubr.bf16.gmra.mrb[0].mxu0 %v208
    %v383 = vpop.f32.mrb[0].mxu0
    %v384 = vadd.f32 %v143, %v383
    %v385 = vpop.f32.mrb[0].mxu0
    %v386 = vpop.f32.mrb[0].mxu0
    %v387 = vadd.f32 %v143, %v386
    %v388 = vpop.f32.mrb[0].mxu0
    %389 = vmatprep.mubr.bf16.mxu0 0
    %390 = vmatmul.mubr.bf16.gmra.mrb[0].mxu0 %v211
    %v391 = vpop.f32.mrb[0].mxu0
    %v392 = vadd.f32 %v143, %v391
    %v393 = vpop.f32.mrb[0].mxu0
    %v394 = vpop.f32.mrb[0].mxu0
    %v395 = vadd.f32 %v143, %v394
    %v396 = vpop.f32.mrb[0].mxu0
    %397 = vmatprep.mubr.bf16.mxu0 0
    %398 = vmatmul.mubr.bf16.gmra.mrb[0].mxu0 %v214
    %v399 = vpop.f32.mrb[0].mxu0
    %v400 = vadd.f32 %v143, %v399
    %v401 = vpop.f32.mrb[0].mxu0
    %v402 = vpop.f32.mrb[0].mxu0
    %v403 = vadd.f32 %v143, %v402
    %v404 = vpop.f32.mrb[0].mxu0
    %405 = vmatprep.mubr.bf16.mxu0 0
    %406 = vmatmul.mubr.bf16.gmra.mrb[0].mxu0 %v217
    %v407 = vpop.f32.mrb[0].mxu0
    %v408 = vadd.f32 %v143, %v407
    %v409 = vpop.f32.mrb[0].mxu0
    %v410 = vpop.f32.mrb[0].mxu0
    %v411 = vadd.f32 %v143, %v410
    %v412 = vpop.f32.mrb[0].mxu0
    %413 = vmatprep.mubr.bf16.mxu0 0
    %414 = vmatmul.mubr.bf16.gmra.mrb[0].mxu0 %v220
    %v415 = vpop.f32.mrb[0].mxu0
    %v416 = vadd.f32 %v143, %v415
    %v417 = vpop.f32.mrb[0].mxu0
    %v418 = vpop.f32.mrb[0].mxu0
    %v419 = vadd.f32 %v143, %v418
    %v420 = vpop.f32.mrb[0].mxu0
    %421 = vmatprep.mubr.bf16.mxu0 0
    %422 = vmatmul.mubr.bf16.gmra.mrb[0].mxu0 %v223
    %v423 = vpop.f32.mrb[0].mxu0
    %v424 = vadd.f32 %v143, %v423
    %v425 = vpop.f32.mrb[0].mxu0
    %v426 = vpop.f32.mrb[0].mxu0
    %v427 = vadd.f32 %v143, %v426
    %v428 = vpop.f32.mrb[0].mxu0
    %429 = vmatprep.mubr.bf16.mxu0 0
    %430 = vmatmul.mubr.bf16.gmra.mrb[0].mxu0 %v226
    %v431 = vpop.f32.mrb[0].mxu0
    %v432 = vadd.f32 %v143, %v431
    %v433 = vpop.f32.mrb[0].mxu0
    %v434 = vpop.f32.mrb[0].mxu0
    %v435 = vadd.f32 %v143, %v434
    %v436 = vpop.f32.mrb[0].mxu0
    %437 = vdwg.mxu0
    %v438 = vpack.c.bf16 %v267, %v263
    %v439 = vpack.c.bf16 %v269, %v265
    %v440 = vpack.c.bf16 %v379, %v376
    %v441 = vpack.c.bf16 %v277, %v273
    %v442 = vpack.c.bf16 %v279, %v275
    %v443 = vpack.c.bf16 %v387, %v384
    %v444 = vpack.c.bf16 %v287, %v283
    %v445 = vpack.c.bf16 %v289, %v285
    %v446 = vpack.c.bf16 %v395, %v392
    %v447 = vpack.c.bf16 %v297, %v293
    %v448 = vpack.c.bf16 %v299, %v295
    %v449 = vpack.c.bf16 %v403, %v400
    %v450 = vpack.c.bf16 %v307, %v303
    %v451 = vpack.c.bf16 %v309, %v305
    %v452 = vpack.c.bf16 %v411, %v408
    %v453 = vpack.c.bf16 %v317, %v313
    %v454 = vpack.c.bf16 %v319, %v315
    %v455 = vpack.c.bf16 %v419, %v416
    %v456 = vpack.c.bf16 %v327, %v323
    %v457 = vpack.c.bf16 %v329, %v325
    %v458 = vpack.c.bf16 %v427, %v424
    %v459 = vpack.c.bf16 %v337, %v333
    %v460 = vpack.c.bf16 %v339, %v335
    %v461 = vpack.c.bf16 %v435, %v432
    %462 = vst [vmem:[#allocation3] sm:$0xff] %v438
    %463 = vst [vmem:[#allocation3 + $0x8] sm:$0xff] %v439
    %464 = vst [vmem:[#allocation3 + $0x10] sm:$0xff] %v440
    %465 = vst [vmem:[#allocation3 + $0x18] sm:$0xff] %v441
    %466 = vst [vmem:[#allocation3 + $0x20] sm:$0xff] %v442
    %467 = vst [vmem:[#allocation3 + $0x28] sm:$0xff] %v443
    %468 = vst [vmem:[#allocation3 + $0x30] sm:$0xff] %v444
    %469 = vst [vmem:[#allocation3 + $0x38] sm:$0xff] %v445
    %470 = vst [vmem:[#allocation3 + $0x40] sm:$0xff] %v446
    %471 = vst [vmem:[#allocation3 + $0x48] sm:$0xff] %v447
    %472 = vst [vmem:[#allocation3 + $0x50] sm:$0xff] %v448
    %473 = vst [vmem:[#allocation3 + $0x58] sm:$0xff] %v449
    %474 = vst [vmem:[#allocation3 + $0x60] sm:$0xff] %v450
    %475 = vst [vmem:[#allocation3 + $0x68] sm:$0xff] %v451
    %476 = vst [vmem:[#allocation3 + $0x70] sm:$0xff] %v452
    %477 = vst [vmem:[#allocation3 + $0x78] sm:$0xff] %v453
    %478 = vst [vmem:[#allocation3 + $0x80] sm:$0xff] %v454
    %479 = vst [vmem:[#allocation3 + $0x88] sm:$0xff] %v455
    %480 = vst [vmem:[#allocation3 + $0x90] sm:$0xff] %v456
    %481 = vst [vmem:[#allocation3 + $0x98] sm:$0xff] %v457
    %482 = vst [vmem:[#allocation3 + $0xa0] sm:$0xff] %v458
    %483 = vst [vmem:[#allocation3 + $0xa8] sm:$0xff] %v459
    %484 = vst [vmem:[#allocation3 + $0xb0] sm:$0xff] %v460
    %485 = vst [vmem:[#allocation3 + $0xb8] sm:$0xff] %v461
    %v486 = vld [vmem:[#allocation9] sm:$0xff]
    %v487 = vld [vmem:[#allocation9 + $0x8] sm:$0xf]
    %v488 = vld [vmem:[#allocation9 + $0xc] sm:$0xff]
    %v489 = vld [vmem:[#allocation9 + $0x14] sm:$0xf]
    %v490 = vld [vmem:[#allocation9 + $0x18] sm:$0xff]
    %v491 = vld [vmem:[#allocation9 + $0x20] sm:$0xf]
    %v492 = vld [vmem:[#allocation9 + $0x24] sm:$0xff]
    %v493 = vld [vmem:[#allocation9 + $0x2c] sm:$0xf]
    %v494 = vld [vmem:[#allocation9 + $0x30] sm:$0xff]
    %v495 = vld [vmem:[#allocation9 + $0x38] sm:$0xf]
    %v496 = vld [vmem:[#allocation9 + $0x3c] sm:$0xff]
    %v497 = vld [vmem:[#allocation9 + $0x44] sm:$0xf]
    %v498 = vld [vmem:[#allocation9 + $0x48] sm:$0xff]
    %v499 = vld [vmem:[#allocation9 + $0x50] sm:$0xf]
    %v500 = vld [vmem:[#allocation9 + $0x54] sm:$0xff]
    %v501 = vld [vmem:[#allocation9 + $0x5c] sm:$0xf]
    %v502 = vld [vmem:[#allocation9 + $0x60] sm:$0xff]
    %v503 = vld [vmem:[#allocation9 + $0x68] sm:$0xf]
    %v504 = vld [vmem:[#allocation9 + $0x6c] sm:$0xff]
    %v505 = vld [vmem:[#allocation9 + $0x74] sm:$0xf]
    %v506 = vld [vmem:[#allocation9 + $0x78] sm:$0xff]
    %v507 = vld [vmem:[#allocation9 + $0x80] sm:$0xf]
    %v508 = vld [vmem:[#allocation9 + $0x84] sm:$0xff]
    %v509 = vld [vmem:[#allocation9 + $0x8c] sm:$0xf]
    %v510 = vld [vmem:[#allocation9 + $0x90] sm:$0xff]
    %v511 = vld [vmem:[#allocation9 + $0x98] sm:$0xf]
    %v512 = vld [vmem:[#allocation9 + $0x9c] sm:$0xff]
    %v513 = vld [vmem:[#allocation9 + $0xa4] sm:$0xf]
    %v514 = vld [vmem:[#allocation9 + $0xa8] sm:$0xff]
    %v515 = vld [vmem:[#allocation9 + $0xb0] sm:$0xf]
    %v516 = vld [vmem:[#allocation9 + $0xb4] sm:$0xff]
    %v517 = vld [vmem:[#allocation9 + $0xbc] sm:$0xf]
    %v518 = vld [vmem:[%s6] sm:$0x1]
    %v519 = vld [vmem:[#allocation3] sm:$0xff]
    %v520 = vld [vmem:[#allocation3 + $0x8] sm:$0xff]
    %v521 = vld [vmem:[#allocation3 + $0x10] sm:$0xff]
    %v522 = vunpack.c.l.bf16 %v519
    %v523 = vunpack.c.l.bf16 %v520
    %v524 = vunpack.c.l.bf16 %v521
    %v525 = vunpack.c.h.bf16 %v519
    %v526 = vunpack.c.h.bf16 %v520
    %v527 = vunpack.c.h.bf16 %v521
    %v560 = vunpack.c.l.b16 %v486
    %v561 = vunpack.c.h.b16 %v486
    %v562 = vunpack.c.l.b16 %v487
    %v563 = vunpack.c.l.b16 %v488
    %v564 = vunpack.c.h.b16 %v488
    %v565 = vunpack.c.l.b16 %v489
    %v566 = vunpack.c.l.b16 %v490
    %v567 = vunpack.c.h.b16 %v490
    %v568 = vunpack.c.l.b16 %v491
    %v569 = vunpack.c.l.b16 %v492
    %v570 = vunpack.c.h.b16 %v492
    %v571 = vunpack.c.l.b16 %v493
    %v572 = vunpack.c.l.b16 %v494
    %v573 = vunpack.c.h.b16 %v494
    %v574 = vunpack.c.l.b16 %v495
    %v575 = vunpack.c.l.b16 %v496
    %v576 = vunpack.c.h.b16 %v496
    %v577 = vunpack.c.l.b16 %v497
    %v578 = vunpack.c.l.b16 %v498
    %v579 = vunpack.c.h.b16 %v498
    %v580 = vunpack.c.l.b16 %v499
    %v581 = vunpack.c.l.b16 %v500
    %v582 = vunpack.c.h.b16 %v500
    %v583 = vunpack.c.l.b16 %v501
    %v584 = vunpack.c.l.b16 %v502
    %v585 = vunpack.c.h.b16 %v502
    %v586 = vunpack.c.l.b16 %v503
    %v587 = vunpack.c.l.b16 %v504
    %v588 = vunpack.c.h.b16 %v504
    %v589 = vunpack.c.l.b16 %v505
    %v590 = vunpack.c.l.b16 %v506
    %v591 = vunpack.c.h.b16 %v506
    %v592 = vunpack.c.l.b16 %v507
    %v593 = vunpack.c.l.b16 %v508
    %v594 = vunpack.c.h.b16 %v508
    %v595 = vunpack.c.l.b16 %v509
    %v596 = vunpack.c.l.b16 %v510
    %v597 = vunpack.c.h.b16 %v510
    %v598 = vunpack.c.l.b16 %v511
    %v599 = vunpack.c.l.b16 %v512
    %v600 = vunpack.c.h.b16 %v512
    %v601 = vunpack.c.l.b16 %v513
    %v602 = vunpack.c.l.b16 %v514
    %v603 = vunpack.c.h.b16 %v514
    %v604 = vunpack.c.l.b16 %v515
    %v605 = vunpack.c.l.b16 %v516
    %v606 = vunpack.c.h.b16 %v516
    %v607 = vunpack.c.l.b16 %v517
    %v608 = vpack.c.b16 %v563, %v560
    %v609 = vpack.c.b16 %v564, %v561
    %v610 = vpack.c.b16 %v565, %v562
    %v611 = vpack.c.b16 %v569, %v566
    %v612 = vpack.c.b16 %v570, %v567
    %v613 = vpack.c.b16 %v571, %v568
    %v614 = vpack.c.b16 %v575, %v572
    %v615 = vpack.c.b16 %v576, %v573
    %v616 = vpack.c.b16 %v577, %v574
    %v617 = vpack.c.b16 %v581, %v578
    %v618 = vpack.c.b16 %v582, %v579
    %v619 = vpack.c.b16 %v583, %v580
    %v620 = vpack.c.b16 %v587, %v584
    %v621 = vpack.c.b16 %v588, %v585
    %v622 = vpack.c.b16 %v589, %v586
    %v623 = vpack.c.b16 %v593, %v590
    %v624 = vpack.c.b16 %v594, %v591
    %v625 = vpack.c.b16 %v595, %v592
    %v626 = vpack.c.b16 %v599, %v596
    %v627 = vpack.c.b16 %v600, %v597
    %v628 = vpack.c.b16 %v601, %v598
    %v629 = vpack.c.b16 %v605, %v602
    %v630 = vpack.c.b16 %v606, %v603
    %v631 = vpack.c.b16 %v607, %v604
    %656 = vmatprep.subr.bf16.mxu0 %v609
    %657 = vmatpush1.bf16.msra.mxu0 %v608
    %658 = vmatprep.subr.bf16.mxu0 %v612
    %659 = vmatpush1.bf16.msra.mxu0 %v611
    %660 = vmatprep.subr.bf16.mxu0 %v615
    %661 = vmatpush1.bf16.msra.mxu0 %v614
    %662 = vmatprep.subr.bf16.mxu0 %v618
    %663 = vmatpush1.bf16.msra.mxu0 %v617
    %664 = vmatprep.subr.bf16.mxu0 %v621
    %665 = vmatpush1.bf16.msra.mxu0 %v620
    %666 = vmatprep.subr.bf16.mxu0 %v624
    %667 = vmatpush1.bf16.msra.mxu0 %v623
    %668 = vmatprep.subr.bf16.mxu0 %v627
    %669 = vmatpush1.bf16.msra.mxu0 %v626
    %670 = vmatprep.subr.bf16.mxu0 %v630
    %671 = vmatpush1.bf16.msra.mxu0 %v629
    %672 = vmatprep.subr.bf16.mxu0 0
    %673 = vmatpush1.bf16.msra.mxu0 0
    %674 = vmatprep.subr.bf16.mxu0 0
    %675 = vmatpush1.bf16.msra.mxu0 0
    %676 = vmatprep.subr.bf16.mxu0 0
    %677 = vmatpush1.bf16.msra.mxu0 0
    %678 = vmatprep.subr.bf16.mxu0 0
    %679 = vmatpush1.bf16.msra.mxu0 0
    %680 = vmatprep.subr.bf16.mxu0 0
    %681 = vmatpush1.bf16.msra.mxu0 0
    %682 = vmatprep.subr.bf16.mxu0 0
    %683 = vmatpush1.bf16.msra.mxu0 0
    %684 = vmatprep.subr.bf16.mxu0 0
    %685 = vmatpush1.bf16.msra.mxu0 0
    %686 = vmatprep.subr.bf16.mxu0 0
    %687 = vmatpush1.bf16.msra.mxu0 0
    %688 = vmatprep.mubr.bf16.mxu0 0
    %689 = vmatmul.mubr.bf16.gmra.mrb[0].mxu0 0
    %v690 = vpop.f32.mrb[0].mxu0
    %v691 = vadd.f32 0.0, %v690
    %v692 = vpop.f32.mrb[0].mxu0
    %v693 = vadd.f32 0.0, %v692
    %v694 = vpop.f32.mrb[0].mxu0
    %v695 = vadd.f32 0.0, %v694
    %v696 = vpop.f32.mrb[0].mxu0
    %v697 = vadd.f32 0.0, %v696
    %698 = vdwg.mxu0
    %699 = vmatprep.subr.bf16.mxu0 0
    %700 = vmatpush1.bf16.msra.mxu0 %v610
    %701 = vmatprep.subr.bf16.mxu0 0
    %702 = vmatpush1.bf16.msra.mxu0 %v613
    %703 = vmatprep.subr.bf16.mxu0 0
    %704 = vmatpush1.bf16.msra.mxu0 %v616
    %705 = vmatprep.subr.bf16.mxu0 0
    %706 = vmatpush1.bf16.msra.mxu0 %v619
    %707 = vmatprep.subr.bf16.mxu0 0
    %708 = vmatpush1.bf16.msra.mxu0 %v622
    %709 = vmatprep.subr.bf16.mxu0 0
    %710 = vmatpush1.bf16.msra.mxu0 %v625
    %711 = vmatprep.subr.bf16.mxu0 0
    %712 = vmatpush1.bf16.msra.mxu0 %v628
    %713 = vmatprep.subr.bf16.mxu0 0
    %714 = vmatpush1.bf16.msra.mxu0 %v631
    %715 = vmatprep.subr.bf16.mxu0 0
    %716 = vmatpush1.bf16.msra.mxu0 0
    %717 = vmatprep.subr.bf16.mxu0 0
    %718 = vmatpush1.bf16.msra.mxu0 0
    %719 = vmatprep.subr.bf16.mxu0 0
    %720 = vmatpush1.bf16.msra.mxu0 0
    %721 = vmatprep.subr.bf16.mxu0 0
    %722 = vmatpush1.bf16.msra.mxu0 0
    %723 = vmatprep.subr.bf16.mxu0 0
    %724 = vmatpush1.bf16.msra.mxu0 0
    %725 = vmatprep.subr.bf16.mxu0 0
    %726 = vmatpush1.bf16.msra.mxu0 0
    %727 = vmatprep.subr.bf16.mxu0 0
    %728 = vmatpush1.bf16.msra.mxu0 0
    %729 = vmatprep.subr.bf16.mxu0 0
    %730 = vmatpush1.bf16.msra.mxu0 0
    %731 = vmatprep.mubr.bf16.mxu0 0
    %732 = vmatmul.mubr.bf16.gmra.mrb[0].mxu0 0
    %v733 = vpop.f32.mrb[0].mxu0
    %v734 = vadd.f32 0.0, %v733
    %v735 = vpop.f32.mrb[0].mxu0
    %v736 = vpop.f32.mrb[0].mxu0
    %v737 = vadd.f32 0.0, %v736
    %v738 = vpop.f32.mrb[0].mxu0
    %739 = vdwg.mxu0
    %v740 = vadd.f32 %v522, %v691
    %v741 = vadd.f32 %v525, %v695
    %v742 = vxor.u32 %v740, 2147483648
    %v743 = vxor.u32 %v741, 2147483648
    %v744 = vmul.f32 %v742, 1.442695
    %v745 = vpow.pop %v744
    %v746 = vmul.f32 %v743, 1.442695
    %v747 = vpow.pop %v746
    %v748 = vadd.f32 %v745, 1.0
    %v749 = vadd.f32 %v747, 1.0
    %v750 = vrcp.pop %v748
    %v751 = vmul.f32 1.0, %v750
    %v752 = vrcp.pop %v749
    %v753 = vmul.f32 1.0, %v752
    %v754 = vadd.f32 %v523, %v693
    %v755 = vadd.f32 %v526, %v697
    %v756 = vxor.u32 %v754, 2147483648
    %v757 = vxor.u32 %v755, 2147483648
    %v758 = vmul.f32 %v756, 1.442695
    %v759 = vpow.pop %v758
    %v760 = vmul.f32 %v757, 1.442695
    %v761 = vpow.pop %v760
    %v762 = vadd.f32 %v759, 1.0
    %v763 = vadd.f32 %v761, 1.0
    %v764 = vrcp.pop %v762
    %v765 = vmul.f32 1.0, %v764
    %v766 = vrcp.pop %v763
    %v767 = vmul.f32 1.0, %v766
    %v769 = vlaneseq
    %v770 = vshrl.u32 %v769, 7
    %v771 = vsub.s32 0, %v770
    %v772 = vrot.slane %v518, %v771
    %v774 = vadd.f32 %v734, %v772
    %v775 = vadd.f32 %v737, %v772
    %v776 = vmul.f32 %v751, %v774
    %v777 = vmul.f32 %v753, %v775
    %v778 = vadd.f32 %v524, %v776
    %v779 = vadd.f32 %v527, %v777
    %v780 = vtanh.pop %v778
    %v781 = vtanh.pop %v779
    %v782 = vsub.f32 1.0, %v765
    %v783 = vsub.f32 1.0, %v767
    %v784 = vmul.f32 %v782, %v780
    %v785 = vmul.f32 %v783, %v781
    %v786 = vmul.f32 %v765, 0.0
    %v787 = vmul.f32 %v767, 0.0
    %v788 = vadd.f32 %v784, %v786
    %v789 = vadd.f32 %v785, %v787
    %vm790 = vcmp.gt.s32.totalorder %v108, 0
    %vm791 = vcmp.gt.s32.totalorder %v109, 0
    %v792 = vsel %vm790, 1, 0
    %v793 = vsel %vm791, 1, 0
    %794 = vset.pattern.permute.xlu0 0
    %795 = vperm.xlu0 %794, %v792
    %v796 = vpop.permute.xlu0 %795
    %797 = vset.pattern.permute.xlu0 0
    %798 = vperm.xlu0 %797, %v793
    %v799 = vpop.permute.xlu0 %798
    %vm800 = vcmp.eq.s32.totalorder %v796, 1
    %vm801 = vcmp.eq.s32.totalorder %v799, 1
    %v802 = vsel %vm800, %v788, 0.0
    %v803 = vsel %vm801, %v789, 0.0
    %804 = vst [vmem:[#allocation2] sm:$0xff] %v802
    %805 = vst [vmem:[#allocation2 + $0x8] sm:$0xff] %v803
    %s806 = scalar_lea.vmem [#allocation3], 24
    %v807 = vld [vmem:[%s806] sm:$0xff]
    %v808 = vld [vmem:[%s806 + $0x8] sm:$0xff]
    %v809 = vld [vmem:[%s806 + $0x10] sm:$0xff]
    %v810 = vunpack.c.l.bf16 %v807
    %v811 = vunpack.c.l.bf16 %v808
    %v812 = vunpack.c.l.bf16 %v809
    %v813 = vunpack.c.h.bf16 %v807
    %v814 = vunpack.c.h.bf16 %v808
    %v815 = vunpack.c.h.bf16 %v809
    %v816 = vpack.c.bf16 %v803, %v802
    %817 = vmatprep.subr.bf16.mxu0 %v609
    %818 = vmatpush1.bf16.msra.mxu0 %v608
    %819 = vmatprep.subr.bf16.mxu0 %v612
    %820 = vmatpush1.bf16.msra.mxu0 %v611
    %821 = vmatprep.subr.bf16.mxu0 %v615
    %822 = vmatpush1.bf16.msra.mxu0 %v614
    %823 = vmatprep.subr.bf16.mxu0 %v618
    %824 = vmatpush1.bf16.msra.mxu0 %v617
    %825 = vmatprep.subr.bf16.mxu0 %v621
    %826 = vmatpush1.bf16.msra.mxu0 %v620
    %827 = vmatprep.subr.bf16.mxu0 %v624
    %828 = vmatpush1.bf16.msra.mxu0 %v623
    %829 = vmatprep.subr.bf16.mxu0 %v627
    %830 = vmatpush1.bf16.msra.mxu0 %v626
    %831 = vmatprep.subr.bf16.mxu0 %v630
    %832 = vmatpush1.bf16.msra.mxu0 %v629
    %833 = vmatprep.subr.bf16.mxu0 0
    %834 = vmatpush1.bf16.msra.mxu0 0
    %835 = vmatprep.subr.bf16.mxu0 0
    %836 = vmatpush1.bf16.msra.mxu0 0
    %837 = vmatprep.subr.bf16.mxu0 0
    %838 = vmatpush1.bf16.msra.mxu0 0
    %839 = vmatprep.subr.bf16.mxu0 0
    %840 = vmatpush1.bf16.msra.mxu0 0
    %841 = vmatprep.subr.bf16.mxu0 0
    %842 = vmatpush1.bf16.msra.mxu0 0
    %843 = vmatprep.subr.bf16.mxu0 0
    %844 = vmatpush1.bf16.msra.mxu0 0
    %845 = vmatprep.subr.bf16.mxu0 0
    %846 = vmatpush1.bf16.msra.mxu0 0
    %847 = vmatprep.subr.bf16.mxu0 0
    %848 = vmatpush1.bf16.msra.mxu0 0
    %849 = vmatprep.mubr.bf16.mxu0 0
    %850 = vmatmul.mubr.bf16.gmra.mrb[0].mxu0 %v816
    %v851 = vpop.f32.mrb[0].mxu0
    %v852 = vadd.f32 0.0, %v851
    %v853 = vpop.f32.mrb[0].mxu0
    %v854 = vadd.f32 0.0, %v853
    %v855 = vpop.f32.mrb[0].mxu0
    %v856 = vadd.f32 0.0, %v855
    %v857 = vpop.f32.mrb[0].mxu0
    %v858 = vadd.f32 0.0, %v857
    %859 = vdwg.mxu0
    %860 = vmatprep.subr.bf16.mxu0 0
    %861 = vmatpush1.bf16.msra.mxu0 %v610
    %862 = vmatprep.subr.bf16.mxu0 0
    %863 = vmatpush1.bf16.msra.mxu0 %v613
    %864 = vmatprep.subr.bf16.mxu0 0
    %865 = vmatpush1.bf16.msra.mxu0 %v616
    %866 = vmatprep.subr.bf16.mxu0 0
    %867 = vmatpush1.bf16.msra.mxu0 %v619
    %868 = vmatprep.subr.bf16.mxu0 0
    %869 = vmatpush1.bf16.msra.mxu0 %v622
    %870 = vmatprep.subr.bf16.mxu0 0
    %871 = vmatpush1.bf16.msra.mxu0 %v625
    %872 = vmatprep.subr.bf16.mxu0 0
    %873 = vmatpush1.bf16.msra.mxu0 %v628
    %874 = vmatprep.subr.bf16.mxu0 0
    %875 = vmatpush1.bf16.msra.mxu0 %v631
    %876 = vmatprep.subr.bf16.mxu0 0
    %877 = vmatpush1.bf16.msra.mxu0 0
    %878 = vmatprep.subr.bf16.mxu0 0
    %879 = vmatpush1.bf16.msra.mxu0 0
    %880 = vmatprep.subr.bf16.mxu0 0
    %881 = vmatpush1.bf16.msra.mxu0 0
    %882 = vmatprep.subr.bf16.mxu0 0
    %883 = vmatpush1.bf16.msra.mxu0 0
    %884 = vmatprep.subr.bf16.mxu0 0
    %885 = vmatpush1.bf16.msra.mxu0 0
    %886 = vmatprep.subr.bf16.mxu0 0
    %887 = vmatpush1.bf16.msra.mxu0 0
    %888 = vmatprep.subr.bf16.mxu0 0
    %889 = vmatpush1.bf16.msra.mxu0 0
    %890 = vmatprep.subr.bf16.mxu0 0
    %891 = vmatpush1.bf16.msra.mxu0 0
    %892 = vmatprep.mubr.bf16.mxu0 0
    %893 = vmatmul.mubr.bf16.gmra.mrb[0].mxu0 %v816
    %v894 = vpop.f32.mrb[0].mxu0
    %v895 = vadd.f32 0.0, %v894
    %v896 = vpop.f32.mrb[0].mxu0
    %v897 = vpop.f32.mrb[0].mxu0
    %v898 = vadd.f32 0.0, %v897
    %v899 = vpop.f32.mrb[0].mxu0
    %900 = vdwg.mxu0
    %v901 = vadd.f32 %v810, %v852
    %v902 = vadd.f32 %v813, %v856
    %v903 = vxor.u32 %v901, 2147483648
    %v904 = vxor.u32 %v902, 2147483648
    %v905 = vmul.f32 %v903, 1.442695
    %v906 = vpow.pop %v905
    %v907 = vmul.f32 %v904, 1.442695
    %v908 = vpow.pop %v907
    %v909 = vadd.f32 %v906, 1.0
    %v910 = vadd.f32 %v908, 1.0
    %v911 = vrcp.pop %v909
    %v912 = vmul.f32 1.0, %v911
    %v913 = vrcp.pop %v910
    %v914 = vmul.f32 1.0, %v913
    %v915 = vadd.f32 %v811, %v854
    %v916 = vadd.f32 %v814, %v858
    %v917 = vxor.u32 %v915, 2147483648
    %v918 = vxor.u32 %v916, 2147483648
    %v919 = vmul.f32 %v917, 1.442695
    %v920 = vpow.pop %v919
    %v921 = vmul.f32 %v918, 1.442695
    %v922 = vpow.pop %v921
    %v923 = vadd.f32 %v920, 1.0
    %v924 = vadd.f32 %v922, 1.0
    %v925 = vrcp.pop %v923
    %v926 = vmul.f32 1.0, %v925
    %v927 = vrcp.pop %v924
    %v928 = vmul.f32 1.0, %v927
    %v929 = vadd.f32 %v895, %v772
    %v930 = vadd.f32 %v898, %v772
    %v931 = vmul.f32 %v912, %v929
    %v932 = vmul.f32 %v914, %v930
    %v933 = vadd.f32 %v812, %v931
    %v934 = vadd.f32 %v815, %v932
    %v935 = vtanh.pop %v933
    %v936 = vtanh.pop %v934
    %v937 = vsub.f32 1.0, %v926
    %v938 = vsub.f32 1.0, %v928
    %v939 = vmul.f32 %v937, %v935
    %v940 = vmul.f32 %v938, %v936
    %v941 = vmul.f32 %v926, %v802
    %v942 = vmul.f32 %v928, %v803
    %v943 = vadd.f32 %v939, %v941
    %v944 = vadd.f32 %v940, %v942
    %vm945 = vcmp.gt.s32.totalorder %v108, 1
    %vm946 = vcmp.gt.s32.totalorder %v109, 1
    %v947 = vsel %vm945, 1, 0
    %v948 = vsel %vm946, 1, 0
    %949 = vset.pattern.permute.xlu0 0
    %950 = vperm.xlu0 %949, %v947
    %v951 = vpop.permute.xlu0 %950
    %952 = vset.pattern.permute.xlu0 0
    %953 = vperm.xlu0 %952, %v948
    %v954 = vpop.permute.xlu0 %953
    %vm955 = vcmp.eq.s32.totalorder %v951, 1
    %vm956 = vcmp.eq.s32.totalorder %v954, 1
    %v957 = vsel %vm955, %v943, 0.0
    %v958 = vsel %vm956, %v944, 0.0
    %s959 = scalar_lea.vmem [#allocation2], 16
    %960 = vst [vmem:[%s959] sm:$0xff] %v957
    %961 = vst [vmem:[%s959 + $0x8] sm:$0xff] %v958
    %v962 = vsel %vm955, %v943, %v802
    %v963 = vsel %vm956, %v944, %v803
    %s964 = scalar_lea.vmem [#allocation3], 48
    %v965 = vld [vmem:[%s964] sm:$0xff]
    %v966 = vld [vmem:[%s964 + $0x8] sm:$0xff]
    %v967 = vld [vmem:[%s964 + $0x10] sm:$0xff]
    %v968 = vunpack.c.l.bf16 %v965
    %v969 = vunpack.c.l.bf16 %v966
    %v970 = vunpack.c.l.bf16 %v967
    %v971 = vunpack.c.h.bf16 %v965
    %v972 = vunpack.c.h.bf16 %v966
    %v973 = vunpack.c.h.bf16 %v967
    %v974 = vpack.c.bf16 %v963, %v962
    %975 = vmatprep.subr.bf16.mxu0 %v609
    %976 = vmatpush1.bf16.msra.mxu0 %v608
    %977 = vmatprep.subr.bf16.mxu0 %v612
    %978 = vmatpush1.bf16.msra.mxu0 %v611
    %979 = vmatprep.subr.bf16.mxu0 %v615
    %980 = vmatpush1.bf16.msra.mxu0 %v614
    %981 = vmatprep.subr.bf16.mxu0 %v618
    %982 = vmatpush1.bf16.msra.mxu0 %v617
    %983 = vmatprep.subr.bf16.mxu0 %v621
    %984 = vmatpush1.bf16.msra.mxu0 %v620
    %985 = vmatprep.subr.bf16.mxu0 %v624
    %986 = vmatpush1.bf16.msra.mxu0 %v623
    %987 = vmatprep.subr.bf16.mxu0 %v627
    %988 = vmatpush1.bf16.msra.mxu0 %v626
    %989 = vmatprep.subr.bf16.mxu0 %v630
    %990 = vmatpush1.bf16.msra.mxu0 %v629
    %991 = vmatprep.subr.bf16.mxu0 0
    %992 = vmatpush1.bf16.msra.mxu0 0
    %993 = vmatprep.subr.bf16.mxu0 0
    %994 = vmatpush1.bf16.msra.mxu0 0
    %995 = vmatprep.subr.bf16.mxu0 0
    %996 = vmatpush1.bf16.msra.mxu0 0
    %997 = vmatprep.subr.bf16.mxu0 0
    %998 = vmatpush1.bf16.msra.mxu0 0
    %999 = vmatprep.subr.bf16.mxu0 0
    %1000 = vmatpush1.bf16.msra.mxu0 0
    %1001 = vmatprep.subr.bf16.mxu0 0
    %1002 = vmatpush1.bf16.msra.mxu0 0
    %1003 = vmatprep.subr.bf16.mxu0 0
    %1004 = vmatpush1.bf16.msra.mxu0 0
    %1005 = vmatprep.subr.bf16.mxu0 0
    %1006 = vmatpush1.bf16.msra.mxu0 0
    %1007 = vmatprep.mubr.bf16.mxu0 0
    %1008 = vmatmul.mubr.bf16.gmra.mrb[0].mxu0 %v974
    %v1009 = vpop.f32.mrb[0].mxu0
    %v1010 = vadd.f32 0.0, %v1009
    %v1011 = vpop.f32.mrb[0].mxu0
    %v1012 = vadd.f32 0.0, %v1011
    %v1013 = vpop.f32.mrb[0].mxu0
    %v1014 = vadd.f32 0.0, %v1013
    %v1015 = vpop.f32.mrb[0].mxu0
    %v1016 = vadd.f32 0.0, %v1015
    %1017 = vdwg.mxu0
    %1018 = vmatprep.subr.bf16.mxu0 0
    %1019 = vmatpush1.bf16.msra.mxu0 %v610
    %1020 = vmatprep.subr.bf16.mxu0 0
    %1021 = vmatpush1.bf16.msra.mxu0 %v613
    %1022 = vmatprep.subr.bf16.mxu0 0
    %1023 = vmatpush1.bf16.msra.mxu0 %v616
    %1024 = vmatprep.subr.bf16.mxu0 0
    %1025 = vmatpush1.bf16.msra.mxu0 %v619
    %1026 = vmatprep.subr.bf16.mxu0 0
    %1027 = vmatpush1.bf16.msra.mxu0 %v622
    %1028 = vmatprep.subr.bf16.mxu0 0
    %1029 = vmatpush1.bf16.msra.mxu0 %v625
    %1030 = vmatprep.subr.bf16.mxu0 0
    %1031 = vmatpush1.bf16.msra.mxu0 %v628
    %1032 = vmatprep.subr.bf16.mxu0 0
    %1033 = vmatpush1.bf16.msra.mxu0 %v631
    %1034 = vmatprep.subr.bf16.mxu0 0
    %1035 = vmatpush1.bf16.msra.mxu0 0
    %1036 = vmatprep.subr.bf16.mxu0 0
    %1037 = vmatpush1.bf16.msra.mxu0 0
    %1038 = vmatprep.subr.bf16.mxu0 0
    %1039 = vmatpush1.bf16.msra.mxu0 0
    %1040 = vmatprep.subr.bf16.mxu0 0
    %1041 = vmatpush1.bf16.msra.mxu0 0
    %1042 = vmatprep.subr.bf16.mxu0 0
    %1043 = vmatpush1.bf16.msra.mxu0 0
    %1044 = vmatprep.subr.bf16.mxu0 0
    %1045 = vmatpush1.bf16.msra.mxu0 0
    %1046 = vmatprep.subr.bf16.mxu0 0
    %1047 = vmatpush1.bf16.msra.mxu0 0
    %1048 = vmatprep.subr.bf16.mxu0 0
    %1049 = vmatpush1.bf16.msra.mxu0 0
    %1050 = vmatprep.mubr.bf16.mxu0 0
    %1051 = vmatmul.mubr.bf16.gmra.mrb[0].mxu0 %v974
    %v1052 = vpop.f32.mrb[0].mxu0
    %v1053 = vadd.f32 0.0, %v1052
    %v1054 = vpop.f32.mrb[0].mxu0
    %v1055 = vpop.f32.mrb[0].mxu0
    %v1056 = vadd.f32 0.0, %v1055
    %v1057 = vpop.f32.mrb[0].mxu0
    %1058 = vdwg.mxu0
    %v1059 = vadd.f32 %v968, %v1010
    %v1060 = vadd.f32 %v971, %v1014
    %v1061 = vxor.u32 %v1059, 2147483648
    %v1062 = vxor.u32 %v1060, 2147483648
    %v1063 = vmul.f32 %v1061, 1.442695
    %v1064 = vpow.pop %v1063
    %v1065 = vmul.f32 %v1062, 1.442695
    %v1066 = vpow.pop %v1065
    %v1067 = vadd.f32 %v1064, 1.0
    %v1068 = vadd.f32 %v1066, 1.0
    %v1069 = vrcp.pop %v1067
    %v1070 = vmul.f32 1.0, %v1069
    %v1071 = vrcp.pop %v1068
    %v1072 = vmul.f32 1.0, %v1071
    %v1073 = vadd.f32 %v969, %v1012
    %v1074 = vadd.f32 %v972, %v1016
    %v1075 = vxor.u32 %v1073, 2147483648
    %v1076 = vxor.u32 %v1074, 2147483648
    %v1077 = vmul.f32 %v1075, 1.442695
    %v1078 = vpow.pop %v1077
    %v1079 = vmul.f32 %v1076, 1.442695
    %v1080 = vpow.pop %v1079
    %v1081 = vadd.f32 %v1078, 1.0
    %v1082 = vadd.f32 %v1080, 1.0
    %v1083 = vrcp.pop %v1081
    %v1084 = vmul.f32 1.0, %v1083
    %v1085 = vrcp.pop %v1082
    %v1086 = vmul.f32 1.0, %v1085
    %v1087 = vadd.f32 %v1053, %v772
    %v1088 = vadd.f32 %v1056, %v772
    %v1089 = vmul.f32 %v1070, %v1087
    %v1090 = vmul.f32 %v1072, %v1088
    %v1091 = vadd.f32 %v970, %v1089
    %v1092 = vadd.f32 %v973, %v1090
    %v1093 = vtanh.pop %v1091
    %v1094 = vtanh.pop %v1092
    %v1095 = vsub.f32 1.0, %v1084
    %v1096 = vsub.f32 1.0, %v1086
    %v1097 = vmul.f32 %v1095, %v1093
    %v1098 = vmul.f32 %v1096, %v1094
    %v1099 = vmul.f32 %v1084, %v962
    %v1100 = vmul.f32 %v1086, %v963
    %v1101 = vadd.f32 %v1097, %v1099
    %v1102 = vadd.f32 %v1098, %v1100
    %vm1103 = vcmp.gt.s32.totalorder %v108, 2
    %vm1104 = vcmp.gt.s32.totalorder %v109, 2
    %v1105 = vsel %vm1103, 1, 0
    %v1106 = vsel %vm1104, 1, 0
    %1107 = vset.pattern.permute.xlu0 0
    %1108 = vperm.xlu0 %1107, %v1105
    %v1109 = vpop.permute.xlu0 %1108
    %1110 = vset.pattern.permute.xlu0 0
    %1111 = vperm.xlu0 %1110, %v1106
    %v1112 = vpop.permute.xlu0 %1111
    %vm1113 = vcmp.eq.s32.totalorder %v1109, 1
    %vm1114 = vcmp.eq.s32.totalorder %v1112, 1
    %v1115 = vsel %vm1113, %v1101, 0.0
    %v1116 = vsel %vm1114, %v1102, 0.0
    %s1117 = scalar_lea.vmem [#allocation2], 32
    %1118 = vst [vmem:[%s1117] sm:$0xff] %v1115
    %1119 = vst [vmem:[%s1117 + $0x8] sm:$0xff] %v1116
    %v1120 = vsel %vm1113, %v1101, %v962
    %v1121 = vsel %vm1114, %v1102, %v963
    %s1122 = scalar_lea.vmem [#allocation3], 72
    %v1123 = vld [vmem:[%s1122] sm:$0xff]
    %v1124 = vld [vmem:[%s1122 + $0x8] sm:$0xff]
    %v1125 = vld [vmem:[%s1122 + $0x10] sm:$0xff]
    %v1126 = vunpack.c.l.bf16 %v1123
    %v1127 = vunpack.c.l.bf16 %v1124
    %v1128 = vunpack.c.l.bf16 %v1125
    %v1129 = vunpack.c.h.bf16 %v1123
    %v1130 = vunpack.c.h.bf16 %v1124
    %v1131 = vunpack.c.h.bf16 %v1125
    %v1132 = vpack.c.bf16 %v1121, %v1120
    %1133 = vmatprep.subr.bf16.mxu0 %v609
    %1134 = vmatpush1.bf16.msra.mxu0 %v608
    %1135 = vmatprep.subr.bf16.mxu0 %v612
    %1136 = vmatpush1.bf16.msra.mxu0 %v611
    %1137 = vmatprep.subr.bf16.mxu0 %v615
    %1138 = vmatpush1.bf16.msra.mxu0 %v614
    %1139 = vmatprep.subr.bf16.mxu0 %v618
    %1140 = vmatpush1.bf16.msra.mxu0 %v617
    %1141 = vmatprep.subr.bf16.mxu0 %v621
    %1142 = vmatpush1.bf16.msra.mxu0 %v620
    %1143 = vmatprep.subr.bf16.mxu0 %v624
    %1144 = vmatpush1.bf16.msra.mxu0 %v623
    %1145 = vmatprep.subr.bf16.mxu0 %v627
    %1146 = vmatpush1.bf16.msra.mxu0 %v626
    %1147 = vmatprep.subr.bf16.mxu0 %v630
    %1148 = vmatpush1.bf16.msra.mxu0 %v629
    %1149 = vmatprep.subr.bf16.mxu0 0
    %1150 = vmatpush1.bf16.msra.mxu0 0
    %1151 = vmatprep.subr.bf16.mxu0 0
    %1152 = vmatpush1.bf16.msra.mxu0 0
    %1153 = vmatprep.subr.bf16.mxu0 0
    %1154 = vmatpush1.bf16.msra.mxu0 0
    %1155 = vmatprep.subr.bf16.mxu0 0
    %1156 = vmatpush1.bf16.msra.mxu0 0
    %1157 = vmatprep.subr.bf16.mxu0 0
    %1158 = vmatpush1.bf16.msra.mxu0 0
    %1159 = vmatprep.subr.bf16.mxu0 0
    %1160 = vmatpush1.bf16.msra.mxu0 0
    %1161 = vmatprep.subr.bf16.mxu0 0
    %1162 = vmatpush1.bf16.msra.mxu0 0
    %1163 = vmatprep.subr.bf16.mxu0 0
    %1164 = vmatpush1.bf16.msra.mxu0 0
    %1165 = vmatprep.mubr.bf16.mxu0 0
    %1166 = vmatmul.mubr.bf16.gmra.mrb[0].mxu0 %v1132
    %v1167 = vpop.f32.mrb[0].mxu0
    %v1168 = vadd.f32 0.0, %v1167
    %v1169 = vpop.f32.mrb[0].mxu0
    %v1170 = vadd.f32 0.0, %v1169
    %v1171 = vpop.f32.mrb[0].mxu0
    %v1172 = vadd.f32 0.0, %v1171
    %v1173 = vpop.f32.mrb[0].mxu0
    %v1174 = vadd.f32 0.0, %v1173
    %1175 = vdwg.mxu0
    %1176 = vmatprep.subr.bf16.mxu0 0
    %1177 = vmatpush1.bf16.msra.mxu0 %v610
    %1178 = vmatprep.subr.bf16.mxu0 0
    %1179 = vmatpush1.bf16.msra.mxu0 %v613
    %1180 = vmatprep.subr.bf16.mxu0 0
    %1181 = vmatpush1.bf16.msra.mxu0 %v616
    %1182 = vmatprep.subr.bf16.mxu0 0
    %1183 = vmatpush1.bf16.msra.mxu0 %v619
    %1184 = vmatprep.subr.bf16.mxu0 0
    %1185 = vmatpush1.bf16.msra.mxu0 %v622
    %1186 = vmatprep.subr.bf16.mxu0 0
    %1187 = vmatpush1.bf16.msra.mxu0 %v625
    %1188 = vmatprep.subr.bf16.mxu0 0
    %1189 = vmatpush1.bf16.msra.mxu0 %v628
    %1190 = vmatprep.subr.bf16.mxu0 0
    %1191 = vmatpush1.bf16.msra.mxu0 %v631
    %1192 = vmatprep.subr.bf16.mxu0 0
    %1193 = vmatpush1.bf16.msra.mxu0 0
    %1194 = vmatprep.subr.bf16.mxu0 0
    %1195 = vmatpush1.bf16.msra.mxu0 0
    %1196 = vmatprep.subr.bf16.mxu0 0
    %1197 = vmatpush1.bf16.msra.mxu0 0
    %1198 = vmatprep.subr.bf16.mxu0 0
    %1199 = vmatpush1.bf16.msra.mxu0 0
    %1200 = vmatprep.subr.bf16.mxu0 0
    %1201 = vmatpush1.bf16.msra.mxu0 0
    %1202 = vmatprep.subr.bf16.mxu0 0
    %1203 = vmatpush1.bf16.msra.mxu0 0
    %1204 = vmatprep.subr.bf16.mxu0 0
    %1205 = vmatpush1.bf16.msra.mxu0 0
    %1206 = vmatprep.subr.bf16.mxu0 0
    %1207 = vmatpush1.bf16.msra.mxu0 0
    %1208 = vmatprep.mubr.bf16.mxu0 0
    %1209 = vmatmul.mubr.bf16.gmra.mrb[0].mxu0 %v1132
    %v1210 = vpop.f32.mrb[0].mxu0
    %v1211 = vadd.f32 0.0, %v1210
    %v1212 = vpop.f32.mrb[0].mxu0
    %v1213 = vpop.f32.mrb[0].mxu0
    %v1214 = vadd.f32 0.0, %v1213
    %v1215 = vpop.f32.mrb[0].mxu0
    %1216 = vdwg.mxu0
    %v1217 = vadd.f32 %v1126, %v1168
    %v1218 = vadd.f32 %v1129, %v1172
    %v1219 = vxor.u32 %v1217, 2147483648
    %v1220 = vxor.u32 %v1218, 2147483648
    %v1221 = vmul.f32 %v1219, 1.442695
    %v1222 = vpow.pop %v1221
    %v1223 = vmul.f32 %v1220, 1.442695
    %v1224 = vpow.pop %v1223
    %v1225 = vadd.f32 %v1222, 1.0
    %v1226 = vadd.f32 %v1224, 1.0
    %v1227 = vrcp.pop %v1225
    %v1228 = vmul.f32 1.0, %v1227
    %v1229 = vrcp.pop %v1226
    %v1230 = vmul.f32 1.0, %v1229
    %v1231 = vadd.f32 %v1127, %v1170
    %v1232 = vadd.f32 %v1130, %v1174
    %v1233 = vxor.u32 %v1231, 2147483648
    %v1234 = vxor.u32 %v1232, 2147483648
    %v1235 = vmul.f32 %v1233, 1.442695
    %v1236 = vpow.pop %v1235
    %v1237 = vmul.f32 %v1234, 1.442695
    %v1238 = vpow.pop %v1237
    %v1239 = vadd.f32 %v1236, 1.0
    %v1240 = vadd.f32 %v1238, 1.0
    %v1241 = vrcp.pop %v1239
    %v1242 = vmul.f32 1.0, %v1241
    %v1243 = vrcp.pop %v1240
    %v1244 = vmul.f32 1.0, %v1243
    %v1245 = vadd.f32 %v1211, %v772
    %v1246 = vadd.f32 %v1214, %v772
    %v1247 = vmul.f32 %v1228, %v1245
    %v1248 = vmul.f32 %v1230, %v1246
    %v1249 = vadd.f32 %v1128, %v1247
    %v1250 = vadd.f32 %v1131, %v1248
    %v1251 = vtanh.pop %v1249
    %v1252 = vtanh.pop %v1250
    %v1253 = vsub.f32 1.0, %v1242
    %v1254 = vsub.f32 1.0, %v1244
    %v1255 = vmul.f32 %v1253, %v1251
    %v1256 = vmul.f32 %v1254, %v1252
    %v1257 = vmul.f32 %v1242, %v1120
    %v1258 = vmul.f32 %v1244, %v1121
    %v1259 = vadd.f32 %v1255, %v1257
    %v1260 = vadd.f32 %v1256, %v1258
    %vm1261 = vcmp.gt.s32.totalorder %v108, 3
    %vm1262 = vcmp.gt.s32.totalorder %v109, 3
    %v1263 = vsel %vm1261, 1, 0
    %v1264 = vsel %vm1262, 1, 0
    %1265 = vset.pattern.permute.xlu0 0
    %1266 = vperm.xlu0 %1265, %v1263
    %v1267 = vpop.permute.xlu0 %1266
    %1268 = vset.pattern.permute.xlu0 0
    %1269 = vperm.xlu0 %1268, %v1264
    %v1270 = vpop.permute.xlu0 %1269
    %vm1271 = vcmp.eq.s32.totalorder %v1267, 1
    %vm1272 = vcmp.eq.s32.totalorder %v1270, 1
    %v1273 = vsel %vm1271, %v1259, 0.0
    %v1274 = vsel %vm1272, %v1260, 0.0
    %s1275 = scalar_lea.vmem [#allocation2], 48
    %1276 = vst [vmem:[%s1275] sm:$0xff] %v1273
    %1277 = vst [vmem:[%s1275 + $0x8] sm:$0xff] %v1274
    %v1278 = vsel %vm1271, %v1259, %v1120
    %v1279 = vsel %vm1272, %v1260, %v1121
    %s1280 = scalar_lea.vmem [#allocation3], 96
    %v1281 = vld [vmem:[%s1280] sm:$0xff]
    %v1282 = vld [vmem:[%s1280 + $0x8] sm:$0xff]
    %v1283 = vld [vmem:[%s1280 + $0x10] sm:$0xff]
    %v1284 = vunpack.c.l.bf16 %v1281
    %v1285 = vunpack.c.l.bf16 %v1282
    %v1286 = vunpack.c.l.bf16 %v1283
    %v1287 = vunpack.c.h.bf16 %v1281
    %v1288 = vunpack.c.h.bf16 %v1282
    %v1289 = vunpack.c.h.bf16 %v1283
    %v1290 = vpack.c.bf16 %v1279, %v1278
    %1291 = vmatprep.subr.bf16.mxu0 %v609
    %1292 = vmatpush1.bf16.msra.mxu0 %v608
    %1293 = vmatprep.subr.bf16.mxu0 %v612
    %1294 = vmatpush1.bf16.msra.mxu0 %v611
    %1295 = vmatprep.subr.bf16.mxu0 %v615
    %1296 = vmatpush1.bf16.msra.mxu0 %v614
    %1297 = vmatprep.subr.bf16.mxu0 %v618
    %1298 = vmatpush1.bf16.msra.mxu0 %v617
    %1299 = vmatprep.subr.bf16.mxu0 %v621
    %1300 = vmatpush1.bf16.msra.mxu0 %v620
    %1301 = vmatprep.subr.bf16.mxu0 %v624
    %1302 = vmatpush1.bf16.msra.mxu0 %v623
    %1303 = vmatprep.subr.bf16.mxu0 %v627
    %1304 = vmatpush1.bf16.msra.mxu0 %v626
    %1305 = vmatprep.subr.bf16.mxu0 %v630
    %1306 = vmatpush1.bf16.msra.mxu0 %v629
    %1307 = vmatprep.subr.bf16.mxu0 0
    %1308 = vmatpush1.bf16.msra.mxu0 0
    %1309 = vmatprep.subr.bf16.mxu0 0
    %1310 = vmatpush1.bf16.msra.mxu0 0
    %1311 = vmatprep.subr.bf16.mxu0 0
    %1312 = vmatpush1.bf16.msra.mxu0 0
    %1313 = vmatprep.subr.bf16.mxu0 0
    %1314 = vmatpush1.bf16.msra.mxu0 0
    %1315 = vmatprep.subr.bf16.mxu0 0
    %1316 = vmatpush1.bf16.msra.mxu0 0
    %1317 = vmatprep.subr.bf16.mxu0 0
    %1318 = vmatpush1.bf16.msra.mxu0 0
    %1319 = vmatprep.subr.bf16.mxu0 0
    %1320 = vmatpush1.bf16.msra.mxu0 0
    %1321 = vmatprep.subr.bf16.mxu0 0
    %1322 = vmatpush1.bf16.msra.mxu0 0
    %1323 = vmatprep.mubr.bf16.mxu0 0
    %1324 = vmatmul.mubr.bf16.gmra.mrb[0].mxu0 %v1290
    %v1325 = vpop.f32.mrb[0].mxu0
    %v1326 = vadd.f32 0.0, %v1325
    %v1327 = vpop.f32.mrb[0].mxu0
    %v1328 = vadd.f32 0.0, %v1327
    %v1329 = vpop.f32.mrb[0].mxu0
    %v1330 = vadd.f32 0.0, %v1329
    %v1331 = vpop.f32.mrb[0].mxu0
    %v1332 = vadd.f32 0.0, %v1331
    %1333 = vdwg.mxu0
    %1334 = vmatprep.subr.bf16.mxu0 0
    %1335 = vmatpush1.bf16.msra.mxu0 %v610
    %1336 = vmatprep.subr.bf16.mxu0 0
    %1337 = vmatpush1.bf16.msra.mxu0 %v613
    %1338 = vmatprep.subr.bf16.mxu0 0
    %1339 = vmatpush1.bf16.msra.mxu0 %v616
    %1340 = vmatprep.subr.bf16.mxu0 0
    %1341 = vmatpush1.bf16.msra.mxu0 %v619
    %1342 = vmatprep.subr.bf16.mxu0 0
    %1343 = vmatpush1.bf16.msra.mxu0 %v622
    %1344 = vmatprep.subr.bf16.mxu0 0
    %1345 = vmatpush1.bf16.msra.mxu0 %v625
    %1346 = vmatprep.subr.bf16.mxu0 0
    %1347 = vmatpush1.bf16.msra.mxu0 %v628
    %1348 = vmatprep.subr.bf16.mxu0 0
    %1349 = vmatpush1.bf16.msra.mxu0 %v631
    %1350 = vmatprep.subr.bf16.mxu0 0
    %1351 = vmatpush1.bf16.msra.mxu0 0
    %1352 = vmatprep.subr.bf16.mxu0 0
    %1353 = vmatpush1.bf16.msra.mxu0 0
    %1354 = vmatprep.subr.bf16.mxu0 0
    %1355 = vmatpush1.bf16.msra.mxu0 0
    %1356 = vmatprep.subr.bf16.mxu0 0
    %1357 = vmatpush1.bf16.msra.mxu0 0
    %1358 = vmatprep.subr.bf16.mxu0 0
    %1359 = vmatpush1.bf16.msra.mxu0 0
    %1360 = vmatprep.subr.bf16.mxu0 0
    %1361 = vmatpush1.bf16.msra.mxu0 0
    %1362 = vmatprep.subr.bf16.mxu0 0
    %1363 = vmatpush1.bf16.msra.mxu0 0
    %1364 = vmatprep.subr.bf16.mxu0 0
    %1365 = vmatpush1.bf16.msra.mxu0 0
    %1366 = vmatprep.mubr.bf16.mxu0 0
    %1367 = vmatmul.mubr.bf16.gmra.mrb[0].mxu0 %v1290
    %v1368 = vpop.f32.mrb[0].mxu0
    %v1369 = vadd.f32 0.0, %v1368
    %v1370 = vpop.f32.mrb[0].mxu0
    %v1371 = vpop.f32.mrb[0].mxu0
    %v1372 = vadd.f32 0.0, %v1371
    %v1373 = vpop.f32.mrb[0].mxu0
    %1374 = vdwg.mxu0
    %v1375 = vadd.f32 %v1284, %v1326
    %v1376 = vadd.f32 %v1287, %v1330
    %v1377 = vxor.u32 %v1375, 2147483648
    %v1378 = vxor.u32 %v1376, 2147483648
    %v1379 = vmul.f32 %v1377, 1.442695
    %v1380 = vpow.pop %v1379
    %v1381 = vmul.f32 %v1378, 1.442695
    %v1382 = vpow.pop %v1381
    %v1383 = vadd.f32 %v1380, 1.0
    %v1384 = vadd.f32 %v1382, 1.0
    %v1385 = vrcp.pop %v1383
    %v1386 = vmul.f32 1.0, %v1385
    %v1387 = vrcp.pop %v1384
    %v1388 = vmul.f32 1.0, %v1387
    %v1389 = vadd.f32 %v1285, %v1328
    %v1390 = vadd.f32 %v1288, %v1332
    %v1391 = vxor.u32 %v1389, 2147483648
    %v1392 = vxor.u32 %v1390, 2147483648
    %v1393 = vmul.f32 %v1391, 1.442695
    %v1394 = vpow.pop %v1393
    %v1395 = vmul.f32 %v1392, 1.442695
    %v1396 = vpow.pop %v1395
    %v1397 = vadd.f32 %v1394, 1.0
    %v1398 = vadd.f32 %v1396, 1.0
    %v1399 = vrcp.pop %v1397
    %v1400 = vmul.f32 1.0, %v1399
    %v1401 = vrcp.pop %v1398
    %v1402 = vmul.f32 1.0, %v1401
    %v1403 = vadd.f32 %v1369, %v772
    %v1404 = vadd.f32 %v1372, %v772
    %v1405 = vmul.f32 %v1386, %v1403
    %v1406 = vmul.f32 %v1388, %v1404
    %v1407 = vadd.f32 %v1286, %v1405
    %v1408 = vadd.f32 %v1289, %v1406
    %v1409 = vtanh.pop %v1407
    %v1410 = vtanh.pop %v1408
    %v1411 = vsub.f32 1.0, %v1400
    %v1412 = vsub.f32 1.0, %v1402
    %v1413 = vmul.f32 %v1411, %v1409
    %v1414 = vmul.f32 %v1412, %v1410
    %v1415 = vmul.f32 %v1400, %v1278
    %v1416 = vmul.f32 %v1402, %v1279
    %v1417 = vadd.f32 %v1413, %v1415
    %v1418 = vadd.f32 %v1414, %v1416
    %vm1419 = vcmp.gt.s32.totalorder %v108, 4
    %vm1420 = vcmp.gt.s32.totalorder %v109, 4
    %v1421 = vsel %vm1419, 1, 0
    %v1422 = vsel %vm1420, 1, 0
    %1423 = vset.pattern.permute.xlu0 0
    %1424 = vperm.xlu0 %1423, %v1421
    %v1425 = vpop.permute.xlu0 %1424
    %1426 = vset.pattern.permute.xlu0 0
    %1427 = vperm.xlu0 %1426, %v1422
    %v1428 = vpop.permute.xlu0 %1427
    %vm1429 = vcmp.eq.s32.totalorder %v1425, 1
    %vm1430 = vcmp.eq.s32.totalorder %v1428, 1
    %v1431 = vsel %vm1429, %v1417, 0.0
    %v1432 = vsel %vm1430, %v1418, 0.0
    %s1433 = scalar_lea.vmem [#allocation2], 64
    %1434 = vst [vmem:[%s1433] sm:$0xff] %v1431
    %1435 = vst [vmem:[%s1433 + $0x8] sm:$0xff] %v1432
    %v1436 = vsel %vm1429, %v1417, %v1278
    %v1437 = vsel %vm1430, %v1418, %v1279
    %s1438 = scalar_lea.vmem [#allocation3], 120
    %v1439 = vld [vmem:[%s1438] sm:$0xff]
    %v1440 = vld [vmem:[%s1438 + $0x8] sm:$0xff]
    %v1441 = vld [vmem:[%s1438 + $0x10] sm:$0xff]
    %v1442 = vunpack.c.l.bf16 %v1439
    %v1443 = vunpack.c.l.bf16 %v1440
    %v1444 = vunpack.c.l.bf16 %v1441
    %v1445 = vunpack.c.h.bf16 %v1439
    %v1446 = vunpack.c.h.bf16 %v1440
    %v1447 = vunpack.c.h.bf16 %v1441
    %v1448 = vpack.c.bf16 %v1437, %v1436
    %1449 = vmatprep.subr.bf16.mxu0 %v609
    %1450 = vmatpush1.bf16.msra.mxu0 %v608
    %1451 = vmatprep.subr.bf16.mxu0 %v612
    %1452 = vmatpush1.bf16.msra.mxu0 %v611
    %1453 = vmatprep.subr.bf16.mxu0 %v615
    %1454 = vmatpush1.bf16.msra.mxu0 %v614
    %1455 = vmatprep.subr.bf16.mxu0 %v618
    %1456 = vmatpush1.bf16.msra.mxu0 %v617
    %1457 = vmatprep.subr.bf16.mxu0 %v621
    %1458 = vmatpush1.bf16.msra.mxu0 %v620
    %1459 = vmatprep.subr.bf16.mxu0 %v624
    %1460 = vmatpush1.bf16.msra.mxu0 %v623
    %1461 = vmatprep.subr.bf16.mxu0 %v627
    %1462 = vmatpush1.bf16.msra.mxu0 %v626
    %1463 = vmatprep.subr.bf16.mxu0 %v630
    %1464 = vmatpush1.bf16.msra.mxu0 %v629
    %1465 = vmatprep.subr.bf16.mxu0 0
    %1466 = vmatpush1.bf16.msra.mxu0 0
    %1467 = vmatprep.subr.bf16.mxu0 0
    %1468 = vmatpush1.bf16.msra.mxu0 0
    %1469 = vmatprep.subr.bf16.mxu0 0
    %1470 = vmatpush1.bf16.msra.mxu0 0
    %1471 = vmatprep.subr.bf16.mxu0 0
    %1472 = vmatpush1.bf16.msra.mxu0 0
    %1473 = vmatprep.subr.bf16.mxu0 0
    %1474 = vmatpush1.bf16.msra.mxu0 0
    %1475 = vmatprep.subr.bf16.mxu0 0
    %1476 = vmatpush1.bf16.msra.mxu0 0
    %1477 = vmatprep.subr.bf16.mxu0 0
    %1478 = vmatpush1.bf16.msra.mxu0 0
    %1479 = vmatprep.subr.bf16.mxu0 0
    %1480 = vmatpush1.bf16.msra.mxu0 0
    %1481 = vmatprep.mubr.bf16.mxu0 0
    %1482 = vmatmul.mubr.bf16.gmra.mrb[0].mxu0 %v1448
    %v1483 = vpop.f32.mrb[0].mxu0
    %v1484 = vadd.f32 0.0, %v1483
    %v1485 = vpop.f32.mrb[0].mxu0
    %v1486 = vadd.f32 0.0, %v1485
    %v1487 = vpop.f32.mrb[0].mxu0
    %v1488 = vadd.f32 0.0, %v1487
    %v1489 = vpop.f32.mrb[0].mxu0
    %v1490 = vadd.f32 0.0, %v1489
    %1491 = vdwg.mxu0
    %1492 = vmatprep.subr.bf16.mxu0 0
    %1493 = vmatpush1.bf16.msra.mxu0 %v610
    %1494 = vmatprep.subr.bf16.mxu0 0
    %1495 = vmatpush1.bf16.msra.mxu0 %v613
    %1496 = vmatprep.subr.bf16.mxu0 0
    %1497 = vmatpush1.bf16.msra.mxu0 %v616
    %1498 = vmatprep.subr.bf16.mxu0 0
    %1499 = vmatpush1.bf16.msra.mxu0 %v619
    %1500 = vmatprep.subr.bf16.mxu0 0
    %1501 = vmatpush1.bf16.msra.mxu0 %v622
    %1502 = vmatprep.subr.bf16.mxu0 0
    %1503 = vmatpush1.bf16.msra.mxu0 %v625
    %1504 = vmatprep.subr.bf16.mxu0 0
    %1505 = vmatpush1.bf16.msra.mxu0 %v628
    %1506 = vmatprep.subr.bf16.mxu0 0
    %1507 = vmatpush1.bf16.msra.mxu0 %v631
    %1508 = vmatprep.subr.bf16.mxu0 0
    %1509 = vmatpush1.bf16.msra.mxu0 0
    %1510 = vmatprep.subr.bf16.mxu0 0
    %1511 = vmatpush1.bf16.msra.mxu0 0
    %1512 = vmatprep.subr.bf16.mxu0 0
    %1513 = vmatpush1.bf16.msra.mxu0 0
    %1514 = vmatprep.subr.bf16.mxu0 0
    %1515 = vmatpush1.bf16.msra.mxu0 0
    %1516 = vmatprep.subr.bf16.mxu0 0
    %1517 = vmatpush1.bf16.msra.mxu0 0
    %1518 = vmatprep.subr.bf16.mxu0 0
    %1519 = vmatpush1.bf16.msra.mxu0 0
    %1520 = vmatprep.subr.bf16.mxu0 0
    %1521 = vmatpush1.bf16.msra.mxu0 0
    %1522 = vmatprep.subr.bf16.mxu0 0
    %1523 = vmatpush1.bf16.msra.mxu0 0
    %1524 = vmatprep.mubr.bf16.mxu0 0
    %1525 = vmatmul.mubr.bf16.gmra.mrb[0].mxu0 %v1448
    %v1526 = vpop.f32.mrb[0].mxu0
    %v1527 = vadd.f32 0.0, %v1526
    %v1528 = vpop.f32.mrb[0].mxu0
    %v1529 = vpop.f32.mrb[0].mxu0
    %v1530 = vadd.f32 0.0, %v1529
    %v1531 = vpop.f32.mrb[0].mxu0
    %1532 = vdwg.mxu0
    %v1533 = vadd.f32 %v1442, %v1484
    %v1534 = vadd.f32 %v1445, %v1488
    %v1535 = vxor.u32 %v1533, 2147483648
    %v1536 = vxor.u32 %v1534, 2147483648
    %v1537 = vmul.f32 %v1535, 1.442695
    %v1538 = vpow.pop %v1537
    %v1539 = vmul.f32 %v1536, 1.442695
    %v1540 = vpow.pop %v1539
    %v1541 = vadd.f32 %v1538, 1.0
    %v1542 = vadd.f32 %v1540, 1.0
    %v1543 = vrcp.pop %v1541
    %v1544 = vmul.f32 1.0, %v1543
    %v1545 = vrcp.pop %v1542
    %v1546 = vmul.f32 1.0, %v1545
    %v1547 = vadd.f32 %v1443, %v1486
    %v1548 = vadd.f32 %v1446, %v1490
    %v1549 = vxor.u32 %v1547, 2147483648
    %v1550 = vxor.u32 %v1548, 2147483648
    %v1551 = vmul.f32 %v1549, 1.442695
    %v1552 = vpow.pop %v1551
    %v1553 = vmul.f32 %v1550, 1.442695
    %v1554 = vpow.pop %v1553
    %v1555 = vadd.f32 %v1552, 1.0
    %v1556 = vadd.f32 %v1554, 1.0
    %v1557 = vrcp.pop %v1555
    %v1558 = vmul.f32 1.0, %v1557
    %v1559 = vrcp.pop %v1556
    %v1560 = vmul.f32 1.0, %v1559
    %v1561 = vadd.f32 %v1527, %v772
    %v1562 = vadd.f32 %v1530, %v772
    %v1563 = vmul.f32 %v1544, %v1561
    %v1564 = vmul.f32 %v1546, %v1562
    %v1565 = vadd.f32 %v1444, %v1563
    %v1566 = vadd.f32 %v1447, %v1564
    %v1567 = vtanh.pop %v1565
    %v1568 = vtanh.pop %v1566
    %v1569 = vsub.f32 1.0, %v1558
    %v1570 = vsub.f32 1.0, %v1560
    %v1571 = vmul.f32 %v1569, %v1567
    %v1572 = vmul.f32 %v1570, %v1568
    %v1573 = vmul.f32 %v1558, %v1436
    %v1574 = vmul.f32 %v1560, %v1437
    %v1575 = vadd.f32 %v1571, %v1573
    %v1576 = vadd.f32 %v1572, %v1574
    %vm1577 = vcmp.gt.s32.totalorder %v108, 5
    %vm1578 = vcmp.gt.s32.totalorder %v109, 5
    %v1579 = vsel %vm1577, 1, 0
    %v1580 = vsel %vm1578, 1, 0
    %1581 = vset.pattern.permute.xlu0 0
    %1582 = vperm.xlu0 %1581, %v1579
    %v1583 = vpop.permute.xlu0 %1582
    %1584 = vset.pattern.permute.xlu0 0
    %1585 = vperm.xlu0 %1584, %v1580
    %v1586 = vpop.permute.xlu0 %1585
    %vm1587 = vcmp.eq.s32.totalorder %v1583, 1
    %vm1588 = vcmp.eq.s32.totalorder %v1586, 1
    %v1589 = vsel %vm1587, %v1575, 0.0
    %v1590 = vsel %vm1588, %v1576, 0.0
    %s1591 = scalar_lea.vmem [#allocation2], 80
    %1592 = vst [vmem:[%s1591] sm:$0xff] %v1589
    %1593 = vst [vmem:[%s1591 + $0x8] sm:$0xff] %v1590
    %v1594 = vsel %vm1587, %v1575, %v1436
    %v1595 = vsel %vm1588, %v1576, %v1437
    %s1596 = scalar_lea.vmem [#allocation3], 144
    %v1597 = vld [vmem:[%s1596] sm:$0xff]
    %v1598 = vld [vmem:[%s1596 + $0x8] sm:$0xff]
    %v1599 = vld [vmem:[%s1596 + $0x10] sm:$0xff]
    %v1600 = vunpack.c.l.bf16 %v1597
    %v1601 = vunpack.c.l.bf16 %v1598
    %v1602 = vunpack.c.l.bf16 %v1599
    %v1603 = vunpack.c.h.bf16 %v1597
    %v1604 = vunpack.c.h.bf16 %v1598
    %v1605 = vunpack.c.h.bf16 %v1599
    %v1606 = vpack.c.bf16 %v1595, %v1594
    %1607 = vmatprep.subr.bf16.mxu0 %v609
    %1608 = vmatpush1.bf16.msra.mxu0 %v608
    %1609 = vmatprep.subr.bf16.mxu0 %v612
    %1610 = vmatpush1.bf16.msra.mxu0 %v611
    %1611 = vmatprep.subr.bf16.mxu0 %v615
    %1612 = vmatpush1.bf16.msra.mxu0 %v614
    %1613 = vmatprep.subr.bf16.mxu0 %v618
    %1614 = vmatpush1.bf16.msra.mxu0 %v617
    %1615 = vmatprep.subr.bf16.mxu0 %v621
    %1616 = vmatpush1.bf16.msra.mxu0 %v620
    %1617 = vmatprep.subr.bf16.mxu0 %v624
    %1618 = vmatpush1.bf16.msra.mxu0 %v623
    %1619 = vmatprep.subr.bf16.mxu0 %v627
    %1620 = vmatpush1.bf16.msra.mxu0 %v626
    %1621 = vmatprep.subr.bf16.mxu0 %v630
    %1622 = vmatpush1.bf16.msra.mxu0 %v629
    %1623 = vmatprep.subr.bf16.mxu0 0
    %1624 = vmatpush1.bf16.msra.mxu0 0
    %1625 = vmatprep.subr.bf16.mxu0 0
    %1626 = vmatpush1.bf16.msra.mxu0 0
    %1627 = vmatprep.subr.bf16.mxu0 0
    %1628 = vmatpush1.bf16.msra.mxu0 0
    %1629 = vmatprep.subr.bf16.mxu0 0
    %1630 = vmatpush1.bf16.msra.mxu0 0
    %1631 = vmatprep.subr.bf16.mxu0 0
    %1632 = vmatpush1.bf16.msra.mxu0 0
    %1633 = vmatprep.subr.bf16.mxu0 0
    %1634 = vmatpush1.bf16.msra.mxu0 0
    %1635 = vmatprep.subr.bf16.mxu0 0
    %1636 = vmatpush1.bf16.msra.mxu0 0
    %1637 = vmatprep.subr.bf16.mxu0 0
    %1638 = vmatpush1.bf16.msra.mxu0 0
    %1639 = vmatprep.mubr.bf16.mxu0 0
    %1640 = vmatmul.mubr.bf16.gmra.mrb[0].mxu0 %v1606
    %v1641 = vpop.f32.mrb[0].mxu0
    %v1642 = vadd.f32 0.0, %v1641
    %v1643 = vpop.f32.mrb[0].mxu0
    %v1644 = vadd.f32 0.0, %v1643
    %v1645 = vpop.f32.mrb[0].mxu0
    %v1646 = vadd.f32 0.0, %v1645
    %v1647 = vpop.f32.mrb[0].mxu0
    %v1648 = vadd.f32 0.0, %v1647
    %1649 = vdwg.mxu0
    %1650 = vmatprep.subr.bf16.mxu0 0
    %1651 = vmatpush1.bf16.msra.mxu0 %v610
    %1652 = vmatprep.subr.bf16.mxu0 0
    %1653 = vmatpush1.bf16.msra.mxu0 %v613
    %1654 = vmatprep.subr.bf16.mxu0 0
    %1655 = vmatpush1.bf16.msra.mxu0 %v616
    %1656 = vmatprep.subr.bf16.mxu0 0
    %1657 = vmatpush1.bf16.msra.mxu0 %v619
    %1658 = vmatprep.subr.bf16.mxu0 0
    %1659 = vmatpush1.bf16.msra.mxu0 %v622
    %1660 = vmatprep.subr.bf16.mxu0 0
    %1661 = vmatpush1.bf16.msra.mxu0 %v625
    %1662 = vmatprep.subr.bf16.mxu0 0
    %1663 = vmatpush1.bf16.msra.mxu0 %v628
    %1664 = vmatprep.subr.bf16.mxu0 0
    %1665 = vmatpush1.bf16.msra.mxu0 %v631
    %1666 = vmatprep.subr.bf16.mxu0 0
    %1667 = vmatpush1.bf16.msra.mxu0 0
    %1668 = vmatprep.subr.bf16.mxu0 0
    %1669 = vmatpush1.bf16.msra.mxu0 0
    %1670 = vmatprep.subr.bf16.mxu0 0
    %1671 = vmatpush1.bf16.msra.mxu0 0
    %1672 = vmatprep.subr.bf16.mxu0 0
    %1673 = vmatpush1.bf16.msra.mxu0 0
    %1674 = vmatprep.subr.bf16.mxu0 0
    %1675 = vmatpush1.bf16.msra.mxu0 0
    %1676 = vmatprep.subr.bf16.mxu0 0
    %1677 = vmatpush1.bf16.msra.mxu0 0
    %1678 = vmatprep.subr.bf16.mxu0 0
    %1679 = vmatpush1.bf16.msra.mxu0 0
    %1680 = vmatprep.subr.bf16.mxu0 0
    %1681 = vmatpush1.bf16.msra.mxu0 0
    %1682 = vmatprep.mubr.bf16.mxu0 0
    %1683 = vmatmul.mubr.bf16.gmra.mrb[0].mxu0 %v1606
    %v1684 = vpop.f32.mrb[0].mxu0
    %v1685 = vadd.f32 0.0, %v1684
    %v1686 = vpop.f32.mrb[0].mxu0
    %v1687 = vpop.f32.mrb[0].mxu0
    %v1688 = vadd.f32 0.0, %v1687
    %v1689 = vpop.f32.mrb[0].mxu0
    %1690 = vdwg.mxu0
    %v1691 = vadd.f32 %v1600, %v1642
    %v1692 = vadd.f32 %v1603, %v1646
    %v1693 = vxor.u32 %v1691, 2147483648
    %v1694 = vxor.u32 %v1692, 2147483648
    %v1695 = vmul.f32 %v1693, 1.442695
    %v1696 = vpow.pop %v1695
    %v1697 = vmul.f32 %v1694, 1.442695
    %v1698 = vpow.pop %v1697
    %v1699 = vadd.f32 %v1696, 1.0
    %v1700 = vadd.f32 %v1698, 1.0
    %v1701 = vrcp.pop %v1699
    %v1702 = vmul.f32 1.0, %v1701
    %v1703 = vrcp.pop %v1700
    %v1704 = vmul.f32 1.0, %v1703
    %v1705 = vadd.f32 %v1601, %v1644
    %v1706 = vadd.f32 %v1604, %v1648
    %v1707 = vxor.u32 %v1705, 2147483648
    %v1708 = vxor.u32 %v1706, 2147483648
    %v1709 = vmul.f32 %v1707, 1.442695
    %v1710 = vpow.pop %v1709
    %v1711 = vmul.f32 %v1708, 1.442695
    %v1712 = vpow.pop %v1711
    %v1713 = vadd.f32 %v1710, 1.0
    %v1714 = vadd.f32 %v1712, 1.0
    %v1715 = vrcp.pop %v1713
    %v1716 = vmul.f32 1.0, %v1715
    %v1717 = vrcp.pop %v1714
    %v1718 = vmul.f32 1.0, %v1717
    %v1719 = vadd.f32 %v1685, %v772
    %v1720 = vadd.f32 %v1688, %v772
    %v1721 = vmul.f32 %v1702, %v1719
    %v1722 = vmul.f32 %v1704, %v1720
    %v1723 = vadd.f32 %v1602, %v1721
    %v1724 = vadd.f32 %v1605, %v1722
    %v1725 = vtanh.pop %v1723
    %v1726 = vtanh.pop %v1724
    %v1727 = vsub.f32 1.0, %v1716
    %v1728 = vsub.f32 1.0, %v1718
    %v1729 = vmul.f32 %v1727, %v1725
    %v1730 = vmul.f32 %v1728, %v1726
    %v1731 = vmul.f32 %v1716, %v1594
    %v1732 = vmul.f32 %v1718, %v1595
    %v1733 = vadd.f32 %v1729, %v1731
    %v1734 = vadd.f32 %v1730, %v1732
    %vm1735 = vcmp.gt.s32.totalorder %v108, 6
    %vm1736 = vcmp.gt.s32.totalorder %v109, 6
    %v1737 = vsel %vm1735, 1, 0
    %v1738 = vsel %vm1736, 1, 0
    %1739 = vset.pattern.permute.xlu0 0
    %1740 = vperm.xlu0 %1739, %v1737
    %v1741 = vpop.permute.xlu0 %1740
    %1742 = vset.pattern.permute.xlu0 0
    %1743 = vperm.xlu0 %1742, %v1738
    %v1744 = vpop.permute.xlu0 %1743
    %vm1745 = vcmp.eq.s32.totalorder %v1741, 1
    %vm1746 = vcmp.eq.s32.totalorder %v1744, 1
    %v1747 = vsel %vm1745, %v1733, 0.0
    %v1748 = vsel %vm1746, %v1734, 0.0
    %s1749 = scalar_lea.vmem [#allocation2], 96
    %1750 = vst [vmem:[%s1749] sm:$0xff] %v1747
    %1751 = vst [vmem:[%s1749 + $0x8] sm:$0xff] %v1748
    %v1752 = vsel %vm1745, %v1733, %v1594
    %v1753 = vsel %vm1746, %v1734, %v1595
    %s1754 = scalar_lea.vmem [#allocation3], 168
    %v1755 = vld [vmem:[%s1754] sm:$0xff]
    %v1756 = vld [vmem:[%s1754 + $0x8] sm:$0xff]
    %v1757 = vld [vmem:[%s1754 + $0x10] sm:$0xff]
    %v1758 = vunpack.c.l.bf16 %v1755
    %v1759 = vunpack.c.l.bf16 %v1756
    %v1760 = vunpack.c.l.bf16 %v1757
    %v1761 = vunpack.c.h.bf16 %v1755
    %v1762 = vunpack.c.h.bf16 %v1756
    %v1763 = vunpack.c.h.bf16 %v1757
    %v1764 = vpack.c.bf16 %v1753, %v1752
    %1765 = vmatprep.subr.bf16.mxu0 %v609
    %1766 = vmatpush1.bf16.msra.mxu0 %v608
    %1767 = vmatprep.subr.bf16.mxu0 %v612
    %1768 = vmatpush1.bf16.msra.mxu0 %v611
    %1769 = vmatprep.subr.bf16.mxu0 %v615
    %1770 = vmatpush1.bf16.msra.mxu0 %v614
    %1771 = vmatprep.subr.bf16.mxu0 %v618
    %1772 = vmatpush1.bf16.msra.mxu0 %v617
    %1773 = vmatprep.subr.bf16.mxu0 %v621
    %1774 = vmatpush1.bf16.msra.mxu0 %v620
    %1775 = vmatprep.subr.bf16.mxu0 %v624
    %1776 = vmatpush1.bf16.msra.mxu0 %v623
    %1777 = vmatprep.subr.bf16.mxu0 %v627
    %1778 = vmatpush1.bf16.msra.mxu0 %v626
    %1779 = vmatprep.subr.bf16.mxu0 %v630
    %1780 = vmatpush1.bf16.msra.mxu0 %v629
    %1781 = vmatprep.subr.bf16.mxu0 0
    %1782 = vmatpush1.bf16.msra.mxu0 0
    %1783 = vmatprep.subr.bf16.mxu0 0
    %1784 = vmatpush1.bf16.msra.mxu0 0
    %1785 = vmatprep.subr.bf16.mxu0 0
    %1786 = vmatpush1.bf16.msra.mxu0 0
    %1787 = vmatprep.subr.bf16.mxu0 0
    %1788 = vmatpush1.bf16.msra.mxu0 0
    %1789 = vmatprep.subr.bf16.mxu0 0
    %1790 = vmatpush1.bf16.msra.mxu0 0
    %1791 = vmatprep.subr.bf16.mxu0 0
    %1792 = vmatpush1.bf16.msra.mxu0 0
    %1793 = vmatprep.subr.bf16.mxu0 0
    %1794 = vmatpush1.bf16.msra.mxu0 0
    %1795 = vmatprep.subr.bf16.mxu0 0
    %1796 = vmatpush1.bf16.msra.mxu0 0
    %1797 = vmatprep.mubr.bf16.mxu0 0
    %1798 = vmatmul.mubr.bf16.gmra.mrb[0].mxu0 %v1764
    %v1799 = vpop.f32.mrb[0].mxu0
    %v1800 = vadd.f32 0.0, %v1799
    %v1801 = vpop.f32.mrb[0].mxu0
    %v1802 = vadd.f32 0.0, %v1801
    %v1803 = vpop.f32.mrb[0].mxu0
    %v1804 = vadd.f32 0.0, %v1803
    %v1805 = vpop.f32.mrb[0].mxu0
    %v1806 = vadd.f32 0.0, %v1805
    %1807 = vdwg.mxu0
    %1808 = vmatprep.subr.bf16.mxu0 0
    %1809 = vmatpush1.bf16.msra.mxu0 %v610
    %1810 = vmatprep.subr.bf16.mxu0 0
    %1811 = vmatpush1.bf16.msra.mxu0 %v613
    %1812 = vmatprep.subr.bf16.mxu0 0
    %1813 = vmatpush1.bf16.msra.mxu0 %v616
    %1814 = vmatprep.subr.bf16.mxu0 0
    %1815 = vmatpush1.bf16.msra.mxu0 %v619
    %1816 = vmatprep.subr.bf16.mxu0 0
    %1817 = vmatpush1.bf16.msra.mxu0 %v622
    %1818 = vmatprep.subr.bf16.mxu0 0
    %1819 = vmatpush1.bf16.msra.mxu0 %v625
    %1820 = vmatprep.subr.bf16.mxu0 0
    %1821 = vmatpush1.bf16.msra.mxu0 %v628
    %1822 = vmatprep.subr.bf16.mxu0 0
    %1823 = vmatpush1.bf16.msra.mxu0 %v631
    %1824 = vmatprep.subr.bf16.mxu0 0
    %1825 = vmatpush1.bf16.msra.mxu0 0
    %1826 = vmatprep.subr.bf16.mxu0 0
    %1827 = vmatpush1.bf16.msra.mxu0 0
    %1828 = vmatprep.subr.bf16.mxu0 0
    %1829 = vmatpush1.bf16.msra.mxu0 0
    %1830 = vmatprep.subr.bf16.mxu0 0
    %1831 = vmatpush1.bf16.msra.mxu0 0
    %1832 = vmatprep.subr.bf16.mxu0 0
    %1833 = vmatpush1.bf16.msra.mxu0 0
    %1834 = vmatprep.subr.bf16.mxu0 0
    %1835 = vmatpush1.bf16.msra.mxu0 0
    %1836 = vmatprep.subr.bf16.mxu0 0
    %1837 = vmatpush1.bf16.msra.mxu0 0
    %1838 = vmatprep.subr.bf16.mxu0 0
    %1839 = vmatpush1.bf16.msra.mxu0 0
    %1840 = vmatprep.mubr.bf16.mxu0 0
    %1841 = vmatmul.mubr.bf16.gmra.mrb[0].mxu0 %v1764
    %v1842 = vpop.f32.mrb[0].mxu0
    %v1843 = vadd.f32 0.0, %v1842
    %v1844 = vpop.f32.mrb[0].mxu0
    %v1845 = vpop.f32.mrb[0].mxu0
    %v1846 = vadd.f32 0.0, %v1845
    %v1847 = vpop.f32.mrb[0].mxu0
    %1848 = vdwg.mxu0
    %v1849 = vadd.f32 %v1758, %v1800
    %v1850 = vadd.f32 %v1761, %v1804
    %v1851 = vxor.u32 %v1849, 2147483648
    %v1852 = vxor.u32 %v1850, 2147483648
    %v1853 = vmul.f32 %v1851, 1.442695
    %v1854 = vpow.pop %v1853
    %v1855 = vmul.f32 %v1852, 1.442695
    %v1856 = vpow.pop %v1855
    %v1857 = vadd.f32 %v1854, 1.0
    %v1858 = vadd.f32 %v1856, 1.0
    %v1859 = vrcp.pop %v1857
    %v1860 = vmul.f32 1.0, %v1859
    %v1861 = vrcp.pop %v1858
    %v1862 = vmul.f32 1.0, %v1861
    %v1863 = vadd.f32 %v1759, %v1802
    %v1864 = vadd.f32 %v1762, %v1806
    %v1865 = vxor.u32 %v1863, 2147483648
    %v1866 = vxor.u32 %v1864, 2147483648
    %v1867 = vmul.f32 %v1865, 1.442695
    %v1868 = vpow.pop %v1867
    %v1869 = vmul.f32 %v1866, 1.442695
    %v1870 = vpow.pop %v1869
    %v1871 = vadd.f32 %v1868, 1.0
    %v1872 = vadd.f32 %v1870, 1.0
    %v1873 = vrcp.pop %v1871
    %v1874 = vmul.f32 1.0, %v1873
    %v1875 = vrcp.pop %v1872
    %v1876 = vmul.f32 1.0, %v1875
    %v1877 = vadd.f32 %v1843, %v772
    %v1878 = vadd.f32 %v1846, %v772
    %v1879 = vmul.f32 %v1860, %v1877
    %v1880 = vmul.f32 %v1862, %v1878
    %v1881 = vadd.f32 %v1760, %v1879
    %v1882 = vadd.f32 %v1763, %v1880
    %v1883 = vtanh.pop %v1881
    %v1884 = vtanh.pop %v1882
    %v1885 = vsub.f32 1.0, %v1874
    %v1886 = vsub.f32 1.0, %v1876
    %v1887 = vmul.f32 %v1885, %v1883
    %v1888 = vmul.f32 %v1886, %v1884
    %v1889 = vmul.f32 %v1874, %v1752
    %v1890 = vmul.f32 %v1876, %v1753
    %v1891 = vadd.f32 %v1887, %v1889
    %v1892 = vadd.f32 %v1888, %v1890
    %vm1893 = vcmp.gt.s32.totalorder %v108, 7
    %vm1894 = vcmp.gt.s32.totalorder %v109, 7
    %v1895 = vsel %vm1893, 1, 0
    %v1896 = vsel %vm1894, 1, 0
    %1897 = vset.pattern.permute.xlu0 0
    %1898 = vperm.xlu0 %1897, %v1895
    %v1899 = vpop.permute.xlu0 %1898
    %1900 = vset.pattern.permute.xlu0 0
    %1901 = vperm.xlu0 %1900, %v1896
    %v1902 = vpop.permute.xlu0 %1901
    %vm1903 = vcmp.eq.s32.totalorder %v1899, 1
    %vm1904 = vcmp.eq.s32.totalorder %v1902, 1
    %v1905 = vsel %vm1903, %v1891, 0.0
    %v1906 = vsel %vm1904, %v1892, 0.0
    %s1907 = scalar_lea.vmem [#allocation2], 112
    %1908 = vst [vmem:[%s1907] sm:$0xff] %v1905
    %1909 = vst [vmem:[%s1907 + $0x8] sm:$0xff] %v1906
    %v1910 = vld [vmem:[#allocation2] sm:$0xff]
    %v1911 = vld [vmem:[#allocation2 + $0x8] sm:$0xff]
    %v1912 = vld [vmem:[#allocation2 + $0x10] sm:$0xff]
    %v1913 = vld [vmem:[#allocation2 + $0x18] sm:$0xff]
    %v1914 = vld [vmem:[#allocation2 + $0x20] sm:$0xff]
    %v1915 = vld [vmem:[#allocation2 + $0x28] sm:$0xff]
    %v1916 = vld [vmem:[#allocation2 + $0x30] sm:$0xff]
    %v1917 = vld [vmem:[#allocation2 + $0x38] sm:$0xff]
    %v1918 = vld [vmem:[#allocation2 + $0x40] sm:$0xff]
    %v1919 = vld [vmem:[#allocation2 + $0x48] sm:$0xff]
    %v1920 = vld [vmem:[#allocation2 + $0x50] sm:$0xff]
    %v1921 = vld [vmem:[#allocation2 + $0x58] sm:$0xff]
    %v1922 = vld [vmem:[#allocation2 + $0x60] sm:$0xff]
    %v1923 = vld [vmem:[#allocation2 + $0x68] sm:$0xff]
    %v1924 = vld [vmem:[#allocation2 + $0x70] sm:$0xff]
    %v1925 = vld [vmem:[#allocation2 + $0x78] sm:$0xff]
    %v1926 = vld [vmem:[#allocation7] sm:$0xff]
    %v1927 = vld [vmem:[#allocation7 + $0x8] sm:$0xff]
    %v1928 = vmul.f32 %v1910, %v1926
    %v1929 = vmul.f32 %v1911, %v1927
    %v1930 = vmul.f32 %v1912, %v1926
    %v1931 = vmul.f32 %v1913, %v1927
    %v1932 = vmul.f32 %v1914, %v1926
    %v1933 = vmul.f32 %v1915, %v1927
    %v1934 = vmul.f32 %v1916, %v1926
    %v1935 = vmul.f32 %v1917, %v1927
    %v1936 = vmul.f32 %v1918, %v1926
    %v1937 = vmul.f32 %v1919, %v1927
    %v1938 = vmul.f32 %v1920, %v1926
    %v1939 = vmul.f32 %v1921, %v1927
    %v1940 = vmul.f32 %v1922, %v1926
    %v1941 = vmul.f32 %v1923, %v1927
    %v1942 = vmul.f32 %v1924, %v1926
    %v1943 = vmul.f32 %v1925, %v1927
    %1944 = vadd.xlane.f32.xlu0 %v1928
    %v1945 = vpop.xlane.xlu0 %1944
    %1946 = vadd.xlane.f32.xlu0 %v1929
    %v1947 = vpop.xlane.xlu0 %1946
    %1948 = vadd.xlane.f32.xlu0 %v1930
    %v1949 = vpop.xlane.xlu0 %1948
    %1950 = vadd.xlane.f32.xlu0 %v1931
    %v1951 = vpop.xlane.xlu0 %1950
    %1952 = vadd.xlane.f32.xlu0 %v1932
    %v1953 = vpop.xlane.xlu0 %1952
    %1954 = vadd.xlane.f32.xlu0 %v1933
    %v1955 = vpop.xlane.xlu0 %1954
    %1956 = vadd.xlane.f32.xlu0 %v1934
    %v1957 = vpop.xlane.xlu0 %1956
    %1958 = vadd.xlane.f32.xlu0 %v1935
    %v1959 = vpop.xlane.xlu0 %1958
    %1960 = vadd.xlane.f32.xlu0 %v1936
    %v1961 = vpop.xlane.xlu0 %1960
    %1962 = vadd.xlane.f32.xlu0 %v1937
    %v1963 = vpop.xlane.xlu0 %1962
    %1964 = vadd.xlane.f32.xlu0 %v1938
    %v1965 = vpop.xlane.xlu0 %1964
    %1966 = vadd.xlane.f32.xlu0 %v1939
    %v1967 = vpop.xlane.xlu0 %1966
    %1968 = vadd.xlane.f32.xlu0 %v1940
    %v1969 = vpop.xlane.xlu0 %1968
    %1970 = vadd.xlane.f32.xlu0 %v1941
    %v1971 = vpop.xlane.xlu0 %1970
    %1972 = vadd.xlane.f32.xlu0 %v1942
    %v1973 = vpop.xlane.xlu0 %1972
    %1974 = vadd.xlane.f32.xlu0 %v1943
    %v1975 = vpop.xlane.xlu0 %1974
    %v1976 = vmax.f32 %v1945, %v1953
    %v1977 = vmax.f32 %v1949, %v1957
    %v1978 = vmax.f32 %v1976, %v1961
    %v1979 = vmax.f32 %v1977, %v1965
    %v1980 = vmax.f32 %v1978, %v1969
    %v1981 = vmax.f32 %v1979, %v1973
    %v1982 = vmax.f32 %v1980, %v1981
    %v1983 = vmax.f32 %v1947, %v1955
    %v1984 = vmax.f32 %v1951, %v1959
    %v1985 = vmax.f32 %v1983, %v1963
    %v1986 = vmax.f32 %v1984, %v1967
    %v1987 = vmax.f32 %v1985, %v1971
    %v1988 = vmax.f32 %v1986, %v1975
    %v1989 = vmax.f32 %v1987, %v1988
    %v1990 = vsub.f32 %v1945, %v1982
    %v1991 = vsub.f32 %v1947, %v1989
    %v1992 = vsub.f32 %v1949, %v1982
    %v1993 = vsub.f32 %v1951, %v1989
    %v1994 = vsub.f32 %v1953, %v1982
    %v1995 = vsub.f32 %v1955, %v1989
    %v1996 = vsub.f32 %v1957, %v1982
    %v1997 = vsub.f32 %v1959, %v1989
    %v1998 = vsub.f32 %v1961, %v1982
    %v1999 = vsub.f32 %v1963, %v1989
    %v2000 = vsub.f32 %v1965, %v1982
    %v2001 = vsub.f32 %v1967, %v1989
    %v2002 = vsub.f32 %v1969, %v1982
    %v2003 = vsub.f32 %v1971, %v1989
    %v2004 = vsub.f32 %v1973, %v1982
    %v2005 = vsub.f32 %v1975, %v1989
    %v2006 = vmul.f32 %v1990, 1.442695
    %v2007 = vpow.pop %v2006
    %v2008 = vmul.f32 %v1991, 1.442695
    %v2009 = vpow.pop %v2008
    %v2010 = vmul.f32 %v1992, 1.442695
    %v2011 = vpow.pop %v2010
    %v2012 = vmul.f32 %v1993, 1.442695
    %v2013 = vpow.pop %v2012
    %v2014 = vmul.f32 %v1994, 1.442695
    %v2015 = vpow.pop %v2014
    %v2016 = vmul.f32 %v1995, 1.442695
    %v2017 = vpow.pop %v2016
    %v2018 = vmul.f32 %v1996, 1.442695
    %v2019 = vpow.pop %v2018
    %v2020 = vmul.f32 %v1997, 1.442695
    %v2021 = vpow.pop %v2020
    %v2022 = vmul.f32 %v1998, 1.442695
    %v2023 = vpow.pop %v2022
    %v2024 = vmul.f32 %v1999, 1.442695
    %v2025 = vpow.pop %v2024
    %v2026 = vmul.f32 %v2000, 1.442695
    %v2027 = vpow.pop %v2026
    %v2028 = vmul.f32 %v2001, 1.442695
    %v2029 = vpow.pop %v2028
    %v2030 = vmul.f32 %v2002, 1.442695
    %v2031 = vpow.pop %v2030
    %v2032 = vmul.f32 %v2003, 1.442695
    %v2033 = vpow.pop %v2032
    %v2034 = vmul.f32 %v2004, 1.442695
    %v2035 = vpow.pop %v2034
    %v2036 = vmul.f32 %v2005, 1.442695
    %v2037 = vpow.pop %v2036
    %v2038 = vadd.f32 %v2007, %v2011
    %v2039 = vadd.f32 %v2038, %v2015
    %v2040 = vadd.f32 %v2039, %v2019
    %v2041 = vadd.f32 %v2040, %v2023
    %v2042 = vadd.f32 %v2041, %v2027
    %v2043 = vadd.f32 %v2042, %v2031
    %v2044 = vadd.f32 %v2043, %v2035
    %v2045 = vadd.f32 %v2009, %v2013
    %v2046 = vadd.f32 %v2045, %v2017
    %v2047 = vadd.f32 %v2046, %v2021
    %v2048 = vadd.f32 %v2047, %v2025
    %v2049 = vadd.f32 %v2048, %v2029
    %v2050 = vadd.f32 %v2049, %v2033
    %v2051 = vadd.f32 %v2050, %v2037
    %v2052 = vrcp.pop %v2044
    %v2053 = vrcp.pop %v2051
    %v2054 = vmul.f32 %v2007, %v2052
    %v2055 = vmul.f32 %v2009, %v2053
    %v2056 = vmul.f32 %v2011, %v2052
    %v2057 = vmul.f32 %v2013, %v2053
    %v2058 = vmul.f32 %v2015, %v2052
    %v2059 = vmul.f32 %v2017, %v2053
    %v2060 = vmul.f32 %v2019, %v2052
    %v2061 = vmul.f32 %v2021, %v2053
    %v2062 = vmul.f32 %v2023, %v2052
    %v2063 = vmul.f32 %v2025, %v2053
    %v2064 = vmul.f32 %v2027, %v2052
    %v2065 = vmul.f32 %v2029, %v2053
    %v2066 = vmul.f32 %v2031, %v2052
    %v2067 = vmul.f32 %v2033, %v2053
    %v2068 = vmul.f32 %v2035, %v2052
    %v2069 = vmul.f32 %v2037, %v2053
    %v2070 = vpack.c.bf16 %v1911, %v1910
    %v2071 = vpack.c.bf16 %v1913, %v1912
    %v2072 = vpack.c.bf16 %v1915, %v1914
    %v2073 = vpack.c.bf16 %v1917, %v1916
    %v2074 = vpack.c.bf16 %v1919, %v1918
    %v2075 = vpack.c.bf16 %v1921, %v1920
    %v2076 = vpack.c.bf16 %v1923, %v1922
    %v2077 = vpack.c.bf16 %v1925, %v1924
    %v2078 = vld [vmem:[#allocation10] sm:$0xff]
    %v2079 = vld [vmem:[#allocation10 + $0x8] sm:$0xf]
    %v2080 = vld [vmem:[#allocation10 + $0xc] sm:$0xff]
    %v2081 = vld [vmem:[#allocation10 + $0x14] sm:$0xf]
    %v2082 = vld [vmem:[#allocation10 + $0x18] sm:$0xff]
    %v2083 = vld [vmem:[#allocation10 + $0x20] sm:$0xf]
    %v2084 = vld [vmem:[#allocation10 + $0x24] sm:$0xff]
    %v2085 = vld [vmem:[#allocation10 + $0x2c] sm:$0xf]
    %v2086 = vld [vmem:[#allocation10 + $0x30] sm:$0xff]
    %v2087 = vld [vmem:[#allocation10 + $0x38] sm:$0xf]
    %v2088 = vld [vmem:[#allocation10 + $0x3c] sm:$0xff]
    %v2089 = vld [vmem:[#allocation10 + $0x44] sm:$0xf]
    %v2090 = vld [vmem:[#allocation10 + $0x48] sm:$0xff]
    %v2091 = vld [vmem:[#allocation10 + $0x50] sm:$0xf]
    %v2092 = vld [vmem:[#allocation10 + $0x54] sm:$0xff]
    %v2093 = vld [vmem:[#allocation10 + $0x5c] sm:$0xf]
    %v2094 = vld [vmem:[#allocation10 + $0x60] sm:$0xff]
    %v2095 = vld [vmem:[#allocation10 + $0x68] sm:$0xf]
    %v2096 = vld [vmem:[#allocation10 + $0x6c] sm:$0xff]
    %v2097 = vld [vmem:[#allocation10 + $0x74] sm:$0xf]
    %v2098 = vld [vmem:[#allocation10 + $0x78] sm:$0xff]
    %v2099 = vld [vmem:[#allocation10 + $0x80] sm:$0xf]
    %v2100 = vld [vmem:[#allocation10 + $0x84] sm:$0xff]
    %v2101 = vld [vmem:[#allocation10 + $0x8c] sm:$0xf]
    %v2102 = vld [vmem:[#allocation10 + $0x90] sm:$0xff]
    %v2103 = vld [vmem:[#allocation10 + $0x98] sm:$0xf]
    %v2104 = vld [vmem:[#allocation10 + $0x9c] sm:$0xff]
    %v2105 = vld [vmem:[#allocation10 + $0xa4] sm:$0xf]
    %v2106 = vld [vmem:[#allocation10 + $0xa8] sm:$0xff]
    %v2107 = vld [vmem:[#allocation10 + $0xb0] sm:$0xf]
    %v2108 = vld [vmem:[#allocation10 + $0xb4] sm:$0xff]
    %v2109 = vld [vmem:[#allocation10 + $0xbc] sm:$0xf]
    %v2110 = vld [vmem:[%s9] sm:$0x7]
    %v2112 = vlaneseq
    %v2113 = vshrl.u32 %v2112, 7
    %v2114 = vsub.s32 0, %v2113
    %v2115 = vrot.slane %v2110, %v2114
    %v2116 = vlaneseq
    %v2117 = vshrl.u32 %v2116, 7
    %v2118 = vsub.s32 1, %v2117
    %v2119 = vrot.slane %v2110, %v2118
    %v2120 = vlaneseq
    %v2121 = vshrl.u32 %v2120, 7
    %v2122 = vsub.s32 2, %v2121
    %v2123 = vrot.slane %v2110, %v2122
    %v2159 = vunpack.c.l.b16 %v2078
    %v2160 = vunpack.c.h.b16 %v2078
    %v2161 = vunpack.c.l.b16 %v2079
    %v2162 = vunpack.c.l.b16 %v2080
    %v2163 = vunpack.c.h.b16 %v2080
    %v2164 = vunpack.c.l.b16 %v2081
    %v2165 = vunpack.c.l.b16 %v2082
    %v2166 = vunpack.c.h.b16 %v2082
    %v2167 = vunpack.c.l.b16 %v2083
    %v2168 = vunpack.c.l.b16 %v2084
    %v2169 = vunpack.c.h.b16 %v2084
    %v2170 = vunpack.c.l.b16 %v2085
    %v2171 = vunpack.c.l.b16 %v2086
    %v2172 = vunpack.c.h.b16 %v2086
    %v2173 = vunpack.c.l.b16 %v2087
    %v2174 = vunpack.c.l.b16 %v2088
    %v2175 = vunpack.c.h.b16 %v2088
    %v2176 = vunpack.c.l.b16 %v2089
    %v2177 = vunpack.c.l.b16 %v2090
    %v2178 = vunpack.c.h.b16 %v2090
    %v2179 = vunpack.c.l.b16 %v2091
    %v2180 = vunpack.c.l.b16 %v2092
    %v2181 = vunpack.c.h.b16 %v2092
    %v2182 = vunpack.c.l.b16 %v2093
    %v2183 = vunpack.c.l.b16 %v2094
    %v2184 = vunpack.c.h.b16 %v2094
    %v2185 = vunpack.c.l.b16 %v2095
    %v2186 = vunpack.c.l.b16 %v2096
    %v2187 = vunpack.c.h.b16 %v2096
    %v2188 = vunpack.c.l.b16 %v2097
    %v2189 = vunpack.c.l.b16 %v2098
    %v2190 = vunpack.c.h.b16 %v2098
    %v2191 = vunpack.c.l.b16 %v2099
    %v2192 = vunpack.c.l.b16 %v2100
    %v2193 = vunpack.c.h.b16 %v2100
    %v2194 = vunpack.c.l.b16 %v2101
    %v2195 = vunpack.c.l.b16 %v2102
    %v2196 = vunpack.c.h.b16 %v2102
    %v2197 = vunpack.c.l.b16 %v2103
    %v2198 = vunpack.c.l.b16 %v2104
    %v2199 = vunpack.c.h.b16 %v2104
    %v2200 = vunpack.c.l.b16 %v2105
    %v2201 = vunpack.c.l.b16 %v2106
    %v2202 = vunpack.c.h.b16 %v2106
    %v2203 = vunpack.c.l.b16 %v2107
    %v2204 = vunpack.c.l.b16 %v2108
    %v2205 = vunpack.c.h.b16 %v2108
    %v2206 = vunpack.c.l.b16 %v2109
    %v2207 = vpack.c.b16 %v2162, %v2159
    %v2208 = vpack.c.b16 %v2163, %v2160
    %v2209 = vpack.c.b16 %v2164, %v2161
    %v2210 = vpack.c.b16 %v2168, %v2165
    %v2211 = vpack.c.b16 %v2169, %v2166
    %v2212 = vpack.c.b16 %v2170, %v2167
    %v2213 = vpack.c.b16 %v2174, %v2171
    %v2214 = vpack.c.b16 %v2175, %v2172
    %v2215 = vpack.c.b16 %v2176, %v2173
    %v2216 = vpack.c.b16 %v2180, %v2177
    %v2217 = vpack.c.b16 %v2181, %v2178
    %v2218 = vpack.c.b16 %v2182, %v2179
    %v2219 = vpack.c.b16 %v2186, %v2183
    %v2220 = vpack.c.b16 %v2187, %v2184
    %v2221 = vpack.c.b16 %v2188, %v2185
    %v2222 = vpack.c.b16 %v2192, %v2189
    %v2223 = vpack.c.b16 %v2193, %v2190
    %v2224 = vpack.c.b16 %v2194, %v2191
    %v2225 = vpack.c.b16 %v2198, %v2195
    %v2226 = vpack.c.b16 %v2199, %v2196
    %v2227 = vpack.c.b16 %v2200, %v2197
    %v2228 = vpack.c.b16 %v2204, %v2201
    %v2229 = vpack.c.b16 %v2205, %v2202
    %v2230 = vpack.c.b16 %v2206, %v2203
    %2255 = vmatprep.subr.bf16.mxu0 %v2208
    %2256 = vmatpush1.bf16.msra.mxu0 %v2207
    %2257 = vmatprep.subr.bf16.mxu0 %v2211
    %2258 = vmatpush1.bf16.msra.mxu0 %v2210
    %2259 = vmatprep.subr.bf16.mxu0 %v2214
    %2260 = vmatpush1.bf16.msra.mxu0 %v2213
    %2261 = vmatprep.subr.bf16.mxu0 %v2217
    %2262 = vmatpush1.bf16.msra.mxu0 %v2216
    %2263 = vmatprep.subr.bf16.mxu0 %v2220
    %2264 = vmatpush1.bf16.msra.mxu0 %v2219
    %2265 = vmatprep.subr.bf16.mxu0 %v2223
    %2266 = vmatpush1.bf16.msra.mxu0 %v2222
    %2267 = vmatprep.subr.bf16.mxu0 %v2226
    %2268 = vmatpush1.bf16.msra.mxu0 %v2225
    %2269 = vmatprep.subr.bf16.mxu0 %v2229
    %2270 = vmatpush1.bf16.msra.mxu0 %v2228
    %2271 = vmatprep.subr.bf16.mxu0 0
    %2272 = vmatpush1.bf16.msra.mxu0 0
    %2273 = vmatprep.subr.bf16.mxu0 0
    %2274 = vmatpush1.bf16.msra.mxu0 0
    %2275 = vmatprep.subr.bf16.mxu0 0
    %2276 = vmatpush1.bf16.msra.mxu0 0
    %2277 = vmatprep.subr.bf16.mxu0 0
    %2278 = vmatpush1.bf16.msra.mxu0 0
    %2279 = vmatprep.subr.bf16.mxu0 0
    %2280 = vmatpush1.bf16.msra.mxu0 0
    %2281 = vmatprep.subr.bf16.mxu0 0
    %2282 = vmatpush1.bf16.msra.mxu0 0
    %2283 = vmatprep.subr.bf16.mxu0 0
    %2284 = vmatpush1.bf16.msra.mxu0 0
    %2285 = vmatprep.subr.bf16.mxu0 0
    %2286 = vmatpush1.bf16.msra.mxu0 0
    %2287 = vmatprep.mubr.bf16.mxu0 0
    %2288 = vmatmul.mubr.bf16.gmra.mrb[0].mxu0 %v2070
    %v2289 = vpop.f32.mrb[0].mxu0
    %v2290 = vadd.f32 %v2115, %v2289
    %v2291 = vpop.f32.mrb[0].mxu0
    %v2292 = vadd.f32 %v2119, %v2291
    %v2293 = vpop.f32.mrb[0].mxu0
    %v2294 = vadd.f32 %v2115, %v2293
    %v2295 = vpop.f32.mrb[0].mxu0
    %v2296 = vadd.f32 %v2119, %v2295
    %2297 = vmatprep.mubr.bf16.mxu0 0
    %2298 = vmatmul.mubr.bf16.gmra.mrb[0].mxu0 %v2071
    %v2299 = vpop.f32.mrb[0].mxu0
    %v2300 = vadd.f32 %v2115, %v2299
    %v2301 = vpop.f32.mrb[0].mxu0
    %v2302 = vadd.f32 %v2119, %v2301
    %v2303 = vpop.f32.mrb[0].mxu0
    %v2304 = vadd.f32 %v2115, %v2303
    %v2305 = vpop.f32.mrb[0].mxu0
    %v2306 = vadd.f32 %v2119, %v2305
    %2307 = vmatprep.mubr.bf16.mxu0 0
    %2308 = vmatmul.mubr.bf16.gmra.mrb[0].mxu0 %v2072
    %v2309 = vpop.f32.mrb[0].mxu0
    %v2310 = vadd.f32 %v2115, %v2309
    %v2311 = vpop.f32.mrb[0].mxu0
    %v2312 = vadd.f32 %v2119, %v2311
    %v2313 = vpop.f32.mrb[0].mxu0
    %v2314 = vadd.f32 %v2115, %v2313
    %v2315 = vpop.f32.mrb[0].mxu0
    %v2316 = vadd.f32 %v2119, %v2315
    %2317 = vmatprep.mubr.bf16.mxu0 0
    %2318 = vmatmul.mubr.bf16.gmra.mrb[0].mxu0 %v2073
    %v2319 = vpop.f32.mrb[0].mxu0
    %v2320 = vadd.f32 %v2115, %v2319
    %v2321 = vpop.f32.mrb[0].mxu0
    %v2322 = vadd.f32 %v2119, %v2321
    %v2323 = vpop.f32.mrb[0].mxu0
    %v2324 = vadd.f32 %v2115, %v2323
    %v2325 = vpop.f32.mrb[0].mxu0
    %v2326 = vadd.f32 %v2119, %v2325
    %2327 = vmatprep.mubr.bf16.mxu0 0
    %2328 = vmatmul.mubr.bf16.gmra.mrb[0].mxu0 %v2074
    %v2329 = vpop.f32.mrb[0].mxu0
    %v2330 = vadd.f32 %v2115, %v2329
    %v2331 = vpop.f32.mrb[0].mxu0
    %v2332 = vadd.f32 %v2119, %v2331
    %v2333 = vpop.f32.mrb[0].mxu0
    %v2334 = vadd.f32 %v2115, %v2333
    %v2335 = vpop.f32.mrb[0].mxu0
    %v2336 = vadd.f32 %v2119, %v2335
    %2337 = vmatprep.mubr.bf16.mxu0 0
    %2338 = vmatmul.mubr.bf16.gmra.mrb[0].mxu0 %v2075
    %v2339 = vpop.f32.mrb[0].mxu0
    %v2340 = vadd.f32 %v2115, %v2339
    %v2341 = vpop.f32.mrb[0].mxu0
    %v2342 = vadd.f32 %v2119, %v2341
    %v2343 = vpop.f32.mrb[0].mxu0
    %v2344 = vadd.f32 %v2115, %v2343
    %v2345 = vpop.f32.mrb[0].mxu0
    %v2346 = vadd.f32 %v2119, %v2345
    %2347 = vmatprep.mubr.bf16.mxu0 0
    %2348 = vmatmul.mubr.bf16.gmra.mrb[0].mxu0 %v2076
    %v2349 = vpop.f32.mrb[0].mxu0
    %v2350 = vadd.f32 %v2115, %v2349
    %v2351 = vpop.f32.mrb[0].mxu0
    %v2352 = vadd.f32 %v2119, %v2351
    %v2353 = vpop.f32.mrb[0].mxu0
    %v2354 = vadd.f32 %v2115, %v2353
    %v2355 = vpop.f32.mrb[0].mxu0
    %v2356 = vadd.f32 %v2119, %v2355
    %2357 = vmatprep.mubr.bf16.mxu0 0
    %2358 = vmatmul.mubr.bf16.gmra.mrb[0].mxu0 %v2077
    %v2359 = vpop.f32.mrb[0].mxu0
    %v2360 = vadd.f32 %v2115, %v2359
    %v2361 = vpop.f32.mrb[0].mxu0
    %v2362 = vadd.f32 %v2119, %v2361
    %v2363 = vpop.f32.mrb[0].mxu0
    %v2364 = vadd.f32 %v2115, %v2363
    %v2365 = vpop.f32.mrb[0].mxu0
    %v2366 = vadd.f32 %v2119, %v2365
    %2367 = vdwg.mxu0
    %2368 = vmatprep.subr.bf16.mxu0 0
    %2369 = vmatpush1.bf16.msra.mxu0 %v2209
    %2370 = vmatprep.subr.bf16.mxu0 0
    %2371 = vmatpush1.bf16.msra.mxu0 %v2212
    %2372 = vmatprep.subr.bf16.mxu0 0
    %2373 = vmatpush1.bf16.msra.mxu0 %v2215
    %2374 = vmatprep.subr.bf16.mxu0 0
    %2375 = vmatpush1.bf16.msra.mxu0 %v2218
    %2376 = vmatprep.subr.bf16.mxu0 0
    %2377 = vmatpush1.bf16.msra.mxu0 %v2221
    %2378 = vmatprep.subr.bf16.mxu0 0
    %2379 = vmatpush1.bf16.msra.mxu0 %v2224
    %2380 = vmatprep.subr.bf16.mxu0 0
    %2381 = vmatpush1.bf16.msra.mxu0 %v2227
    %2382 = vmatprep.subr.bf16.mxu0 0
    %2383 = vmatpush1.bf16.msra.mxu0 %v2230
    %2384 = vmatprep.subr.bf16.mxu0 0
    %2385 = vmatpush1.bf16.msra.mxu0 0
    %2386 = vmatprep.subr.bf16.mxu0 0
    %2387 = vmatpush1.bf16.msra.mxu0 0
    %2388 = vmatprep.subr.bf16.mxu0 0
    %2389 = vmatpush1.bf16.msra.mxu0 0
    %2390 = vmatprep.subr.bf16.mxu0 0
    %2391 = vmatpush1.bf16.msra.mxu0 0
    %2392 = vmatprep.subr.bf16.mxu0 0
    %2393 = vmatpush1.bf16.msra.mxu0 0
    %2394 = vmatprep.subr.bf16.mxu0 0
    %2395 = vmatpush1.bf16.msra.mxu0 0
    %2396 = vmatprep.subr.bf16.mxu0 0
    %2397 = vmatpush1.bf16.msra.mxu0 0
    %2398 = vmatprep.subr.bf16.mxu0 0
    %2399 = vmatpush1.bf16.msra.mxu0 0
    %2400 = vmatprep.mubr.bf16.mxu0 0
    %2401 = vmatmul.mubr.bf16.gmra.mrb[0].mxu0 %v2070
    %v2402 = vpop.f32.mrb[0].mxu0
    %v2403 = vadd.f32 %v2123, %v2402
    %v2404 = vpop.f32.mrb[0].mxu0
    %v2405 = vpop.f32.mrb[0].mxu0
    %v2406 = vadd.f32 %v2123, %v2405
    %v2407 = vpop.f32.mrb[0].mxu0
    %2408 = vmatprep.mubr.bf16.mxu0 0
    %2409 = vmatmul.mubr.bf16.gmra.mrb[0].mxu0 %v2071
    %v2410 = vpop.f32.mrb[0].mxu0
    %v2411 = vadd.f32 %v2123, %v2410
    %v2412 = vpop.f32.mrb[0].mxu0
    %v2413 = vpop.f32.mrb[0].mxu0
    %v2414 = vadd.f32 %v2123, %v2413
    %v2415 = vpop.f32.mrb[0].mxu0
    %2416 = vmatprep.mubr.bf16.mxu0 0
    %2417 = vmatmul.mubr.bf16.gmra.mrb[0].mxu0 %v2072
    %v2418 = vpop.f32.mrb[0].mxu0
    %v2419 = vadd.f32 %v2123, %v2418
    %v2420 = vpop.f32.mrb[0].mxu0
    %v2421 = vpop.f32.mrb[0].mxu0
    %v2422 = vadd.f32 %v2123, %v2421
    %v2423 = vpop.f32.mrb[0].mxu0
    %2424 = vmatprep.mubr.bf16.mxu0 0
    %2425 = vmatmul.mubr.bf16.gmra.mrb[0].mxu0 %v2073
    %v2426 = vpop.f32.mrb[0].mxu0
    %v2427 = vadd.f32 %v2123, %v2426
    %v2428 = vpop.f32.mrb[0].mxu0
    %v2429 = vpop.f32.mrb[0].mxu0
    %v2430 = vadd.f32 %v2123, %v2429
    %v2431 = vpop.f32.mrb[0].mxu0
    %2432 = vmatprep.mubr.bf16.mxu0 0
    %2433 = vmatmul.mubr.bf16.gmra.mrb[0].mxu0 %v2074
    %v2434 = vpop.f32.mrb[0].mxu0
    %v2435 = vadd.f32 %v2123, %v2434
    %v2436 = vpop.f32.mrb[0].mxu0
    %v2437 = vpop.f32.mrb[0].mxu0
    %v2438 = vadd.f32 %v2123, %v2437
    %v2439 = vpop.f32.mrb[0].mxu0
    %2440 = vmatprep.mubr.bf16.mxu0 0
    %2441 = vmatmul.mubr.bf16.gmra.mrb[0].mxu0 %v2075
    %v2442 = vpop.f32.mrb[0].mxu0
    %v2443 = vadd.f32 %v2123, %v2442
    %v2444 = vpop.f32.mrb[0].mxu0
    %v2445 = vpop.f32.mrb[0].mxu0
    %v2446 = vadd.f32 %v2123, %v2445
    %v2447 = vpop.f32.mrb[0].mxu0
    %2448 = vmatprep.mubr.bf16.mxu0 0
    %2449 = vmatmul.mubr.bf16.gmra.mrb[0].mxu0 %v2076
    %v2450 = vpop.f32.mrb[0].mxu0
    %v2451 = vadd.f32 %v2123, %v2450
    %v2452 = vpop.f32.mrb[0].mxu0
    %v2453 = vpop.f32.mrb[0].mxu0
    %v2454 = vadd.f32 %v2123, %v2453
    %v2455 = vpop.f32.mrb[0].mxu0
    %2456 = vmatprep.mubr.bf16.mxu0 0
    %2457 = vmatmul.mubr.bf16.gmra.mrb[0].mxu0 %v2077
    %v2458 = vpop.f32.mrb[0].mxu0
    %v2459 = vadd.f32 %v2123, %v2458
    %v2460 = vpop.f32.mrb[0].mxu0
    %v2461 = vpop.f32.mrb[0].mxu0
    %v2462 = vadd.f32 %v2123, %v2461
    %v2463 = vpop.f32.mrb[0].mxu0
    %2464 = vdwg.mxu0
    %v2465 = vpack.c.bf16 %v2294, %v2290
    %v2466 = vpack.c.bf16 %v2296, %v2292
    %v2467 = vpack.c.bf16 %v2406, %v2403
    %v2468 = vpack.c.bf16 %v2304, %v2300
    %v2469 = vpack.c.bf16 %v2306, %v2302
    %v2470 = vpack.c.bf16 %v2414, %v2411
    %v2471 = vpack.c.bf16 %v2314, %v2310
    %v2472 = vpack.c.bf16 %v2316, %v2312
    %v2473 = vpack.c.bf16 %v2422, %v2419
    %v2474 = vpack.c.bf16 %v2324, %v2320
    %v2475 = vpack.c.bf16 %v2326, %v2322
    %v2476 = vpack.c.bf16 %v2430, %v2427
    %v2477 = vpack.c.bf16 %v2334, %v2330
    %v2478 = vpack.c.bf16 %v2336, %v2332
    %v2479 = vpack.c.bf16 %v2438, %v2435
    %v2480 = vpack.c.bf16 %v2344, %v2340
    %v2481 = vpack.c.bf16 %v2346, %v2342
    %v2482 = vpack.c.bf16 %v2446, %v2443
    %v2483 = vpack.c.bf16 %v2354, %v2350
    %v2484 = vpack.c.bf16 %v2356, %v2352
    %v2485 = vpack.c.bf16 %v2454, %v2451
    %v2486 = vpack.c.bf16 %v2364, %v2360
    %v2487 = vpack.c.bf16 %v2366, %v2362
    %v2488 = vpack.c.bf16 %v2462, %v2459
    %2489 = vst [vmem:[#allocation3] sm:$0xff] %v2465
    %2490 = vst [vmem:[#allocation3 + $0x8] sm:$0xff] %v2466
    %2491 = vst [vmem:[#allocation3 + $0x10] sm:$0xff] %v2467
    %2492 = vst [vmem:[#allocation3 + $0x18] sm:$0xff] %v2468
    %2493 = vst [vmem:[#allocation3 + $0x20] sm:$0xff] %v2469
    %2494 = vst [vmem:[#allocation3 + $0x28] sm:$0xff] %v2470
    %2495 = vst [vmem:[#allocation3 + $0x30] sm:$0xff] %v2471
    %2496 = vst [vmem:[#allocation3 + $0x38] sm:$0xff] %v2472
    %2497 = vst [vmem:[#allocation3 + $0x40] sm:$0xff] %v2473
    %2498 = vst [vmem:[#allocation3 + $0x48] sm:$0xff] %v2474
    %2499 = vst [vmem:[#allocation3 + $0x50] sm:$0xff] %v2475
    %2500 = vst [vmem:[#allocation3 + $0x58] sm:$0xff] %v2476
    %2501 = vst [vmem:[#allocation3 + $0x60] sm:$0xff] %v2477
    %2502 = vst [vmem:[#allocation3 + $0x68] sm:$0xff] %v2478
    %2503 = vst [vmem:[#allocation3 + $0x70] sm:$0xff] %v2479
    %2504 = vst [vmem:[#allocation3 + $0x78] sm:$0xff] %v2480
    %2505 = vst [vmem:[#allocation3 + $0x80] sm:$0xff] %v2481
    %2506 = vst [vmem:[#allocation3 + $0x88] sm:$0xff] %v2482
    %2507 = vst [vmem:[#allocation3 + $0x90] sm:$0xff] %v2483
    %2508 = vst [vmem:[#allocation3 + $0x98] sm:$0xff] %v2484
    %2509 = vst [vmem:[#allocation3 + $0xa0] sm:$0xff] %v2485
    %2510 = vst [vmem:[#allocation3 + $0xa8] sm:$0xff] %v2486
    %2511 = vst [vmem:[#allocation3 + $0xb0] sm:$0xff] %v2487
    %2512 = vst [vmem:[#allocation3 + $0xb8] sm:$0xff] %v2488
    %vm2513 = vcmask 7168
    %2514 = vst.msk [vmem:[#allocation2] sm:$0xff] %vm2513, %v2054
    %2515 = vst.msk [vmem:[#allocation2 + $0x8] sm:$0xff] %vm2513, %v2055
    %2516 = vst.msk [vmem:[#allocation2 + $0x10] sm:$0xff] %vm2513, %v2056
    %2517 = vst.msk [vmem:[#allocation2 + $0x18] sm:$0xff] %vm2513, %v2057
    %2518 = vst.msk [vmem:[#allocation2 + $0x20] sm:$0xff] %vm2513, %v2058
    %2519 = vst.msk [vmem:[#allocation2 + $0x28] sm:$0xff] %vm2513, %v2059
    %2520 = vst.msk [vmem:[#allocation2 + $0x30] sm:$0xff] %vm2513, %v2060
    %2521 = vst.msk [vmem:[#allocation2 + $0x38] sm:$0xff] %vm2513, %v2061
    %2522 = vst.msk [vmem:[#allocation2 + $0x40] sm:$0xff] %vm2513, %v2062
    %2523 = vst.msk [vmem:[#allocation2 + $0x48] sm:$0xff] %vm2513, %v2063
    %2524 = vst.msk [vmem:[#allocation2 + $0x50] sm:$0xff] %vm2513, %v2064
    %2525 = vst.msk [vmem:[#allocation2 + $0x58] sm:$0xff] %vm2513, %v2065
    %2526 = vst.msk [vmem:[#allocation2 + $0x60] sm:$0xff] %vm2513, %v2066
    %2527 = vst.msk [vmem:[#allocation2 + $0x68] sm:$0xff] %vm2513, %v2067
    %2528 = vst.msk [vmem:[#allocation2 + $0x70] sm:$0xff] %vm2513, %v2068
    %2529 = vst.msk [vmem:[#allocation2 + $0x78] sm:$0xff] %vm2513, %v2069
    %v2530 = vld [vmem:[#allocation12] sm:$0xff]
    %v2531 = vld [vmem:[#allocation12 + $0x8] sm:$0xf]
    %v2532 = vld [vmem:[#allocation12 + $0xc] sm:$0xff]
    %v2533 = vld [vmem:[#allocation12 + $0x14] sm:$0xf]
    %v2534 = vld [vmem:[#allocation12 + $0x18] sm:$0xff]
    %v2535 = vld [vmem:[#allocation12 + $0x20] sm:$0xf]
    %v2536 = vld [vmem:[#allocation12 + $0x24] sm:$0xff]
    %v2537 = vld [vmem:[#allocation12 + $0x2c] sm:$0xf]
    %v2538 = vld [vmem:[#allocation12 + $0x30] sm:$0xff]
    %v2539 = vld [vmem:[#allocation12 + $0x38] sm:$0xf]
    %v2540 = vld [vmem:[#allocation12 + $0x3c] sm:$0xff]
    %v2541 = vld [vmem:[#allocation12 + $0x44] sm:$0xf]
    %v2542 = vld [vmem:[#allocation12 + $0x48] sm:$0xff]
    %v2543 = vld [vmem:[#allocation12 + $0x50] sm:$0xf]
    %v2544 = vld [vmem:[#allocation12 + $0x54] sm:$0xff]
    %v2545 = vld [vmem:[#allocation12 + $0x5c] sm:$0xf]
    %v2546 = vld [vmem:[#allocation12 + $0x60] sm:$0xff]
    %v2547 = vld [vmem:[#allocation12 + $0x68] sm:$0xf]
    %v2548 = vld [vmem:[#allocation12 + $0x6c] sm:$0xff]
    %v2549 = vld [vmem:[#allocation12 + $0x74] sm:$0xf]
    %v2550 = vld [vmem:[#allocation12 + $0x78] sm:$0xff]
    %v2551 = vld [vmem:[#allocation12 + $0x80] sm:$0xf]
    %v2552 = vld [vmem:[#allocation12 + $0x84] sm:$0xff]
    %v2553 = vld [vmem:[#allocation12 + $0x8c] sm:$0xf]
    %v2554 = vld [vmem:[#allocation12 + $0x90] sm:$0xff]
    %v2555 = vld [vmem:[#allocation12 + $0x98] sm:$0xf]
    %v2556 = vld [vmem:[#allocation12 + $0x9c] sm:$0xff]
    %v2557 = vld [vmem:[#allocation12 + $0xa4] sm:$0xf]
    %v2558 = vld [vmem:[#allocation12 + $0xa8] sm:$0xff]
    %v2559 = vld [vmem:[#allocation12 + $0xb0] sm:$0xf]
    %v2560 = vld [vmem:[#allocation12 + $0xb4] sm:$0xff]
    %v2561 = vld [vmem:[#allocation12 + $0xbc] sm:$0xf]
    %v2562 = vld [vmem:[%s10] sm:$0x1]
    %v2563 = vld [vmem:[#allocation3] sm:$0xff]
    %v2564 = vld [vmem:[#allocation3 + $0x8] sm:$0xff]
    %v2565 = vld [vmem:[#allocation3 + $0x10] sm:$0xff]
    %v2566 = vunpack.c.l.bf16 %v2563
    %v2567 = vunpack.c.l.bf16 %v2564
    %v2568 = vunpack.c.l.bf16 %v2565
    %v2569 = vunpack.c.h.bf16 %v2563
    %v2570 = vunpack.c.h.bf16 %v2564
    %v2571 = vunpack.c.h.bf16 %v2565
    %v2604 = vunpack.c.l.b16 %v2530
    %v2605 = vunpack.c.h.b16 %v2530
    %v2606 = vunpack.c.l.b16 %v2531
    %v2607 = vunpack.c.l.b16 %v2532
    %v2608 = vunpack.c.h.b16 %v2532
    %v2609 = vunpack.c.l.b16 %v2533
    %v2610 = vunpack.c.l.b16 %v2534
    %v2611 = vunpack.c.h.b16 %v2534
    %v2612 = vunpack.c.l.b16 %v2535
    %v2613 = vunpack.c.l.b16 %v2536
    %v2614 = vunpack.c.h.b16 %v2536
    %v2615 = vunpack.c.l.b16 %v2537
    %v2616 = vunpack.c.l.b16 %v2538
    %v2617 = vunpack.c.h.b16 %v2538
    %v2618 = vunpack.c.l.b16 %v2539
    %v2619 = vunpack.c.l.b16 %v2540
    %v2620 = vunpack.c.h.b16 %v2540
    %v2621 = vunpack.c.l.b16 %v2541
    %v2622 = vunpack.c.l.b16 %v2542
    %v2623 = vunpack.c.h.b16 %v2542
    %v2624 = vunpack.c.l.b16 %v2543
    %v2625 = vunpack.c.l.b16 %v2544
    %v2626 = vunpack.c.h.b16 %v2544
    %v2627 = vunpack.c.l.b16 %v2545
    %v2628 = vunpack.c.l.b16 %v2546
    %v2629 = vunpack.c.h.b16 %v2546
    %v2630 = vunpack.c.l.b16 %v2547
    %v2631 = vunpack.c.l.b16 %v2548
    %v2632 = vunpack.c.h.b16 %v2548
    %v2633 = vunpack.c.l.b16 %v2549
    %v2634 = vunpack.c.l.b16 %v2550
    %v2635 = vunpack.c.h.b16 %v2550
    %v2636 = vunpack.c.l.b16 %v2551
    %v2637 = vunpack.c.l.b16 %v2552
    %v2638 = vunpack.c.h.b16 %v2552
    %v2639 = vunpack.c.l.b16 %v2553
    %v2640 = vunpack.c.l.b16 %v2554
    %v2641 = vunpack.c.h.b16 %v2554
    %v2642 = vunpack.c.l.b16 %v2555
    %v2643 = vunpack.c.l.b16 %v2556
    %v2644 = vunpack.c.h.b16 %v2556
    %v2645 = vunpack.c.l.b16 %v2557
    %v2646 = vunpack.c.l.b16 %v2558
    %v2647 = vunpack.c.h.b16 %v2558
    %v2648 = vunpack.c.l.b16 %v2559
    %v2649 = vunpack.c.l.b16 %v2560
    %v2650 = vunpack.c.h.b16 %v2560
    %v2651 = vunpack.c.l.b16 %v2561
    %v2652 = vpack.c.b16 %v2607, %v2604
    %v2653 = vpack.c.b16 %v2608, %v2605
    %v2654 = vpack.c.b16 %v2609, %v2606
    %v2655 = vpack.c.b16 %v2613, %v2610
    %v2656 = vpack.c.b16 %v2614, %v2611
    %v2657 = vpack.c.b16 %v2615, %v2612
    %v2658 = vpack.c.b16 %v2619, %v2616
    %v2659 = vpack.c.b16 %v2620, %v2617
    %v2660 = vpack.c.b16 %v2621, %v2618
    %v2661 = vpack.c.b16 %v2625, %v2622
    %v2662 = vpack.c.b16 %v2626, %v2623
    %v2663 = vpack.c.b16 %v2627, %v2624
    %v2664 = vpack.c.b16 %v2631, %v2628
    %v2665 = vpack.c.b16 %v2632, %v2629
    %v2666 = vpack.c.b16 %v2633, %v2630
    %v2667 = vpack.c.b16 %v2637, %v2634
    %v2668 = vpack.c.b16 %v2638, %v2635
    %v2669 = vpack.c.b16 %v2639, %v2636
    %v2670 = vpack.c.b16 %v2643, %v2640
    %v2671 = vpack.c.b16 %v2644, %v2641
    %v2672 = vpack.c.b16 %v2645, %v2642
    %v2673 = vpack.c.b16 %v2649, %v2646
    %v2674 = vpack.c.b16 %v2650, %v2647
    %v2675 = vpack.c.b16 %v2651, %v2648
    %2700 = vmatprep.subr.bf16.mxu0 %v2653
    %2701 = vmatpush1.bf16.msra.mxu0 %v2652
    %2702 = vmatprep.subr.bf16.mxu0 %v2656
    %2703 = vmatpush1.bf16.msra.mxu0 %v2655
    %2704 = vmatprep.subr.bf16.mxu0 %v2659
    %2705 = vmatpush1.bf16.msra.mxu0 %v2658
    %2706 = vmatprep.subr.bf16.mxu0 %v2662
    %2707 = vmatpush1.bf16.msra.mxu0 %v2661
    %2708 = vmatprep.subr.bf16.mxu0 %v2665
    %2709 = vmatpush1.bf16.msra.mxu0 %v2664
    %2710 = vmatprep.subr.bf16.mxu0 %v2668
    %2711 = vmatpush1.bf16.msra.mxu0 %v2667
    %2712 = vmatprep.subr.bf16.mxu0 %v2671
    %2713 = vmatpush1.bf16.msra.mxu0 %v2670
    %2714 = vmatprep.subr.bf16.mxu0 %v2674
    %2715 = vmatpush1.bf16.msra.mxu0 %v2673
    %2716 = vmatprep.subr.bf16.mxu0 0
    %2717 = vmatpush1.bf16.msra.mxu0 0
    %2718 = vmatprep.subr.bf16.mxu0 0
    %2719 = vmatpush1.bf16.msra.mxu0 0
    %2720 = vmatprep.subr.bf16.mxu0 0
    %2721 = vmatpush1.bf16.msra.mxu0 0
    %2722 = vmatprep.subr.bf16.mxu0 0
    %2723 = vmatpush1.bf16.msra.mxu0 0
    %2724 = vmatprep.subr.bf16.mxu0 0
    %2725 = vmatpush1.bf16.msra.mxu0 0
    %2726 = vmatprep.subr.bf16.mxu0 0
    %2727 = vmatpush1.bf16.msra.mxu0 0
    %2728 = vmatprep.subr.bf16.mxu0 0
    %2729 = vmatpush1.bf16.msra.mxu0 0
    %2730 = vmatprep.subr.bf16.mxu0 0
    %2731 = vmatpush1.bf16.msra.mxu0 0
    %2732 = vmatprep.mubr.bf16.mxu0 0
    %2733 = vmatmul.mubr.bf16.gmra.mrb[0].mxu0 0
    %v2734 = vpop.f32.mrb[0].mxu0
    %v2735 = vadd.f32 0.0, %v2734
    %v2736 = vpop.f32.mrb[0].mxu0
    %v2737 = vadd.f32 0.0, %v2736
    %v2738 = vpop.f32.mrb[0].mxu0
    %v2739 = vadd.f32 0.0, %v2738
    %v2740 = vpop.f32.mrb[0].mxu0
    %v2741 = vadd.f32 0.0, %v2740
    %2742 = vdwg.mxu0
    %2743 = vmatprep.subr.bf16.mxu0 0
    %2744 = vmatpush1.bf16.msra.mxu0 %v2654
    %2745 = vmatprep.subr.bf16.mxu0 0
    %2746 = vmatpush1.bf16.msra.mxu0 %v2657
    %2747 = vmatprep.subr.bf16.mxu0 0
    %2748 = vmatpush1.bf16.msra.mxu0 %v2660
    %2749 = vmatprep.subr.bf16.mxu0 0
    %2750 = vmatpush1.bf16.msra.mxu0 %v2663
    %2751 = vmatprep.subr.bf16.mxu0 0
    %2752 = vmatpush1.bf16.msra.mxu0 %v2666
    %2753 = vmatprep.subr.bf16.mxu0 0
    %2754 = vmatpush1.bf16.msra.mxu0 %v2669
    %2755 = vmatprep.subr.bf16.mxu0 0
    %2756 = vmatpush1.bf16.msra.mxu0 %v2672
    %2757 = vmatprep.subr.bf16.mxu0 0
    %2758 = vmatpush1.bf16.msra.mxu0 %v2675
    %2759 = vmatprep.subr.bf16.mxu0 0
    %2760 = vmatpush1.bf16.msra.mxu0 0
    %2761 = vmatprep.subr.bf16.mxu0 0
    %2762 = vmatpush1.bf16.msra.mxu0 0
    %2763 = vmatprep.subr.bf16.mxu0 0
    %2764 = vmatpush1.bf16.msra.mxu0 0
    %2765 = vmatprep.subr.bf16.mxu0 0
    %2766 = vmatpush1.bf16.msra.mxu0 0
    %2767 = vmatprep.subr.bf16.mxu0 0
    %2768 = vmatpush1.bf16.msra.mxu0 0
    %2769 = vmatprep.subr.bf16.mxu0 0
    %2770 = vmatpush1.bf16.msra.mxu0 0
    %2771 = vmatprep.subr.bf16.mxu0 0
    %2772 = vmatpush1.bf16.msra.mxu0 0
    %2773 = vmatprep.subr.bf16.mxu0 0
    %2774 = vmatpush1.bf16.msra.mxu0 0
    %2775 = vmatprep.mubr.bf16.mxu0 0
    %2776 = vmatmul.mubr.bf16.gmra.mrb[0].mxu0 0
    %v2777 = vpop.f32.mrb[0].mxu0
    %v2778 = vadd.f32 0.0, %v2777
    %v2779 = vpop.f32.mrb[0].mxu0
    %v2780 = vpop.f32.mrb[0].mxu0
    %v2781 = vadd.f32 0.0, %v2780
    %v2782 = vpop.f32.mrb[0].mxu0
    %2783 = vdwg.mxu0
    %v2784 = vadd.f32 %v2566, %v2735
    %v2785 = vadd.f32 %v2569, %v2739
    %v2786 = vxor.u32 %v2784, 2147483648
    %v2787 = vxor.u32 %v2785, 2147483648
    %v2788 = vmul.f32 %v2786, 1.442695
    %v2789 = vpow.pop %v2788
    %v2790 = vmul.f32 %v2787, 1.442695
    %v2791 = vpow.pop %v2790
    %v2792 = vadd.f32 %v2789, 1.0
    %v2793 = vadd.f32 %v2791, 1.0
    %v2794 = vrcp.pop %v2792
    %v2795 = vmul.f32 1.0, %v2794
    %v2796 = vrcp.pop %v2793
    %v2797 = vmul.f32 1.0, %v2796
    %v2798 = vadd.f32 %v2567, %v2737
    %v2799 = vadd.f32 %v2570, %v2741
    %v2800 = vxor.u32 %v2798, 2147483648
    %v2801 = vxor.u32 %v2799, 2147483648
    %v2802 = vmul.f32 %v2800, 1.442695
    %v2803 = vpow.pop %v2802
    %v2804 = vmul.f32 %v2801, 1.442695
    %v2805 = vpow.pop %v2804
    %v2806 = vadd.f32 %v2803, 1.0
    %v2807 = vadd.f32 %v2805, 1.0
    %v2808 = vrcp.pop %v2806
    %v2809 = vmul.f32 1.0, %v2808
    %v2810 = vrcp.pop %v2807
    %v2811 = vmul.f32 1.0, %v2810
    %v2813 = vlaneseq
    %v2814 = vshrl.u32 %v2813, 7
    %v2815 = vsub.s32 0, %v2814
    %v2816 = vrot.slane %v2562, %v2815
    %v2818 = vadd.f32 %v2778, %v2816
    %v2819 = vadd.f32 %v2781, %v2816
    %v2820 = vmul.f32 %v2795, %v2818
    %v2821 = vmul.f32 %v2797, %v2819
    %v2822 = vadd.f32 %v2568, %v2820
    %v2823 = vadd.f32 %v2571, %v2821
    %v2824 = vtanh.pop %v2822
    %v2825 = vtanh.pop %v2823
    %v2826 = vld [vmem:[#allocation2] sm:$0xff]
    %v2827 = vld [vmem:[#allocation2 + $0x8] sm:$0xff]
    %2829 = vset.pattern.permute.xlu0 0
    %2830 = vperm.xlu0 %2829, %v2826
    %v2831 = vpop.permute.xlu0 %2830
    %2834 = vset.pattern.permute.xlu0 0
    %2835 = vperm.xlu0 %2834, %v2827
    %v2836 = vpop.permute.xlu0 %2835
    %v2838 = vmul.f32 %v2831, %v2809
    %v2839 = vmul.f32 %v2836, %v2811
    %v2840 = vsub.f32 1.0, %v2838
    %v2841 = vsub.f32 1.0, %v2839
    %v2842 = vmul.f32 %v2840, 0.0
    %v2843 = vmul.f32 %v2841, 0.0
    %v2844 = vmul.f32 %v2838, %v2824
    %v2845 = vmul.f32 %v2839, %v2825
    %v2846 = vadd.f32 %v2842, %v2844
    %v2847 = vadd.f32 %v2843, %v2845
    %v2848 = vsel %vm800, %v2846, 0.0
    %v2849 = vsel %vm801, %v2847, 0.0
    %v2850 = vld [vmem:[%s806] sm:$0xff]
    %v2851 = vld [vmem:[%s806 + $0x8] sm:$0xff]
    %v2852 = vld [vmem:[%s806 + $0x10] sm:$0xff]
    %v2853 = vunpack.c.l.bf16 %v2850
    %v2854 = vunpack.c.l.bf16 %v2851
    %v2855 = vunpack.c.l.bf16 %v2852
    %v2856 = vunpack.c.h.bf16 %v2850
    %v2857 = vunpack.c.h.bf16 %v2851
    %v2858 = vunpack.c.h.bf16 %v2852
    %v2859 = vpack.c.bf16 %v2849, %v2848
    %2860 = vmatprep.subr.bf16.mxu0 %v2653
    %2861 = vmatpush1.bf16.msra.mxu0 %v2652
    %2862 = vmatprep.subr.bf16.mxu0 %v2656
    %2863 = vmatpush1.bf16.msra.mxu0 %v2655
    %2864 = vmatprep.subr.bf16.mxu0 %v2659
    %2865 = vmatpush1.bf16.msra.mxu0 %v2658
    %2866 = vmatprep.subr.bf16.mxu0 %v2662
    %2867 = vmatpush1.bf16.msra.mxu0 %v2661
    %2868 = vmatprep.subr.bf16.mxu0 %v2665
    %2869 = vmatpush1.bf16.msra.mxu0 %v2664
    %2870 = vmatprep.subr.bf16.mxu0 %v2668
    %2871 = vmatpush1.bf16.msra.mxu0 %v2667
    %2872 = vmatprep.subr.bf16.mxu0 %v2671
    %2873 = vmatpush1.bf16.msra.mxu0 %v2670
    %2874 = vmatprep.subr.bf16.mxu0 %v2674
    %2875 = vmatpush1.bf16.msra.mxu0 %v2673
    %2876 = vmatprep.subr.bf16.mxu0 0
    %2877 = vmatpush1.bf16.msra.mxu0 0
    %2878 = vmatprep.subr.bf16.mxu0 0
    %2879 = vmatpush1.bf16.msra.mxu0 0
    %2880 = vmatprep.subr.bf16.mxu0 0
    %2881 = vmatpush1.bf16.msra.mxu0 0
    %2882 = vmatprep.subr.bf16.mxu0 0
    %2883 = vmatpush1.bf16.msra.mxu0 0
    %2884 = vmatprep.subr.bf16.mxu0 0
    %2885 = vmatpush1.bf16.msra.mxu0 0
    %2886 = vmatprep.subr.bf16.mxu0 0
    %2887 = vmatpush1.bf16.msra.mxu0 0
    %2888 = vmatprep.subr.bf16.mxu0 0
    %2889 = vmatpush1.bf16.msra.mxu0 0
    %2890 = vmatprep.subr.bf16.mxu0 0
    %2891 = vmatpush1.bf16.msra.mxu0 0
    %2892 = vmatprep.mubr.bf16.mxu0 0
    %2893 = vmatmul.mubr.bf16.gmra.mrb[0].mxu0 %v2859
    %v2894 = vpop.f32.mrb[0].mxu0
    %v2895 = vadd.f32 0.0, %v2894
    %v2896 = vpop.f32.mrb[0].mxu0
    %v2897 = vadd.f32 0.0, %v2896
    %v2898 = vpop.f32.mrb[0].mxu0
    %v2899 = vadd.f32 0.0, %v2898
    %v2900 = vpop.f32.mrb[0].mxu0
    %v2901 = vadd.f32 0.0, %v2900
    %2902 = vdwg.mxu0
    %2903 = vmatprep.subr.bf16.mxu0 0
    %2904 = vmatpush1.bf16.msra.mxu0 %v2654
    %2905 = vmatprep.subr.bf16.mxu0 0
    %2906 = vmatpush1.bf16.msra.mxu0 %v2657
    %2907 = vmatprep.subr.bf16.mxu0 0
    %2908 = vmatpush1.bf16.msra.mxu0 %v2660
    %2909 = vmatprep.subr.bf16.mxu0 0
    %2910 = vmatpush1.bf16.msra.mxu0 %v2663
    %2911 = vmatprep.subr.bf16.mxu0 0
    %2912 = vmatpush1.bf16.msra.mxu0 %v2666
    %2913 = vmatprep.subr.bf16.mxu0 0
    %2914 = vmatpush1.bf16.msra.mxu0 %v2669
    %2915 = vmatprep.subr.bf16.mxu0 0
    %2916 = vmatpush1.bf16.msra.mxu0 %v2672
    %2917 = vmatprep.subr.bf16.mxu0 0
    %2918 = vmatpush1.bf16.msra.mxu0 %v2675
    %2919 = vmatprep.subr.bf16.mxu0 0
    %2920 = vmatpush1.bf16.msra.mxu0 0
    %2921 = vmatprep.subr.bf16.mxu0 0
    %2922 = vmatpush1.bf16.msra.mxu0 0
    %2923 = vmatprep.subr.bf16.mxu0 0
    %2924 = vmatpush1.bf16.msra.mxu0 0
    %2925 = vmatprep.subr.bf16.mxu0 0
    %2926 = vmatpush1.bf16.msra.mxu0 0
    %2927 = vmatprep.subr.bf16.mxu0 0
    %2928 = vmatpush1.bf16.msra.mxu0 0
    %2929 = vmatprep.subr.bf16.mxu0 0
    %2930 = vmatpush1.bf16.msra.mxu0 0
    %2931 = vmatprep.subr.bf16.mxu0 0
    %2932 = vmatpush1.bf16.msra.mxu0 0
    %2933 = vmatprep.subr.bf16.mxu0 0
    %2934 = vmatpush1.bf16.msra.mxu0 0
    %2935 = vmatprep.mubr.bf16.mxu0 0
    %2936 = vmatmul.mubr.bf16.gmra.mrb[0].mxu0 %v2859
    %v2937 = vpop.f32.mrb[0].mxu0
    %v2938 = vadd.f32 0.0, %v2937
    %v2939 = vpop.f32.mrb[0].mxu0
    %v2940 = vpop.f32.mrb[0].mxu0
    %v2941 = vadd.f32 0.0, %v2940
    %v2942 = vpop.f32.mrb[0].mxu0
    %2943 = vdwg.mxu0
    %v2944 = vadd.f32 %v2853, %v2895
    %v2945 = vadd.f32 %v2856, %v2899
    %v2946 = vxor.u32 %v2944, 2147483648
    %v2947 = vxor.u32 %v2945, 2147483648
    %v2948 = vmul.f32 %v2946, 1.442695
    %v2949 = vpow.pop %v2948
    %v2950 = vmul.f32 %v2947, 1.442695
    %v2951 = vpow.pop %v2950
    %v2952 = vadd.f32 %v2949, 1.0
    %v2953 = vadd.f32 %v2951, 1.0
    %v2954 = vrcp.pop %v2952
    %v2955 = vmul.f32 1.0, %v2954
    %v2956 = vrcp.pop %v2953
    %v2957 = vmul.f32 1.0, %v2956
    %v2958 = vadd.f32 %v2854, %v2897
    %v2959 = vadd.f32 %v2857, %v2901
    %v2960 = vxor.u32 %v2958, 2147483648
    %v2961 = vxor.u32 %v2959, 2147483648
    %v2962 = vmul.f32 %v2960, 1.442695
    %v2963 = vpow.pop %v2962
    %v2964 = vmul.f32 %v2961, 1.442695
    %v2965 = vpow.pop %v2964
    %v2966 = vadd.f32 %v2963, 1.0
    %v2967 = vadd.f32 %v2965, 1.0
    %v2968 = vrcp.pop %v2966
    %v2969 = vmul.f32 1.0, %v2968
    %v2970 = vrcp.pop %v2967
    %v2971 = vmul.f32 1.0, %v2970
    %v2972 = vadd.f32 %v2938, %v2816
    %v2973 = vadd.f32 %v2941, %v2816
    %v2974 = vmul.f32 %v2955, %v2972
    %v2975 = vmul.f32 %v2957, %v2973
    %v2976 = vadd.f32 %v2855, %v2974
    %v2977 = vadd.f32 %v2858, %v2975
    %v2978 = vtanh.pop %v2976
    %v2979 = vtanh.pop %v2977
    %v2980 = vld [vmem:[%s959] sm:$0xff]
    %v2981 = vld [vmem:[%s959 + $0x8] sm:$0xff]
    %2983 = vset.pattern.permute.xlu0 0
    %2984 = vperm.xlu0 %2983, %v2980
    %v2985 = vpop.permute.xlu0 %2984
    %2988 = vset.pattern.permute.xlu0 0
    %2989 = vperm.xlu0 %2988, %v2981
    %v2990 = vpop.permute.xlu0 %2989
    %v2992 = vmul.f32 %v2985, %v2969
    %v2993 = vmul.f32 %v2990, %v2971
    %v2994 = vsub.f32 1.0, %v2992
    %v2995 = vsub.f32 1.0, %v2993
    %v2996 = vmul.f32 %v2994, %v2848
    %v2997 = vmul.f32 %v2995, %v2849
    %v2998 = vmul.f32 %v2992, %v2978
    %v2999 = vmul.f32 %v2993, %v2979
    %v3000 = vadd.f32 %v2996, %v2998
    %v3001 = vadd.f32 %v2997, %v2999
    %v3002 = vsel %vm955, %v3000, %v2848
    %v3003 = vsel %vm956, %v3001, %v2849
    %v3004 = vld [vmem:[%s964] sm:$0xff]
    %v3005 = vld [vmem:[%s964 + $0x8] sm:$0xff]
    %v3006 = vld [vmem:[%s964 + $0x10] sm:$0xff]
    %v3007 = vunpack.c.l.bf16 %v3004
    %v3008 = vunpack.c.l.bf16 %v3005
    %v3009 = vunpack.c.l.bf16 %v3006
    %v3010 = vunpack.c.h.bf16 %v3004
    %v3011 = vunpack.c.h.bf16 %v3005
    %v3012 = vunpack.c.h.bf16 %v3006
    %v3013 = vpack.c.bf16 %v3003, %v3002
    %3014 = vmatprep.subr.bf16.mxu0 %v2653
    %3015 = vmatpush1.bf16.msra.mxu0 %v2652
    %3016 = vmatprep.subr.bf16.mxu0 %v2656
    %3017 = vmatpush1.bf16.msra.mxu0 %v2655
    %3018 = vmatprep.subr.bf16.mxu0 %v2659
    %3019 = vmatpush1.bf16.msra.mxu0 %v2658
    %3020 = vmatprep.subr.bf16.mxu0 %v2662
    %3021 = vmatpush1.bf16.msra.mxu0 %v2661
    %3022 = vmatprep.subr.bf16.mxu0 %v2665
    %3023 = vmatpush1.bf16.msra.mxu0 %v2664
    %3024 = vmatprep.subr.bf16.mxu0 %v2668
    %3025 = vmatpush1.bf16.msra.mxu0 %v2667
    %3026 = vmatprep.subr.bf16.mxu0 %v2671
    %3027 = vmatpush1.bf16.msra.mxu0 %v2670
    %3028 = vmatprep.subr.bf16.mxu0 %v2674
    %3029 = vmatpush1.bf16.msra.mxu0 %v2673
    %3030 = vmatprep.subr.bf16.mxu0 0
    %3031 = vmatpush1.bf16.msra.mxu0 0
    %3032 = vmatprep.subr.bf16.mxu0 0
    %3033 = vmatpush1.bf16.msra.mxu0 0
    %3034 = vmatprep.subr.bf16.mxu0 0
    %3035 = vmatpush1.bf16.msra.mxu0 0
    %3036 = vmatprep.subr.bf16.mxu0 0
    %3037 = vmatpush1.bf16.msra.mxu0 0
    %3038 = vmatprep.subr.bf16.mxu0 0
    %3039 = vmatpush1.bf16.msra.mxu0 0
    %3040 = vmatprep.subr.bf16.mxu0 0
    %3041 = vmatpush1.bf16.msra.mxu0 0
    %3042 = vmatprep.subr.bf16.mxu0 0
    %3043 = vmatpush1.bf16.msra.mxu0 0
    %3044 = vmatprep.subr.bf16.mxu0 0
    %3045 = vmatpush1.bf16.msra.mxu0 0
    %3046 = vmatprep.mubr.bf16.mxu0 0
    %3047 = vmatmul.mubr.bf16.gmra.mrb[0].mxu0 %v3013
    %v3048 = vpop.f32.mrb[0].mxu0
    %v3049 = vadd.f32 0.0, %v3048
    %v3050 = vpop.f32.mrb[0].mxu0
    %v3051 = vadd.f32 0.0, %v3050
    %v3052 = vpop.f32.mrb[0].mxu0
    %v3053 = vadd.f32 0.0, %v3052
    %v3054 = vpop.f32.mrb[0].mxu0
    %v3055 = vadd.f32 0.0, %v3054
    %3056 = vdwg.mxu0
    %3057 = vmatprep.subr.bf16.mxu0 0
    %3058 = vmatpush1.bf16.msra.mxu0 %v2654
    %3059 = vmatprep.subr.bf16.mxu0 0
    %3060 = vmatpush1.bf16.msra.mxu0 %v2657
    %3061 = vmatprep.subr.bf16.mxu0 0
    %3062 = vmatpush1.bf16.msra.mxu0 %v2660
    %3063 = vmatprep.subr.bf16.mxu0 0
    %3064 = vmatpush1.bf16.msra.mxu0 %v2663
    %3065 = vmatprep.subr.bf16.mxu0 0
    %3066 = vmatpush1.bf16.msra.mxu0 %v2666
    %3067 = vmatprep.subr.bf16.mxu0 0
    %3068 = vmatpush1.bf16.msra.mxu0 %v2669
    %3069 = vmatprep.subr.bf16.mxu0 0
    %3070 = vmatpush1.bf16.msra.mxu0 %v2672
    %3071 = vmatprep.subr.bf16.mxu0 0
    %3072 = vmatpush1.bf16.msra.mxu0 %v2675
    %3073 = vmatprep.subr.bf16.mxu0 0
    %3074 = vmatpush1.bf16.msra.mxu0 0
    %3075 = vmatprep.subr.bf16.mxu0 0
    %3076 = vmatpush1.bf16.msra.mxu0 0
    %3077 = vmatprep.subr.bf16.mxu0 0
    %3078 = vmatpush1.bf16.msra.mxu0 0
    %3079 = vmatprep.subr.bf16.mxu0 0
    %3080 = vmatpush1.bf16.msra.mxu0 0
    %3081 = vmatprep.subr.bf16.mxu0 0
    %3082 = vmatpush1.bf16.msra.mxu0 0
    %3083 = vmatprep.subr.bf16.mxu0 0
    %3084 = vmatpush1.bf16.msra.mxu0 0
    %3085 = vmatprep.subr.bf16.mxu0 0
    %3086 = vmatpush1.bf16.msra.mxu0 0
    %3087 = vmatprep.subr.bf16.mxu0 0
    %3088 = vmatpush1.bf16.msra.mxu0 0
    %3089 = vmatprep.mubr.bf16.mxu0 0
    %3090 = vmatmul.mubr.bf16.gmra.mrb[0].mxu0 %v3013
    %v3091 = vpop.f32.mrb[0].mxu0
    %v3092 = vadd.f32 0.0, %v3091
    %v3093 = vpop.f32.mrb[0].mxu0
    %v3094 = vpop.f32.mrb[0].mxu0
    %v3095 = vadd.f32 0.0, %v3094
    %v3096 = vpop.f32.mrb[0].mxu0
    %3097 = vdwg.mxu0
    %v3098 = vadd.f32 %v3007, %v3049
    %v3099 = vadd.f32 %v3010, %v3053
    %v3100 = vxor.u32 %v3098, 2147483648
    %v3101 = vxor.u32 %v3099, 2147483648
    %v3102 = vmul.f32 %v3100, 1.442695
    %v3103 = vpow.pop %v3102
    %v3104 = vmul.f32 %v3101, 1.442695
    %v3105 = vpow.pop %v3104
    %v3106 = vadd.f32 %v3103, 1.0
    %v3107 = vadd.f32 %v3105, 1.0
    %v3108 = vrcp.pop %v3106
    %v3109 = vmul.f32 1.0, %v3108
    %v3110 = vrcp.pop %v3107
    %v3111 = vmul.f32 1.0, %v3110
    %v3112 = vadd.f32 %v3008, %v3051
    %v3113 = vadd.f32 %v3011, %v3055
    %v3114 = vxor.u32 %v3112, 2147483648
    %v3115 = vxor.u32 %v3113, 2147483648
    %v3116 = vmul.f32 %v3114, 1.442695
    %v3117 = vpow.pop %v3116
    %v3118 = vmul.f32 %v3115, 1.442695
    %v3119 = vpow.pop %v3118
    %v3120 = vadd.f32 %v3117, 1.0
    %v3121 = vadd.f32 %v3119, 1.0
    %v3122 = vrcp.pop %v3120
    %v3123 = vmul.f32 1.0, %v3122
    %v3124 = vrcp.pop %v3121
    %v3125 = vmul.f32 1.0, %v3124
    %v3126 = vadd.f32 %v3092, %v2816
    %v3127 = vadd.f32 %v3095, %v2816
    %v3128 = vmul.f32 %v3109, %v3126
    %v3129 = vmul.f32 %v3111, %v3127
    %v3130 = vadd.f32 %v3009, %v3128
    %v3131 = vadd.f32 %v3012, %v3129
    %v3132 = vtanh.pop %v3130
    %v3133 = vtanh.pop %v3131
    %v3134 = vld [vmem:[%s1117] sm:$0xff]
    %v3135 = vld [vmem:[%s1117 + $0x8] sm:$0xff]
    %3137 = vset.pattern.permute.xlu0 0
    %3138 = vperm.xlu0 %3137, %v3134
    %v3139 = vpop.permute.xlu0 %3138
    %3142 = vset.pattern.permute.xlu0 0
    %3143 = vperm.xlu0 %3142, %v3135
    %v3144 = vpop.permute.xlu0 %3143
    %v3146 = vmul.f32 %v3139, %v3123
    %v3147 = vmul.f32 %v3144, %v3125
    %v3148 = vsub.f32 1.0, %v3146
    %v3149 = vsub.f32 1.0, %v3147
    %v3150 = vmul.f32 %v3148, %v3002
    %v3151 = vmul.f32 %v3149, %v3003
    %v3152 = vmul.f32 %v3146, %v3132
    %v3153 = vmul.f32 %v3147, %v3133
    %v3154 = vadd.f32 %v3150, %v3152
    %v3155 = vadd.f32 %v3151, %v3153
    %v3156 = vsel %vm1113, %v3154, %v3002
    %v3157 = vsel %vm1114, %v3155, %v3003
    %v3158 = vld [vmem:[%s1122] sm:$0xff]
    %v3159 = vld [vmem:[%s1122 + $0x8] sm:$0xff]
    %v3160 = vld [vmem:[%s1122 + $0x10] sm:$0xff]
    %v3161 = vunpack.c.l.bf16 %v3158
    %v3162 = vunpack.c.l.bf16 %v3159
    %v3163 = vunpack.c.l.bf16 %v3160
    %v3164 = vunpack.c.h.bf16 %v3158
    %v3165 = vunpack.c.h.bf16 %v3159
    %v3166 = vunpack.c.h.bf16 %v3160
    %v3167 = vpack.c.bf16 %v3157, %v3156
    %3168 = vmatprep.subr.bf16.mxu0 %v2653
    %3169 = vmatpush1.bf16.msra.mxu0 %v2652
    %3170 = vmatprep.subr.bf16.mxu0 %v2656
    %3171 = vmatpush1.bf16.msra.mxu0 %v2655
    %3172 = vmatprep.subr.bf16.mxu0 %v2659
    %3173 = vmatpush1.bf16.msra.mxu0 %v2658
    %3174 = vmatprep.subr.bf16.mxu0 %v2662
    %3175 = vmatpush1.bf16.msra.mxu0 %v2661
    %3176 = vmatprep.subr.bf16.mxu0 %v2665
    %3177 = vmatpush1.bf16.msra.mxu0 %v2664
    %3178 = vmatprep.subr.bf16.mxu0 %v2668
    %3179 = vmatpush1.bf16.msra.mxu0 %v2667
    %3180 = vmatprep.subr.bf16.mxu0 %v2671
    %3181 = vmatpush1.bf16.msra.mxu0 %v2670
    %3182 = vmatprep.subr.bf16.mxu0 %v2674
    %3183 = vmatpush1.bf16.msra.mxu0 %v2673
    %3184 = vmatprep.subr.bf16.mxu0 0
    %3185 = vmatpush1.bf16.msra.mxu0 0
    %3186 = vmatprep.subr.bf16.mxu0 0
    %3187 = vmatpush1.bf16.msra.mxu0 0
    %3188 = vmatprep.subr.bf16.mxu0 0
    %3189 = vmatpush1.bf16.msra.mxu0 0
    %3190 = vmatprep.subr.bf16.mxu0 0
    %3191 = vmatpush1.bf16.msra.mxu0 0
    %3192 = vmatprep.subr.bf16.mxu0 0
    %3193 = vmatpush1.bf16.msra.mxu0 0
    %3194 = vmatprep.subr.bf16.mxu0 0
    %3195 = vmatpush1.bf16.msra.mxu0 0
    %3196 = vmatprep.subr.bf16.mxu0 0
    %3197 = vmatpush1.bf16.msra.mxu0 0
    %3198 = vmatprep.subr.bf16.mxu0 0
    %3199 = vmatpush1.bf16.msra.mxu0 0
    %3200 = vmatprep.mubr.bf16.mxu0 0
    %3201 = vmatmul.mubr.bf16.gmra.mrb[0].mxu0 %v3167
    %v3202 = vpop.f32.mrb[0].mxu0
    %v3203 = vadd.f32 0.0, %v3202
    %v3204 = vpop.f32.mrb[0].mxu0
    %v3205 = vadd.f32 0.0, %v3204
    %v3206 = vpop.f32.mrb[0].mxu0
    %v3207 = vadd.f32 0.0, %v3206
    %v3208 = vpop.f32.mrb[0].mxu0
    %v3209 = vadd.f32 0.0, %v3208
    %3210 = vdwg.mxu0
    %3211 = vmatprep.subr.bf16.mxu0 0
    %3212 = vmatpush1.bf16.msra.mxu0 %v2654
    %3213 = vmatprep.subr.bf16.mxu0 0
    %3214 = vmatpush1.bf16.msra.mxu0 %v2657
    %3215 = vmatprep.subr.bf16.mxu0 0
    %3216 = vmatpush1.bf16.msra.mxu0 %v2660
    %3217 = vmatprep.subr.bf16.mxu0 0
    %3218 = vmatpush1.bf16.msra.mxu0 %v2663
    %3219 = vmatprep.subr.bf16.mxu0 0
    %3220 = vmatpush1.bf16.msra.mxu0 %v2666
    %3221 = vmatprep.subr.bf16.mxu0 0
    %3222 = vmatpush1.bf16.msra.mxu0 %v2669
    %3223 = vmatprep.subr.bf16.mxu0 0
    %3224 = vmatpush1.bf16.msra.mxu0 %v2672
    %3225 = vmatprep.subr.bf16.mxu0 0
    %3226 = vmatpush1.bf16.msra.mxu0 %v2675
    %3227 = vmatprep.subr.bf16.mxu0 0
    %3228 = vmatpush1.bf16.msra.mxu0 0
    %3229 = vmatprep.subr.bf16.mxu0 0
    %3230 = vmatpush1.bf16.msra.mxu0 0
    %3231 = vmatprep.subr.bf16.mxu0 0
    %3232 = vmatpush1.bf16.msra.mxu0 0
    %3233 = vmatprep.subr.bf16.mxu0 0
    %3234 = vmatpush1.bf16.msra.mxu0 0
    %3235 = vmatprep.subr.bf16.mxu0 0
    %3236 = vmatpush1.bf16.msra.mxu0 0
    %3237 = vmatprep.subr.bf16.mxu0 0
    %3238 = vmatpush1.bf16.msra.mxu0 0
    %3239 = vmatprep.subr.bf16.mxu0 0
    %3240 = vmatpush1.bf16.msra.mxu0 0
    %3241 = vmatprep.subr.bf16.mxu0 0
    %3242 = vmatpush1.bf16.msra.mxu0 0
    %3243 = vmatprep.mubr.bf16.mxu0 0
    %3244 = vmatmul.mubr.bf16.gmra.mrb[0].mxu0 %v3167
    %v3245 = vpop.f32.mrb[0].mxu0
    %v3246 = vadd.f32 0.0, %v3245
    %v3247 = vpop.f32.mrb[0].mxu0
    %v3248 = vpop.f32.mrb[0].mxu0
    %v3249 = vadd.f32 0.0, %v3248
    %v3250 = vpop.f32.mrb[0].mxu0
    %3251 = vdwg.mxu0
    %v3252 = vadd.f32 %v3161, %v3203
    %v3253 = vadd.f32 %v3164, %v3207
    %v3254 = vxor.u32 %v3252, 2147483648
    %v3255 = vxor.u32 %v3253, 2147483648
    %v3256 = vmul.f32 %v3254, 1.442695
    %v3257 = vpow.pop %v3256
    %v3258 = vmul.f32 %v3255, 1.442695
    %v3259 = vpow.pop %v3258
    %v3260 = vadd.f32 %v3257, 1.0
    %v3261 = vadd.f32 %v3259, 1.0
    %v3262 = vrcp.pop %v3260
    %v3263 = vmul.f32 1.0, %v3262
    %v3264 = vrcp.pop %v3261
    %v3265 = vmul.f32 1.0, %v3264
    %v3266 = vadd.f32 %v3162, %v3205
    %v3267 = vadd.f32 %v3165, %v3209
    %v3268 = vxor.u32 %v3266, 2147483648
    %v3269 = vxor.u32 %v3267, 2147483648
    %v3270 = vmul.f32 %v3268, 1.442695
    %v3271 = vpow.pop %v3270
    %v3272 = vmul.f32 %v3269, 1.442695
    %v3273 = vpow.pop %v3272
    %v3274 = vadd.f32 %v3271, 1.0
    %v3275 = vadd.f32 %v3273, 1.0
    %v3276 = vrcp.pop %v3274
    %v3277 = vmul.f32 1.0, %v3276
    %v3278 = vrcp.pop %v3275
    %v3279 = vmul.f32 1.0, %v3278
    %v3280 = vadd.f32 %v3246, %v2816
    %v3281 = vadd.f32 %v3249, %v2816
    %v3282 = vmul.f32 %v3263, %v3280
    %v3283 = vmul.f32 %v3265, %v3281
    %v3284 = vadd.f32 %v3163, %v3282
    %v3285 = vadd.f32 %v3166, %v3283
    %v3286 = vtanh.pop %v3284
    %v3287 = vtanh.pop %v3285
    %v3288 = vld [vmem:[%s1275] sm:$0xff]
    %v3289 = vld [vmem:[%s1275 + $0x8] sm:$0xff]
    %3291 = vset.pattern.permute.xlu0 0
    %3292 = vperm.xlu0 %3291, %v3288
    %v3293 = vpop.permute.xlu0 %3292
    %3296 = vset.pattern.permute.xlu0 0
    %3297 = vperm.xlu0 %3296, %v3289
    %v3298 = vpop.permute.xlu0 %3297
    %v3300 = vmul.f32 %v3293, %v3277
    %v3301 = vmul.f32 %v3298, %v3279
    %v3302 = vsub.f32 1.0, %v3300
    %v3303 = vsub.f32 1.0, %v3301
    %v3304 = vmul.f32 %v3302, %v3156
    %v3305 = vmul.f32 %v3303, %v3157
    %v3306 = vmul.f32 %v3300, %v3286
    %v3307 = vmul.f32 %v3301, %v3287
    %v3308 = vadd.f32 %v3304, %v3306
    %v3309 = vadd.f32 %v3305, %v3307
    %v3310 = vsel %vm1271, %v3308, %v3156
    %v3311 = vsel %vm1272, %v3309, %v3157
    %v3312 = vld [vmem:[%s1280] sm:$0xff]
    %v3313 = vld [vmem:[%s1280 + $0x8] sm:$0xff]
    %v3314 = vld [vmem:[%s1280 + $0x10] sm:$0xff]
    %v3315 = vunpack.c.l.bf16 %v3312
    %v3316 = vunpack.c.l.bf16 %v3313
    %v3317 = vunpack.c.l.bf16 %v3314
    %v3318 = vunpack.c.h.bf16 %v3312
    %v3319 = vunpack.c.h.bf16 %v3313
    %v3320 = vunpack.c.h.bf16 %v3314
    %v3321 = vpack.c.bf16 %v3311, %v3310
    %3322 = vmatprep.subr.bf16.mxu0 %v2653
    %3323 = vmatpush1.bf16.msra.mxu0 %v2652
    %3324 = vmatprep.subr.bf16.mxu0 %v2656
    %3325 = vmatpush1.bf16.msra.mxu0 %v2655
    %3326 = vmatprep.subr.bf16.mxu0 %v2659
    %3327 = vmatpush1.bf16.msra.mxu0 %v2658
    %3328 = vmatprep.subr.bf16.mxu0 %v2662
    %3329 = vmatpush1.bf16.msra.mxu0 %v2661
    %3330 = vmatprep.subr.bf16.mxu0 %v2665
    %3331 = vmatpush1.bf16.msra.mxu0 %v2664
    %3332 = vmatprep.subr.bf16.mxu0 %v2668
    %3333 = vmatpush1.bf16.msra.mxu0 %v2667
    %3334 = vmatprep.subr.bf16.mxu0 %v2671
    %3335 = vmatpush1.bf16.msra.mxu0 %v2670
    %3336 = vmatprep.subr.bf16.mxu0 %v2674
    %3337 = vmatpush1.bf16.msra.mxu0 %v2673
    %3338 = vmatprep.subr.bf16.mxu0 0
    %3339 = vmatpush1.bf16.msra.mxu0 0
    %3340 = vmatprep.subr.bf16.mxu0 0
    %3341 = vmatpush1.bf16.msra.mxu0 0
    %3342 = vmatprep.subr.bf16.mxu0 0
    %3343 = vmatpush1.bf16.msra.mxu0 0
    %3344 = vmatprep.subr.bf16.mxu0 0
    %3345 = vmatpush1.bf16.msra.mxu0 0
    %3346 = vmatprep.subr.bf16.mxu0 0
    %3347 = vmatpush1.bf16.msra.mxu0 0
    %3348 = vmatprep.subr.bf16.mxu0 0
    %3349 = vmatpush1.bf16.msra.mxu0 0
    %3350 = vmatprep.subr.bf16.mxu0 0
    %3351 = vmatpush1.bf16.msra.mxu0 0
    %3352 = vmatprep.subr.bf16.mxu0 0
    %3353 = vmatpush1.bf16.msra.mxu0 0
    %3354 = vmatprep.mubr.bf16.mxu0 0
    %3355 = vmatmul.mubr.bf16.gmra.mrb[0].mxu0 %v3321
    %v3356 = vpop.f32.mrb[0].mxu0
    %v3357 = vadd.f32 0.0, %v3356
    %v3358 = vpop.f32.mrb[0].mxu0
    %v3359 = vadd.f32 0.0, %v3358
    %v3360 = vpop.f32.mrb[0].mxu0
    %v3361 = vadd.f32 0.0, %v3360
    %v3362 = vpop.f32.mrb[0].mxu0
    %v3363 = vadd.f32 0.0, %v3362
    %3364 = vdwg.mxu0
    %3365 = vmatprep.subr.bf16.mxu0 0
    %3366 = vmatpush1.bf16.msra.mxu0 %v2654
    %3367 = vmatprep.subr.bf16.mxu0 0
    %3368 = vmatpush1.bf16.msra.mxu0 %v2657
    %3369 = vmatprep.subr.bf16.mxu0 0
    %3370 = vmatpush1.bf16.msra.mxu0 %v2660
    %3371 = vmatprep.subr.bf16.mxu0 0
    %3372 = vmatpush1.bf16.msra.mxu0 %v2663
    %3373 = vmatprep.subr.bf16.mxu0 0
    %3374 = vmatpush1.bf16.msra.mxu0 %v2666
    %3375 = vmatprep.subr.bf16.mxu0 0
    %3376 = vmatpush1.bf16.msra.mxu0 %v2669
    %3377 = vmatprep.subr.bf16.mxu0 0
    %3378 = vmatpush1.bf16.msra.mxu0 %v2672
    %3379 = vmatprep.subr.bf16.mxu0 0
    %3380 = vmatpush1.bf16.msra.mxu0 %v2675
    %3381 = vmatprep.subr.bf16.mxu0 0
    %3382 = vmatpush1.bf16.msra.mxu0 0
    %3383 = vmatprep.subr.bf16.mxu0 0
    %3384 = vmatpush1.bf16.msra.mxu0 0
    %3385 = vmatprep.subr.bf16.mxu0 0
    %3386 = vmatpush1.bf16.msra.mxu0 0
    %3387 = vmatprep.subr.bf16.mxu0 0
    %3388 = vmatpush1.bf16.msra.mxu0 0
    %3389 = vmatprep.subr.bf16.mxu0 0
    %3390 = vmatpush1.bf16.msra.mxu0 0
    %3391 = vmatprep.subr.bf16.mxu0 0
    %3392 = vmatpush1.bf16.msra.mxu0 0
    %3393 = vmatprep.subr.bf16.mxu0 0
    %3394 = vmatpush1.bf16.msra.mxu0 0
    %3395 = vmatprep.subr.bf16.mxu0 0
    %3396 = vmatpush1.bf16.msra.mxu0 0
    %3397 = vmatprep.mubr.bf16.mxu0 0
    %3398 = vmatmul.mubr.bf16.gmra.mrb[0].mxu0 %v3321
    %v3399 = vpop.f32.mrb[0].mxu0
    %v3400 = vadd.f32 0.0, %v3399
    %v3401 = vpop.f32.mrb[0].mxu0
    %v3402 = vpop.f32.mrb[0].mxu0
    %v3403 = vadd.f32 0.0, %v3402
    %v3404 = vpop.f32.mrb[0].mxu0
    %3405 = vdwg.mxu0
    %v3406 = vadd.f32 %v3315, %v3357
    %v3407 = vadd.f32 %v3318, %v3361
    %v3408 = vxor.u32 %v3406, 2147483648
    %v3409 = vxor.u32 %v3407, 2147483648
    %v3410 = vmul.f32 %v3408, 1.442695
    %v3411 = vpow.pop %v3410
    %v3412 = vmul.f32 %v3409, 1.442695
    %v3413 = vpow.pop %v3412
    %v3414 = vadd.f32 %v3411, 1.0
    %v3415 = vadd.f32 %v3413, 1.0
    %v3416 = vrcp.pop %v3414
    %v3417 = vmul.f32 1.0, %v3416
    %v3418 = vrcp.pop %v3415
    %v3419 = vmul.f32 1.0, %v3418
    %v3420 = vadd.f32 %v3316, %v3359
    %v3421 = vadd.f32 %v3319, %v3363
    %v3422 = vxor.u32 %v3420, 2147483648
    %v3423 = vxor.u32 %v3421, 2147483648
    %v3424 = vmul.f32 %v3422, 1.442695
    %v3425 = vpow.pop %v3424
    %v3426 = vmul.f32 %v3423, 1.442695
    %v3427 = vpow.pop %v3426
    %v3428 = vadd.f32 %v3425, 1.0
    %v3429 = vadd.f32 %v3427, 1.0
    %v3430 = vrcp.pop %v3428
    %v3431 = vmul.f32 1.0, %v3430
    %v3432 = vrcp.pop %v3429
    %v3433 = vmul.f32 1.0, %v3432
    %v3434 = vadd.f32 %v3400, %v2816
    %v3435 = vadd.f32 %v3403, %v2816
    %v3436 = vmul.f32 %v3417, %v3434
    %v3437 = vmul.f32 %v3419, %v3435
    %v3438 = vadd.f32 %v3317, %v3436
    %v3439 = vadd.f32 %v3320, %v3437
    %v3440 = vtanh.pop %v3438
    %v3441 = vtanh.pop %v3439
    %v3442 = vld [vmem:[%s1433] sm:$0xff]
    %v3443 = vld [vmem:[%s1433 + $0x8] sm:$0xff]
    %3445 = vset.pattern.permute.xlu0 0
    %3446 = vperm.xlu0 %3445, %v3442
    %v3447 = vpop.permute.xlu0 %3446
    %3450 = vset.pattern.permute.xlu0 0
    %3451 = vperm.xlu0 %3450, %v3443
    %v3452 = vpop.permute.xlu0 %3451
    %v3454 = vmul.f32 %v3447, %v3431
    %v3455 = vmul.f32 %v3452, %v3433
    %v3456 = vsub.f32 1.0, %v3454
    %v3457 = vsub.f32 1.0, %v3455
    %v3458 = vmul.f32 %v3456, %v3310
    %v3459 = vmul.f32 %v3457, %v3311
    %v3460 = vmul.f32 %v3454, %v3440
    %v3461 = vmul.f32 %v3455, %v3441
    %v3462 = vadd.f32 %v3458, %v3460
    %v3463 = vadd.f32 %v3459, %v3461
    %v3464 = vsel %vm1429, %v3462, %v3310
    %v3465 = vsel %vm1430, %v3463, %v3311
    %v3466 = vld [vmem:[%s1438] sm:$0xff]
    %v3467 = vld [vmem:[%s1438 + $0x8] sm:$0xff]
    %v3468 = vld [vmem:[%s1438 + $0x10] sm:$0xff]
    %v3469 = vunpack.c.l.bf16 %v3466
    %v3470 = vunpack.c.l.bf16 %v3467
    %v3471 = vunpack.c.l.bf16 %v3468
    %v3472 = vunpack.c.h.bf16 %v3466
    %v3473 = vunpack.c.h.bf16 %v3467
    %v3474 = vunpack.c.h.bf16 %v3468
    %v3475 = vpack.c.bf16 %v3465, %v3464
    %3476 = vmatprep.subr.bf16.mxu0 %v2653
    %3477 = vmatpush1.bf16.msra.mxu0 %v2652
    %3478 = vmatprep.subr.bf16.mxu0 %v2656
    %3479 = vmatpush1.bf16.msra.mxu0 %v2655
    %3480 = vmatprep.subr.bf16.mxu0 %v2659
    %3481 = vmatpush1.bf16.msra.mxu0 %v2658
    %3482 = vmatprep.subr.bf16.mxu0 %v2662
    %3483 = vmatpush1.bf16.msra.mxu0 %v2661
    %3484 = vmatprep.subr.bf16.mxu0 %v2665
    %3485 = vmatpush1.bf16.msra.mxu0 %v2664
    %3486 = vmatprep.subr.bf16.mxu0 %v2668
    %3487 = vmatpush1.bf16.msra.mxu0 %v2667
    %3488 = vmatprep.subr.bf16.mxu0 %v2671
    %3489 = vmatpush1.bf16.msra.mxu0 %v2670
    %3490 = vmatprep.subr.bf16.mxu0 %v2674
    %3491 = vmatpush1.bf16.msra.mxu0 %v2673
    %3492 = vmatprep.subr.bf16.mxu0 0
    %3493 = vmatpush1.bf16.msra.mxu0 0
    %3494 = vmatprep.subr.bf16.mxu0 0
    %3495 = vmatpush1.bf16.msra.mxu0 0
    %3496 = vmatprep.subr.bf16.mxu0 0
    %3497 = vmatpush1.bf16.msra.mxu0 0
    %3498 = vmatprep.subr.bf16.mxu0 0
    %3499 = vmatpush1.bf16.msra.mxu0 0
    %3500 = vmatprep.subr.bf16.mxu0 0
    %3501 = vmatpush1.bf16.msra.mxu0 0
    %3502 = vmatprep.subr.bf16.mxu0 0
    %3503 = vmatpush1.bf16.msra.mxu0 0
    %3504 = vmatprep.subr.bf16.mxu0 0
    %3505 = vmatpush1.bf16.msra.mxu0 0
    %3506 = vmatprep.subr.bf16.mxu0 0
    %3507 = vmatpush1.bf16.msra.mxu0 0
    %3508 = vmatprep.mubr.bf16.mxu0 0
    %3509 = vmatmul.mubr.bf16.gmra.mrb[0].mxu0 %v3475
    %v3510 = vpop.f32.mrb[0].mxu0
    %v3511 = vadd.f32 0.0, %v3510
    %v3512 = vpop.f32.mrb[0].mxu0
    %v3513 = vadd.f32 0.0, %v3512
    %v3514 = vpop.f32.mrb[0].mxu0
    %v3515 = vadd.f32 0.0, %v3514
    %v3516 = vpop.f32.mrb[0].mxu0
    %v3517 = vadd.f32 0.0, %v3516
    %3518 = vdwg.mxu0
    %3519 = vmatprep.subr.bf16.mxu0 0
    %3520 = vmatpush1.bf16.msra.mxu0 %v2654
    %3521 = vmatprep.subr.bf16.mxu0 0
    %3522 = vmatpush1.bf16.msra.mxu0 %v2657
    %3523 = vmatprep.subr.bf16.mxu0 0
    %3524 = vmatpush1.bf16.msra.mxu0 %v2660
    %3525 = vmatprep.subr.bf16.mxu0 0
    %3526 = vmatpush1.bf16.msra.mxu0 %v2663
    %3527 = vmatprep.subr.bf16.mxu0 0
    %3528 = vmatpush1.bf16.msra.mxu0 %v2666
    %3529 = vmatprep.subr.bf16.mxu0 0
    %3530 = vmatpush1.bf16.msra.mxu0 %v2669
    %3531 = vmatprep.subr.bf16.mxu0 0
    %3532 = vmatpush1.bf16.msra.mxu0 %v2672
    %3533 = vmatprep.subr.bf16.mxu0 0
    %3534 = vmatpush1.bf16.msra.mxu0 %v2675
    %3535 = vmatprep.subr.bf16.mxu0 0
    %3536 = vmatpush1.bf16.msra.mxu0 0
    %3537 = vmatprep.subr.bf16.mxu0 0
    %3538 = vmatpush1.bf16.msra.mxu0 0
    %3539 = vmatprep.subr.bf16.mxu0 0
    %3540 = vmatpush1.bf16.msra.mxu0 0
    %3541 = vmatprep.subr.bf16.mxu0 0
    %3542 = vmatpush1.bf16.msra.mxu0 0
    %3543 = vmatprep.subr.bf16.mxu0 0
    %3544 = vmatpush1.bf16.msra.mxu0 0
    %3545 = vmatprep.subr.bf16.mxu0 0
    %3546 = vmatpush1.bf16.msra.mxu0 0
    %3547 = vmatprep.subr.bf16.mxu0 0
    %3548 = vmatpush1.bf16.msra.mxu0 0
    %3549 = vmatprep.subr.bf16.mxu0 0
    %3550 = vmatpush1.bf16.msra.mxu0 0
    %3551 = vmatprep.mubr.bf16.mxu0 0
    %3552 = vmatmul.mubr.bf16.gmra.mrb[0].mxu0 %v3475
    %v3553 = vpop.f32.mrb[0].mxu0
    %v3554 = vadd.f32 0.0, %v3553
    %v3555 = vpop.f32.mrb[0].mxu0
    %v3556 = vpop.f32.mrb[0].mxu0
    %v3557 = vadd.f32 0.0, %v3556
    %v3558 = vpop.f32.mrb[0].mxu0
    %3559 = vdwg.mxu0
    %v3560 = vadd.f32 %v3469, %v3511
    %v3561 = vadd.f32 %v3472, %v3515
    %v3562 = vxor.u32 %v3560, 2147483648
    %v3563 = vxor.u32 %v3561, 2147483648
    %v3564 = vmul.f32 %v3562, 1.442695
    %v3565 = vpow.pop %v3564
    %v3566 = vmul.f32 %v3563, 1.442695
    %v3567 = vpow.pop %v3566
    %v3568 = vadd.f32 %v3565, 1.0
    %v3569 = vadd.f32 %v3567, 1.0
    %v3570 = vrcp.pop %v3568
    %v3571 = vmul.f32 1.0, %v3570
    %v3572 = vrcp.pop %v3569
    %v3573 = vmul.f32 1.0, %v3572
    %v3574 = vadd.f32 %v3470, %v3513
    %v3575 = vadd.f32 %v3473, %v3517
    %v3576 = vxor.u32 %v3574, 2147483648
    %v3577 = vxor.u32 %v3575, 2147483648
    %v3578 = vmul.f32 %v3576, 1.442695
    %v3579 = vpow.pop %v3578
    %v3580 = vmul.f32 %v3577, 1.442695
    %v3581 = vpow.pop %v3580
    %v3582 = vadd.f32 %v3579, 1.0
    %v3583 = vadd.f32 %v3581, 1.0
    %v3584 = vrcp.pop %v3582
    %v3585 = vmul.f32 1.0, %v3584
    %v3586 = vrcp.pop %v3583
    %v3587 = vmul.f32 1.0, %v3586
    %v3588 = vadd.f32 %v3554, %v2816
    %v3589 = vadd.f32 %v3557, %v2816
    %v3590 = vmul.f32 %v3571, %v3588
    %v3591 = vmul.f32 %v3573, %v3589
    %v3592 = vadd.f32 %v3471, %v3590
    %v3593 = vadd.f32 %v3474, %v3591
    %v3594 = vtanh.pop %v3592
    %v3595 = vtanh.pop %v3593
    %v3596 = vld [vmem:[%s1591] sm:$0xff]
    %v3597 = vld [vmem:[%s1591 + $0x8] sm:$0xff]
    %3599 = vset.pattern.permute.xlu0 0
    %3600 = vperm.xlu0 %3599, %v3596
    %v3601 = vpop.permute.xlu0 %3600
    %3604 = vset.pattern.permute.xlu0 0
    %3605 = vperm.xlu0 %3604, %v3597
    %v3606 = vpop.permute.xlu0 %3605
    %v3608 = vmul.f32 %v3601, %v3585
    %v3609 = vmul.f32 %v3606, %v3587
    %v3610 = vsub.f32 1.0, %v3608
    %v3611 = vsub.f32 1.0, %v3609
    %v3612 = vmul.f32 %v3610, %v3464
    %v3613 = vmul.f32 %v3611, %v3465
    %v3614 = vmul.f32 %v3608, %v3594
    %v3615 = vmul.f32 %v3609, %v3595
    %v3616 = vadd.f32 %v3612, %v3614
    %v3617 = vadd.f32 %v3613, %v3615
    %v3618 = vsel %vm1587, %v3616, %v3464
    %v3619 = vsel %vm1588, %v3617, %v3465
    %v3620 = vld [vmem:[%s1596] sm:$0xff]
    %v3621 = vld [vmem:[%s1596 + $0x8] sm:$0xff]
    %v3622 = vld [vmem:[%s1596 + $0x10] sm:$0xff]
    %v3623 = vunpack.c.l.bf16 %v3620
    %v3624 = vunpack.c.l.bf16 %v3621
    %v3625 = vunpack.c.l.bf16 %v3622
    %v3626 = vunpack.c.h.bf16 %v3620
    %v3627 = vunpack.c.h.bf16 %v3621
    %v3628 = vunpack.c.h.bf16 %v3622
    %v3629 = vpack.c.bf16 %v3619, %v3618
    %3630 = vmatprep.subr.bf16.mxu0 %v2653
    %3631 = vmatpush1.bf16.msra.mxu0 %v2652
    %3632 = vmatprep.subr.bf16.mxu0 %v2656
    %3633 = vmatpush1.bf16.msra.mxu0 %v2655
    %3634 = vmatprep.subr.bf16.mxu0 %v2659
    %3635 = vmatpush1.bf16.msra.mxu0 %v2658
    %3636 = vmatprep.subr.bf16.mxu0 %v2662
    %3637 = vmatpush1.bf16.msra.mxu0 %v2661
    %3638 = vmatprep.subr.bf16.mxu0 %v2665
    %3639 = vmatpush1.bf16.msra.mxu0 %v2664
    %3640 = vmatprep.subr.bf16.mxu0 %v2668
    %3641 = vmatpush1.bf16.msra.mxu0 %v2667
    %3642 = vmatprep.subr.bf16.mxu0 %v2671
    %3643 = vmatpush1.bf16.msra.mxu0 %v2670
    %3644 = vmatprep.subr.bf16.mxu0 %v2674
    %3645 = vmatpush1.bf16.msra.mxu0 %v2673
    %3646 = vmatprep.subr.bf16.mxu0 0
    %3647 = vmatpush1.bf16.msra.mxu0 0
    %3648 = vmatprep.subr.bf16.mxu0 0
    %3649 = vmatpush1.bf16.msra.mxu0 0
    %3650 = vmatprep.subr.bf16.mxu0 0
    %3651 = vmatpush1.bf16.msra.mxu0 0
    %3652 = vmatprep.subr.bf16.mxu0 0
    %3653 = vmatpush1.bf16.msra.mxu0 0
    %3654 = vmatprep.subr.bf16.mxu0 0
    %3655 = vmatpush1.bf16.msra.mxu0 0
    %3656 = vmatprep.subr.bf16.mxu0 0
    %3657 = vmatpush1.bf16.msra.mxu0 0
    %3658 = vmatprep.subr.bf16.mxu0 0
    %3659 = vmatpush1.bf16.msra.mxu0 0
    %3660 = vmatprep.subr.bf16.mxu0 0
    %3661 = vmatpush1.bf16.msra.mxu0 0
    %3662 = vmatprep.mubr.bf16.mxu0 0
    %3663 = vmatmul.mubr.bf16.gmra.mrb[0].mxu0 %v3629
    %v3664 = vpop.f32.mrb[0].mxu0
    %v3665 = vadd.f32 0.0, %v3664
    %v3666 = vpop.f32.mrb[0].mxu0
    %v3667 = vadd.f32 0.0, %v3666
    %v3668 = vpop.f32.mrb[0].mxu0
    %v3669 = vadd.f32 0.0, %v3668
    %v3670 = vpop.f32.mrb[0].mxu0
    %v3671 = vadd.f32 0.0, %v3670
    %3672 = vdwg.mxu0
    %3673 = vmatprep.subr.bf16.mxu0 0
    %3674 = vmatpush1.bf16.msra.mxu0 %v2654
    %3675 = vmatprep.subr.bf16.mxu0 0
    %3676 = vmatpush1.bf16.msra.mxu0 %v2657
    %3677 = vmatprep.subr.bf16.mxu0 0
    %3678 = vmatpush1.bf16.msra.mxu0 %v2660
    %3679 = vmatprep.subr.bf16.mxu0 0
    %3680 = vmatpush1.bf16.msra.mxu0 %v2663
    %3681 = vmatprep.subr.bf16.mxu0 0
    %3682 = vmatpush1.bf16.msra.mxu0 %v2666
    %3683 = vmatprep.subr.bf16.mxu0 0
    %3684 = vmatpush1.bf16.msra.mxu0 %v2669
    %3685 = vmatprep.subr.bf16.mxu0 0
    %3686 = vmatpush1.bf16.msra.mxu0 %v2672
    %3687 = vmatprep.subr.bf16.mxu0 0
    %3688 = vmatpush1.bf16.msra.mxu0 %v2675
    %3689 = vmatprep.subr.bf16.mxu0 0
    %3690 = vmatpush1.bf16.msra.mxu0 0
    %3691 = vmatprep.subr.bf16.mxu0 0
    %3692 = vmatpush1.bf16.msra.mxu0 0
    %3693 = vmatprep.subr.bf16.mxu0 0
    %3694 = vmatpush1.bf16.msra.mxu0 0
    %3695 = vmatprep.subr.bf16.mxu0 0
    %3696 = vmatpush1.bf16.msra.mxu0 0
    %3697 = vmatprep.subr.bf16.mxu0 0
    %3698 = vmatpush1.bf16.msra.mxu0 0
    %3699 = vmatprep.subr.bf16.mxu0 0
    %3700 = vmatpush1.bf16.msra.mxu0 0
    %3701 = vmatprep.subr.bf16.mxu0 0
    %3702 = vmatpush1.bf16.msra.mxu0 0
    %3703 = vmatprep.subr.bf16.mxu0 0
    %3704 = vmatpush1.bf16.msra.mxu0 0
    %3705 = vmatprep.mubr.bf16.mxu0 0
    %3706 = vmatmul.mubr.bf16.gmra.mrb[0].mxu0 %v3629
    %v3707 = vpop.f32.mrb[0].mxu0
    %v3708 = vadd.f32 0.0, %v3707
    %v3709 = vpop.f32.mrb[0].mxu0
    %v3710 = vpop.f32.mrb[0].mxu0
    %v3711 = vadd.f32 0.0, %v3710
    %v3712 = vpop.f32.mrb[0].mxu0
    %3713 = vdwg.mxu0
    %v3714 = vadd.f32 %v3623, %v3665
    %v3715 = vadd.f32 %v3626, %v3669
    %v3716 = vxor.u32 %v3714, 2147483648
    %v3717 = vxor.u32 %v3715, 2147483648
    %v3718 = vmul.f32 %v3716, 1.442695
    %v3719 = vpow.pop %v3718
    %v3720 = vmul.f32 %v3717, 1.442695
    %v3721 = vpow.pop %v3720
    %v3722 = vadd.f32 %v3719, 1.0
    %v3723 = vadd.f32 %v3721, 1.0
    %v3724 = vrcp.pop %v3722
    %v3725 = vmul.f32 1.0, %v3724
    %v3726 = vrcp.pop %v3723
    %v3727 = vmul.f32 1.0, %v3726
    %v3728 = vadd.f32 %v3624, %v3667
    %v3729 = vadd.f32 %v3627, %v3671
    %v3730 = vxor.u32 %v3728, 2147483648
    %v3731 = vxor.u32 %v3729, 2147483648
    %v3732 = vmul.f32 %v3730, 1.442695
    %v3733 = vpow.pop %v3732
    %v3734 = vmul.f32 %v3731, 1.442695
    %v3735 = vpow.pop %v3734
    %v3736 = vadd.f32 %v3733, 1.0
    %v3737 = vadd.f32 %v3735, 1.0
    %v3738 = vrcp.pop %v3736
    %v3739 = vmul.f32 1.0, %v3738
    %v3740 = vrcp.pop %v3737
    %v3741 = vmul.f32 1.0, %v3740
    %v3742 = vadd.f32 %v3708, %v2816
    %v3743 = vadd.f32 %v3711, %v2816
    %v3744 = vmul.f32 %v3725, %v3742
    %v3745 = vmul.f32 %v3727, %v3743
    %v3746 = vadd.f32 %v3625, %v3744
    %v3747 = vadd.f32 %v3628, %v3745
    %v3748 = vtanh.pop %v3746
    %v3749 = vtanh.pop %v3747
    %v3750 = vld [vmem:[%s1749] sm:$0xff]
    %v3751 = vld [vmem:[%s1749 + $0x8] sm:$0xff]
    %3753 = vset.pattern.permute.xlu0 0
    %3754 = vperm.xlu0 %3753, %v3750
    %v3755 = vpop.permute.xlu0 %3754
    %3758 = vset.pattern.permute.xlu0 0
    %3759 = vperm.xlu0 %3758, %v3751
    %v3760 = vpop.permute.xlu0 %3759
    %v3762 = vmul.f32 %v3755, %v3739
    %v3763 = vmul.f32 %v3760, %v3741
    %v3764 = vsub.f32 1.0, %v3762
    %v3765 = vsub.f32 1.0, %v3763
    %v3766 = vmul.f32 %v3764, %v3618
    %v3767 = vmul.f32 %v3765, %v3619
    %v3768 = vmul.f32 %v3762, %v3748
    %v3769 = vmul.f32 %v3763, %v3749
    %v3770 = vadd.f32 %v3766, %v3768
    %v3771 = vadd.f32 %v3767, %v3769
    %v3772 = vsel %vm1745, %v3770, %v3618
    %v3773 = vsel %vm1746, %v3771, %v3619
    %v3774 = vld [vmem:[%s1754] sm:$0xff]
    %v3775 = vld [vmem:[%s1754 + $0x8] sm:$0xff]
    %v3776 = vld [vmem:[%s1754 + $0x10] sm:$0xff]
    %v3777 = vunpack.c.l.bf16 %v3774
    %v3778 = vunpack.c.l.bf16 %v3775
    %v3779 = vunpack.c.l.bf16 %v3776
    %v3780 = vunpack.c.h.bf16 %v3774
    %v3781 = vunpack.c.h.bf16 %v3775
    %v3782 = vunpack.c.h.bf16 %v3776
    %v3783 = vpack.c.bf16 %v3773, %v3772
    %3784 = vmatprep.subr.bf16.mxu0 %v2653
    %3785 = vmatpush1.bf16.msra.mxu0 %v2652
    %3786 = vmatprep.subr.bf16.mxu0 %v2656
    %3787 = vmatpush1.bf16.msra.mxu0 %v2655
    %3788 = vmatprep.subr.bf16.mxu0 %v2659
    %3789 = vmatpush1.bf16.msra.mxu0 %v2658
    %3790 = vmatprep.subr.bf16.mxu0 %v2662
    %3791 = vmatpush1.bf16.msra.mxu0 %v2661
    %3792 = vmatprep.subr.bf16.mxu0 %v2665
    %3793 = vmatpush1.bf16.msra.mxu0 %v2664
    %3794 = vmatprep.subr.bf16.mxu0 %v2668
    %3795 = vmatpush1.bf16.msra.mxu0 %v2667
    %3796 = vmatprep.subr.bf16.mxu0 %v2671
    %3797 = vmatpush1.bf16.msra.mxu0 %v2670
    %3798 = vmatprep.subr.bf16.mxu0 %v2674
    %3799 = vmatpush1.bf16.msra.mxu0 %v2673
    %3800 = vmatprep.subr.bf16.mxu0 0
    %3801 = vmatpush1.bf16.msra.mxu0 0
    %3802 = vmatprep.subr.bf16.mxu0 0
    %3803 = vmatpush1.bf16.msra.mxu0 0
    %3804 = vmatprep.subr.bf16.mxu0 0
    %3805 = vmatpush1.bf16.msra.mxu0 0
    %3806 = vmatprep.subr.bf16.mxu0 0
    %3807 = vmatpush1.bf16.msra.mxu0 0
    %3808 = vmatprep.subr.bf16.mxu0 0
    %3809 = vmatpush1.bf16.msra.mxu0 0
    %3810 = vmatprep.subr.bf16.mxu0 0
    %3811 = vmatpush1.bf16.msra.mxu0 0
    %3812 = vmatprep.subr.bf16.mxu0 0
    %3813 = vmatpush1.bf16.msra.mxu0 0
    %3814 = vmatprep.subr.bf16.mxu0 0
    %3815 = vmatpush1.bf16.msra.mxu0 0
    %3816 = vmatprep.mubr.bf16.mxu0 0
    %3817 = vmatmul.mubr.bf16.gmra.mrb[0].mxu0 %v3783
    %v3818 = vpop.f32.mrb[0].mxu0
    %v3819 = vadd.f32 0.0, %v3818
    %v3820 = vpop.f32.mrb[0].mxu0
    %v3821 = vadd.f32 0.0, %v3820
    %v3822 = vpop.f32.mrb[0].mxu0
    %v3823 = vadd.f32 0.0, %v3822
    %v3824 = vpop.f32.mrb[0].mxu0
    %v3825 = vadd.f32 0.0, %v3824
    %3826 = vdwg.mxu0
    %3827 = vmatprep.subr.bf16.mxu0 0
    %3828 = vmatpush1.bf16.msra.mxu0 %v2654
    %3829 = vmatprep.subr.bf16.mxu0 0
    %3830 = vmatpush1.bf16.msra.mxu0 %v2657
    %3831 = vmatprep.subr.bf16.mxu0 0
    %3832 = vmatpush1.bf16.msra.mxu0 %v2660
    %3833 = vmatprep.subr.bf16.mxu0 0
    %3834 = vmatpush1.bf16.msra.mxu0 %v2663
    %3835 = vmatprep.subr.bf16.mxu0 0
    %3836 = vmatpush1.bf16.msra.mxu0 %v2666
    %3837 = vmatprep.subr.bf16.mxu0 0
    %3838 = vmatpush1.bf16.msra.mxu0 %v2669
    %3839 = vmatprep.subr.bf16.mxu0 0
    %3840 = vmatpush1.bf16.msra.mxu0 %v2672
    %3841 = vmatprep.subr.bf16.mxu0 0
    %3842 = vmatpush1.bf16.msra.mxu0 %v2675
    %3843 = vmatprep.subr.bf16.mxu0 0
    %3844 = vmatpush1.bf16.msra.mxu0 0
    %3845 = vmatprep.subr.bf16.mxu0 0
    %3846 = vmatpush1.bf16.msra.mxu0 0
    %3847 = vmatprep.subr.bf16.mxu0 0
    %3848 = vmatpush1.bf16.msra.mxu0 0
    %3849 = vmatprep.subr.bf16.mxu0 0
    %3850 = vmatpush1.bf16.msra.mxu0 0
    %3851 = vmatprep.subr.bf16.mxu0 0
    %3852 = vmatpush1.bf16.msra.mxu0 0
    %3853 = vmatprep.subr.bf16.mxu0 0
    %3854 = vmatpush1.bf16.msra.mxu0 0
    %3855 = vmatprep.subr.bf16.mxu0 0
    %3856 = vmatpush1.bf16.msra.mxu0 0
    %3857 = vmatprep.subr.bf16.mxu0 0
    %3858 = vmatpush1.bf16.msra.mxu0 0
    %3859 = vmatprep.mubr.bf16.mxu0 0
    %3860 = vmatmul.mubr.bf16.gmra.mrb[0].mxu0 %v3783
    %v3861 = vpop.f32.mrb[0].mxu0
    %v3862 = vadd.f32 0.0, %v3861
    %v3863 = vpop.f32.mrb[0].mxu0
    %v3864 = vpop.f32.mrb[0].mxu0
    %v3865 = vadd.f32 0.0, %v3864
    %v3866 = vpop.f32.mrb[0].mxu0
    %3867 = vdwg.mxu0
    %v3868 = vadd.f32 %v3777, %v3819
    %v3869 = vadd.f32 %v3780, %v3823
    %v3870 = vxor.u32 %v3868, 2147483648
    %v3871 = vxor.u32 %v3869, 2147483648
    %v3872 = vmul.f32 %v3870, 1.442695
    %v3873 = vpow.pop %v3872
    %v3874 = vmul.f32 %v3871, 1.442695
    %v3875 = vpow.pop %v3874
    %v3876 = vadd.f32 %v3873, 1.0
    %v3877 = vadd.f32 %v3875, 1.0
    %v3878 = vrcp.pop %v3876
    %v3879 = vmul.f32 1.0, %v3878
    %v3880 = vrcp.pop %v3877
    %v3881 = vmul.f32 1.0, %v3880
    %v3882 = vadd.f32 %v3778, %v3821
    %v3883 = vadd.f32 %v3781, %v3825
    %v3884 = vxor.u32 %v3882, 2147483648
    %v3885 = vxor.u32 %v3883, 2147483648
    %v3886 = vmul.f32 %v3884, 1.442695
    %v3887 = vpow.pop %v3886
    %v3888 = vmul.f32 %v3885, 1.442695
    %v3889 = vpow.pop %v3888
    %v3890 = vadd.f32 %v3887, 1.0
    %v3891 = vadd.f32 %v3889, 1.0
    %v3892 = vrcp.pop %v3890
    %v3893 = vmul.f32 1.0, %v3892
    %v3894 = vrcp.pop %v3891
    %v3895 = vmul.f32 1.0, %v3894
    %v3896 = vadd.f32 %v3862, %v2816
    %v3897 = vadd.f32 %v3865, %v2816
    %v3898 = vmul.f32 %v3879, %v3896
    %v3899 = vmul.f32 %v3881, %v3897
    %v3900 = vadd.f32 %v3779, %v3898
    %v3901 = vadd.f32 %v3782, %v3899
    %v3902 = vtanh.pop %v3900
    %v3903 = vtanh.pop %v3901
    %v3904 = vld [vmem:[%s1907] sm:$0xff]
    %v3905 = vld [vmem:[%s1907 + $0x8] sm:$0xff]
    %3907 = vset.pattern.permute.xlu0 0
    %3908 = vperm.xlu0 %3907, %v3904
    %v3909 = vpop.permute.xlu0 %3908
    %3912 = vset.pattern.permute.xlu0 0
    %3913 = vperm.xlu0 %3912, %v3905
    %v3914 = vpop.permute.xlu0 %3913
    %v3916 = vmul.f32 %v3909, %v3893
    %v3917 = vmul.f32 %v3914, %v3895
    %v3918 = vsub.f32 1.0, %v3916
    %v3919 = vsub.f32 1.0, %v3917
    %v3920 = vmul.f32 %v3918, %v3772
    %v3921 = vmul.f32 %v3919, %v3773
    %v3922 = vmul.f32 %v3916, %v3902
    %v3923 = vmul.f32 %v3917, %v3903
    %v3924 = vadd.f32 %v3920, %v3922
    %v3925 = vadd.f32 %v3921, %v3923
    %v3926 = vsel %vm1903, %v3924, %v3772
    %v3927 = vsel %vm1904, %v3925, %v3773
    %3928 = vst [vmem:[#allocation13] sm:$0xff] %v3926
    %3929 = vst [vmem:[#allocation13 + $0x8] sm:$0xff] %v3927
    // Predicated region
    $region66: #{tpu_custom_call.1} parent=1 // pred_check
      _
    $region67: #{tpu_custom_call.1} parent=1 // pred_check_branch
      %3931 = sbr.rel (0) target = $region69
    $region68: #{tpu_custom_call.1} parent=1 // pred_region
      %s3933 = ssub.s32 256, 256
      %3934 = vsyncadd [#allocation6], %s3933
      %s3935 = sshll.u32 [#allocation13], 4
      %s3936 = int_to_ptr.vmem [resolvable:$true] %s3935
      %3941 = dma.vmem_to_hbm [thread:$0]  %s3936, 256, %s11, [#allocation6], 128, 128, 8
    $region69: #{tpu_custom_call.1} parent=1 // pred_fallthru
      _
    // Predicated region
    $region70: #{tpu_custom_call.1} parent=1 // pred_check
      _
    $region71: #{tpu_custom_call.1} parent=1 // pred_check_branch
      %3943 = sbr.rel (0) target = $region73
    $region72: #{tpu_custom_call.1} parent=1 // pred_region
      %3944 = dma.done [#allocation6], 256
    $region73: #{tpu_custom_call.1} parent=1 // pred_fallthru
      _
    %3945 = vsyncpa [#allocation5], 1
    %3946 = vsyncpa [#allocation8], 1
    %3947 = vsyncpa [#allocation11], 1
    %3948 = vsyncpa [#allocation6], 1

</llo_original>
